<compile_context>
chip_gen: v7x
topology: tpu7x:2x2x1
jax: 0.10.0
libtpu: 0.0.40
codegen_flags: <defaults>
</compile_context>

<pallas_src>
import jax
import jax.numpy as jnp
from jax.experimental import pallas as pl
from jax.experimental.pallas import tpu as pltpu


def _double_pointer_kernel(parag_ref, sent_ref, mask0_ref,
                           wp_ref, bp_ref,
                           wih_ref, whh_ref, b_ref,
                           watt_t_ref,
                           out_ref):
    """Single invocation: runs all p_len pointer-decoder steps in-kernel."""
    bs, p_len, emb = sent_ref.shape
    hid = whh_ref.shape[0]

    sent = sent_ref[...]                             # (bs, p_len, E)
    sent2d = sent.reshape(bs * p_len, emb)

    # ---- hoisted, recurrence-invariant projections (big MXU matmuls) ----
    keys = jnp.dot(sent2d, watt_t_ref[...],
                   preferred_element_type=jnp.float32
                   ).reshape(bs, p_len, hid)          # (bs, p_len, H)
    sent_gates = jnp.dot(sent2d, wih_ref[...],
                         preferred_element_type=jnp.float32
                         ).reshape(bs, p_len, 4 * hid)  # (bs, p_len, 4H)

    whh = whh_ref[...]                               # (H, 4H)
    b = b_ref[...]                                   # (1, 4H) = b_ih + b_hh

    # ---- init: hidden <- parag_to_hidden(parag), c/selected = 0 ----
    h0 = (jnp.dot(parag_ref[...], wp_ref[...],
                  preferred_element_type=jnp.float32) + bp_ref[...])
    c0 = jnp.zeros((bs, hid), jnp.float32)
    selg0 = jnp.zeros((bs, 4 * hid), jnp.float32)    # selected @ W_ih (0 at step 0)
    mask0 = mask0_ref[...]                           # 1.0 == masked (padding)
    res0 = jnp.zeros((bs, p_len, p_len), jnp.float32)

    pos_iota = jax.lax.broadcasted_iota(jnp.int32, (bs, p_len), 1)
    row_iota = jax.lax.broadcasted_iota(jnp.int32, (bs, p_len, p_len), 1)

    def step(i, carry):
        h, c, sel_g, mask, res = carry

        # ---- LSTM cell (PyTorch gate order i,f,g,o); x@W_ih is sel_g ----
        gates = sel_g + jnp.dot(h, whh, preferred_element_type=jnp.float32) + b
        # TODO(synk): at production sizes pad hid to 128 so each gate slice is a
        #             full lane span (no masked lane-select ops).
        i_g = jax.nn.sigmoid(gates[:, 0 * hid:1 * hid])
        f_g = jax.nn.sigmoid(gates[:, 1 * hid:2 * hid])
        g_g = jnp.tanh(gates[:, 2 * hid:3 * hid])
        o_g = jax.nn.sigmoid(gates[:, 3 * hid:4 * hid])
        c_new = f_g * c + i_g * g_g
        h_new = o_g * jnp.tanh(c_new)

        # ---- pointer attention: scores against hoisted keys (MXU) ----
        scores = jnp.einsum('bqh,bph->bqp', h_new[:, None, :], keys,
                            preferred_element_type=jnp.float32)[:, 0, :]
        scores = jnp.where(mask > 0.5, jnp.float32(-1e30), scores)

        # ---- fused softmax (max reused for argmax; EUP reciprocal) ----
        m = jnp.max(scores, axis=-1, keepdims=True)
        p = jnp.exp(scores - m)
        denom = jnp.sum(p, axis=-1, keepdims=True)
        attn = p * pl.reciprocal(denom, approx=True)

        # accumulate this step's attention row; single store after the loop
        res_new = jnp.where(row_iota == i, attn[:, None, :], res)

        # ---- argmax (first occurrence) -> one-hot gather in gate space ----
        idx = jnp.min(jnp.where(scores >= m, pos_iota, jnp.int32(p_len)),
                      axis=-1, keepdims=True)                    # (bs, 1)
        onehot = (pos_iota == idx).astype(jnp.float32)           # (bs, p_len)
        sel_g_new = jnp.einsum('bqp,bpg->bqg', onehot[:, None, :], sent_gates,
                               preferred_element_type=jnp.float32)[:, 0, :]
        mask_new = jnp.maximum(mask, onehot)                     # do_mask = True
        return (h_new, c_new, sel_g_new, mask_new, res_new)

    carry = jax.lax.fori_loop(0, p_len, step,
                              (h0, c0, selg0, mask0, res0),
                              unroll=True)
    out_ref[...] = carry[4]


def get_parmask(p_lengths, batch_size, p_len):
    """JAX port of the PyTorch get_parmask (glue, not in the kernel)."""
    onehot = jax.nn.one_hot(p_lengths, p_len + 1, dtype=jnp.int32)
    mask = jnp.cumsum(onehot, axis=1) > 0
    return mask[:, :-1]                                          # (bs, p_len) bool


@jax.jit
def double_pointer_forward(parag_embedded, sent_embedded, word_embedded,
                           sent_mask, p_lengths, params):
    del word_embedded, sent_mask  # unused in 'notinformed' mode
    bs, p_len, emb = sent_embedded.shape
    hid = params["W_hh"].shape[0]

    par_mask0 = get_parmask(p_lengths, bs, p_len).astype(jnp.float32)
    b_lstm = params["b_ih"] + params["b_hh"]      # pre-added bias (one add/step saved)
    w_att_t = params["W_att"].T                   # (E, H) so keys = sent @ W_att^T

    grid_spec = pltpu.PrefetchScalarGridSpec(
        num_scalar_prefetch=0,
        grid=(1,),   # whole sequential decode runs inside one kernel invocation
        in_specs=[
            pl.BlockSpec((bs, emb), lambda i: (0, 0)),            # parag
            pl.BlockSpec((bs, p_len, emb), lambda i: (0, 0, 0)),  # sent
            pl.BlockSpec((bs, p_len), lambda i: (0, 0)),          # initial mask
            pl.BlockSpec((emb, hid), lambda i: (0, 0)),           # W_p2h
            pl.BlockSpec((1, hid), lambda i: (0, 0)),             # b_p2h
            pl.BlockSpec((emb, 4 * hid), lambda i: (0, 0)),       # W_ih
            pl.BlockSpec((hid, 4 * hid), lambda i: (0, 0)),       # W_hh
            pl.BlockSpec((1, 4 * hid), lambda i: (0, 0)),         # b_ih + b_hh
            pl.BlockSpec((emb, hid), lambda i: (0, 0)),           # W_att^T
        ],
        out_specs=pl.BlockSpec((bs, p_len, p_len), lambda i: (0, 0, 0)),
    )

    out = pl.pallas_call(
        _double_pointer_kernel,
        out_shape=jax.ShapeDtypeStruct((bs, p_len, p_len), jnp.float32),
        grid_spec=grid_spec,
        compiler_params=pltpu.CompilerParams(
            dimension_semantics=("arbitrary",)),
    )(parag_embedded, sent_embedded, par_mask0,
      params["W_p2h"], params["b_p2h"],
      params["W_ih"], params["W_hh"], b_lstm,
      w_att_t)
    return out


def init_params(key, emb, hid):
    ks = jax.random.split(key, 6)
    s = 0.1
    return {
        # parag_to_hidden: Linear(E -> H)
        "W_p2h": (jax.random.normal(ks[0], (emb, hid)) * s).astype(jnp.float32),
        "b_p2h": jnp.zeros((1, hid), jnp.float32),
        # single-layer LSTM(E -> H), gate order i,f,g,o (stored transposed)
        "W_ih": (jax.random.normal(ks[1], (emb, 4 * hid)) * s).astype(jnp.float32),
        "b_ih": (jax.random.normal(ks[2], (1, 4 * hid)) * s).astype(jnp.float32),
        "W_hh": (jax.random.normal(ks[3], (hid, 4 * hid)) * s).astype(jnp.float32),
        "b_hh": (jax.random.normal(ks[4], (1, 4 * hid)) * s).astype(jnp.float32),
        # bilinear pointer attention: score = (h @ W_att) . key
        "W_att": (jax.random.normal(ks[5], (hid, emb)) * s).astype(jnp.float32),
    }


if __name__ == "__main__":
    bs, p_len, s_len, emb, hid = 2, 8, 8, 32, 32
    key = jax.random.PRNGKey(0)
    k1, k2, k3, k4 = jax.random.split(key, 4)

    parag_embedded = jax.random.normal(k1, (bs, emb), jnp.float32)
    sent_embedded = jax.random.normal(k2, (bs, p_len, emb), jnp.float32)
    word_embedded = jax.random.normal(k3, (bs, p_len, s_len, emb), jnp.float32)
    sent_mask = jnp.ones((bs * p_len, s_len), jnp.float32)   # unused (notinformed)
    p_lengths = jnp.array([8, 5], jnp.int32)                  # per-batch valid sentences

    params = init_params(k4, emb, hid)

    out = double_pointer_forward(parag_embedded, sent_embedded, word_embedded,
                                 sent_mask, p_lengths, params)
    jax.block_until_ready(out)
    assert out.shape == (bs, p_len, p_len)
    print("KERNEL_OK")
</pallas_src>

<mosaic_0001>
module attributes {stable_mosaic.version = 11 : i64} {
  func.func @_double_pointer_kernel(%arg0: i32, %arg1: memref<2x32xf32, #tpu.memory_space<vmem>>, %arg2: memref<2x8x32xf32, #tpu.memory_space<vmem>>, %arg3: memref<2x8xf32, #tpu.memory_space<vmem>>, %arg4: memref<32x32xf32, #tpu.memory_space<vmem>>, %arg5: memref<1x32xf32, #tpu.memory_space<vmem>>, %arg6: memref<32x128xf32, #tpu.memory_space<vmem>>, %arg7: memref<32x128xf32, #tpu.memory_space<vmem>>, %arg8: memref<1x128xf32, #tpu.memory_space<vmem>>, %arg9: memref<32x32xf32, #tpu.memory_space<vmem>>, %arg10: memref<2x8x8xf32, #tpu.memory_space<vmem>>) attributes {dimension_semantics = [#tpu.dimension_semantics<arbitrary>], iteration_bounds = array<i64: 1>, scalar_prefetch = 0 : i64, scratch_operands = 0 : i64, tpu.core_type = #tpu.core_type<tc>, window_params = [{pipeline_mode = #tpu.pipeline_mode<synchronous>, transform_indices = @transform_0, window_bounds = array<i64: 2, 32>}, {pipeline_mode = #tpu.pipeline_mode<synchronous>, transform_indices = @transform_1, window_bounds = array<i64: 2, 8, 32>}, {pipeline_mode = #tpu.pipeline_mode<synchronous>, transform_indices = @transform_2, window_bounds = array<i64: 2, 8>}, {pipeline_mode = #tpu.pipeline_mode<synchronous>, transform_indices = @transform_3, window_bounds = array<i64: 32, 32>}, {pipeline_mode = #tpu.pipeline_mode<synchronous>, transform_indices = @transform_4, window_bounds = array<i64: 1, 32>}, {pipeline_mode = #tpu.pipeline_mode<synchronous>, transform_indices = @transform_5, window_bounds = array<i64: 32, 128>}, {pipeline_mode = #tpu.pipeline_mode<synchronous>, transform_indices = @transform_6, window_bounds = array<i64: 32, 128>}, {pipeline_mode = #tpu.pipeline_mode<synchronous>, transform_indices = @transform_7, window_bounds = array<i64: 1, 128>}, {pipeline_mode = #tpu.pipeline_mode<synchronous>, transform_indices = @transform_8, window_bounds = array<i64: 32, 32>}, {pipeline_mode = #tpu.pipeline_mode<synchronous>, transform_indices = @transform_9, window_bounds = array<i64: 2, 8, 8>}]} {
    %c0 = arith.constant 0 : index
    %c0_0 = arith.constant 0 : index
    %c0_1 = arith.constant 0 : index
    %0 = vector.load %arg2[%c0, %c0_0, %c0_1] : memref<2x8x32xf32, #tpu.memory_space<vmem>>, vector<2x8x32xf32>
    %1 = vector.shape_cast %0 : vector<2x8x32xf32> to vector<16x32xf32>
    %c0_2 = arith.constant 0 : index
    %c0_3 = arith.constant 0 : index
    %2 = vector.load %arg9[%c0_2, %c0_3] : memref<32x32xf32, #tpu.memory_space<vmem>>, vector<32x32xf32>
    %cst = arith.constant dense<0.000000e+00> : vector<16x32xf32>
    %3 = tpu.matmul %1, %2, %cst {dimension_numbers = #tpu.dot_dimension_numbers<[1], [0], [0], [1], [0, 0, 1, 1], [], []>} : vector<16x32xf32>, vector<32x32xf32>, vector<16x32xf32> -> vector<16x32xf32>
    %4 = vector.shape_cast %3 : vector<16x32xf32> to vector<2x8x32xf32>
    %c0_4 = arith.constant 0 : index
    %c0_5 = arith.constant 0 : index
    %5 = vector.load %arg6[%c0_4, %c0_5] : memref<32x128xf32, #tpu.memory_space<vmem>>, vector<32x128xf32>
    %cst_6 = arith.constant dense<0.000000e+00> : vector<16x128xf32>
    %6 = tpu.matmul %1, %5, %cst_6 {dimension_numbers = #tpu.dot_dimension_numbers<[1], [0], [0], [1], [0, 0, 1, 1], [], []>} : vector<16x32xf32>, vector<32x128xf32>, vector<16x128xf32> -> vector<16x128xf32>
    %7 = vector.shape_cast %6 : vector<16x128xf32> to vector<2x8x128xf32>
    %c0_7 = arith.constant 0 : index
    %c0_8 = arith.constant 0 : index
    %8 = vector.load %arg7[%c0_7, %c0_8] : memref<32x128xf32, #tpu.memory_space<vmem>>, vector<32x128xf32>
    %c0_9 = arith.constant 0 : index
    %c0_10 = arith.constant 0 : index
    %9 = vector.load %arg8[%c0_9, %c0_10] : memref<1x128xf32, #tpu.memory_space<vmem>>, vector<1x128xf32>
    %c0_11 = arith.constant 0 : index
    %c0_12 = arith.constant 0 : index
    %10 = vector.load %arg1[%c0_11, %c0_12] : memref<2x32xf32, #tpu.memory_space<vmem>>, vector<2x32xf32>
    %c0_13 = arith.constant 0 : index
    %c0_14 = arith.constant 0 : index
    %11 = vector.load %arg4[%c0_13, %c0_14] : memref<32x32xf32, #tpu.memory_space<vmem>>, vector<32x32xf32>
    %cst_15 = arith.constant dense<0.000000e+00> : vector<2x32xf32>
    %12 = tpu.matmul %10, %11, %cst_15 {dimension_numbers = #tpu.dot_dimension_numbers<[1], [0], [0], [1], [0, 0, 1, 1], [], []>} : vector<2x32xf32>, vector<32x32xf32>, vector<2x32xf32> -> vector<2x32xf32>
    %c0_16 = arith.constant 0 : index
    %c0_17 = arith.constant 0 : index
    %13 = vector.load %arg5[%c0_16, %c0_17] : memref<1x32xf32, #tpu.memory_space<vmem>>, vector<1x32xf32>
    %14 = vector.broadcast %13 : vector<1x32xf32> to vector<2x32xf32>
    %15 = arith.addf %12, %14 : vector<2x32xf32>
    %cst_18 = arith.constant 0.000000e+00 : f32
    %16 = vector.broadcast %cst_18 : f32 to vector<2x32xf32>
    %cst_19 = arith.constant 0.000000e+00 : f32
    %17 = vector.broadcast %cst_19 : f32 to vector<2x128xf32>
    %c0_20 = arith.constant 0 : index
    %c0_21 = arith.constant 0 : index
    %18 = vector.load %arg3[%c0_20, %c0_21] : memref<2x8xf32, #tpu.memory_space<vmem>>, vector<2x8xf32>
    %cst_22 = arith.constant 0.000000e+00 : f32
    %19 = vector.broadcast %cst_22 : f32 to vector<2x8x8xf32>
    %20 = tpu.iota {dimensions = array<i32: 1>} : vector<2x8xi32>
    %21 = tpu.iota {dimensions = array<i32: 1>} : vector<2x8x8xi32>
    %c0_i32 = arith.constant 0 : i32
    %cst_23 = arith.constant dense<0.000000e+00> : vector<2x128xf32>
    %22 = tpu.matmul %15, %8, %cst_23 {dimension_numbers = #tpu.dot_dimension_numbers<[1], [0], [0], [1], [0, 0, 1, 1], [], []>} : vector<2x32xf32>, vector<32x128xf32>, vector<2x128xf32> -> vector<2x128xf32>
    %23 = arith.addf %17, %22 : vector<2x128xf32>
    %24 = vector.broadcast %9 : vector<1x128xf32> to vector<2x128xf32>
    %25 = arith.addf %23, %24 : vector<2x128xf32>
    %26 = vector.extract_strided_slice %25 {offsets = [0, 0], sizes = [2, 32], strides = [1, 1]} : vector<2x128xf32> to vector<2x32xf32>
    %27 = arith.negf %26 : vector<2x32xf32>
    %28 = math.exp %27 : vector<2x32xf32>
    %cst_24 = arith.constant 1.000000e+00 : f32
    %29 = vector.broadcast %cst_24 : f32 to vector<2x32xf32>
    %30 = arith.addf %29, %28 : vector<2x32xf32>
    %31 = arith.divf %29, %30 : vector<2x32xf32>
    %32 = vector.extract_strided_slice %25 {offsets = [0, 32], sizes = [2, 32], strides = [1, 1]} : vector<2x128xf32> to vector<2x32xf32>
    %33 = arith.negf %32 : vector<2x32xf32>
    %34 = math.exp %33 : vector<2x32xf32>
    %cst_25 = arith.constant 1.000000e+00 : f32
    %35 = vector.broadcast %cst_25 : f32 to vector<2x32xf32>
    %36 = arith.addf %35, %34 : vector<2x32xf32>
    %37 = arith.divf %35, %36 : vector<2x32xf32>
    %38 = vector.extract_strided_slice %25 {offsets = [0, 64], sizes = [2, 32], strides = [1, 1]} : vector<2x128xf32> to vector<2x32xf32>
    %39 = math.tanh %38 : vector<2x32xf32>
    %40 = vector.extract_strided_slice %25 {offsets = [0, 96], sizes = [2, 32], strides = [1, 1]} : vector<2x128xf32> to vector<2x32xf32>
    %41 = arith.negf %40 : vector<2x32xf32>
    %42 = math.exp %41 : vector<2x32xf32>
    %cst_26 = arith.constant 1.000000e+00 : f32
    %43 = vector.broadcast %cst_26 : f32 to vector<2x32xf32>
    %44 = arith.addf %43, %42 : vector<2x32xf32>
    %45 = arith.divf %43, %44 : vector<2x32xf32>
    %46 = arith.mulf %37, %16 : vector<2x32xf32>
    %47 = arith.mulf %31, %39 : vector<2x32xf32>
    %48 = arith.addf %46, %47 : vector<2x32xf32>
    %49 = math.tanh %48 : vector<2x32xf32>
    %50 = arith.mulf %45, %49 : vector<2x32xf32>
    %51 = vector.shape_cast %50 : vector<2x32xf32> to vector<2x1x32xf32>
    "tpu.trace_start"() <{level = 10 : i32, message = "bqh,bph->bqp"}> : () -> ()
    %cst_27 = arith.constant dense<0.000000e+00> : vector<2x1x8xf32>
    %52 = tpu.matmul %51, %4, %cst_27 {dimension_numbers = #tpu.dot_dimension_numbers<[2], [2], [1], [1], [0, 0, 0, 1, 1, 1], [0], [0]>} : vector<2x1x32xf32>, vector<2x8x32xf32>, vector<2x1x8xf32> -> vector<2x1x8xf32>
    "tpu.trace_stop"() : () -> ()
    %53 = vector.shape_cast %52 : vector<2x1x8xf32> to vector<2x8xf32>
    %cst_28 = arith.constant 5.000000e-01 : f32
    %54 = vector.broadcast %cst_28 : f32 to vector<2x8xf32>
    %55 = arith.cmpf ogt, %18, %54 : vector<2x8xf32>
    %cst_29 = arith.constant -1.000000e+30 : f32
    %56 = vector.broadcast %cst_29 : f32 to vector<2x8xf32>
    %57 = arith.select %55, %56, %53 : vector<2x8xi1>, vector<2x8xf32>
    %cst_30 = arith.constant dense<0xFF800000> : vector<2xf32>
    %58 = vector.multi_reduction <maximumf>, %57, %cst_30 [1] : vector<2x8xf32> to vector<2xf32>
    %59 = vector.shape_cast %58 : vector<2xf32> to vector<2x1xf32>
    %60 = vector.broadcast %59 : vector<2x1xf32> to vector<2x8xf32>
    %61 = arith.subf %57, %60 : vector<2x8xf32>
    %62 = math.exp %61 : vector<2x8xf32>
    %cst_31 = arith.constant dense<0.000000e+00> : vector<2xf32>
    %63 = vector.multi_reduction <add>, %62, %cst_31 [1] : vector<2x8xf32> to vector<2xf32>
    %64 = vector.shape_cast %63 : vector<2xf32> to vector<2x1xf32>
    %65 = tpu.reciprocal %64 {approx = true} : vector<2x1xf32> -> vector<2x1xf32>
    %66 = vector.broadcast %65 : vector<2x1xf32> to vector<2x8xf32>
    %67 = arith.mulf %62, %66 : vector<2x8xf32>
    %68 = vector.broadcast %c0_i32 : i32 to vector<2x8x8xi32>
    %69 = arith.cmpi eq, %21, %68 : vector<2x8x8xi32>
    %70 = vector.shape_cast %67 : vector<2x8xf32> to vector<2x1x8xf32>
    %71 = vector.shape_cast %70 : vector<2x1x8xf32> to vector<2x1x8xf32>
    %72 = vector.broadcast %71 : vector<2x1x8xf32> to vector<2x8x8xf32>
    %73 = arith.select %69, %72, %19 : vector<2x8x8xi1>, vector<2x8x8xf32>
    %74 = vector.broadcast %59 : vector<2x1xf32> to vector<2x8xf32>
    %75 = arith.cmpf oge, %57, %74 : vector<2x8xf32>
    %c8_i32 = arith.constant 8 : i32
    %76 = vector.broadcast %c8_i32 : i32 to vector<2x8xi32>
    %77 = arith.select %75, %20, %76 : vector<2x8xi1>, vector<2x8xi32>
    %cst_32 = arith.constant dense<2147483647> : vector<2xi32>
    %78 = vector.multi_reduction <minsi>, %77, %cst_32 [1] : vector<2x8xi32> to vector<2xi32>
    %79 = vector.shape_cast %78 : vector<2xi32> to vector<2x1xi32>
    %80 = vector.broadcast %79 : vector<2x1xi32> to vector<2x8xi32>
    %81 = arith.cmpi eq, %20, %80 : vector<2x8xi32>
    %82 = arith.extui %81 : vector<2x8xi1> to vector<2x8xi32>
    %83 = arith.sitofp %82 : vector<2x8xi32> to vector<2x8xf32>
    %84 = vector.shape_cast %83 : vector<2x8xf32> to vector<2x1x8xf32>
    "tpu.trace_start"() <{level = 10 : i32, message = "bqp,bpg->bqg"}> : () -> ()
    %cst_33 = arith.constant dense<0.000000e+00> : vector<2x1x128xf32>
    %85 = tpu.matmul %84, %7, %cst_33 {dimension_numbers = #tpu.dot_dimension_numbers<[2], [1], [1], [2], [0, 0, 0, 1, 1, 2], [0], [0]>} : vector<2x1x8xf32>, vector<2x8x128xf32>, vector<2x1x128xf32> -> vector<2x1x128xf32>
    "tpu.trace_stop"() : () -> ()
    %86 = vector.shape_cast %85 : vector<2x1x128xf32> to vector<2x128xf32>
    %87 = arith.maximumf %18, %83 : vector<2x8xf32>
    %c1_i32 = arith.constant 1 : i32
    %cst_34 = arith.constant dense<0.000000e+00> : vector<2x128xf32>
    %88 = tpu.matmul %50, %8, %cst_34 {dimension_numbers = #tpu.dot_dimension_numbers<[1], [0], [0], [1], [0, 0, 1, 1], [], []>} : vector<2x32xf32>, vector<32x128xf32>, vector<2x128xf32> -> vector<2x128xf32>
    %89 = arith.addf %86, %88 : vector<2x128xf32>
    %90 = vector.broadcast %9 : vector<1x128xf32> to vector<2x128xf32>
    %91 = arith.addf %89, %90 : vector<2x128xf32>
    %92 = vector.extract_strided_slice %91 {offsets = [0, 0], sizes = [2, 32], strides = [1, 1]} : vector<2x128xf32> to vector<2x32xf32>
    %93 = arith.negf %92 : vector<2x32xf32>
    %94 = math.exp %93 : vector<2x32xf32>
    %cst_35 = arith.constant 1.000000e+00 : f32
    %95 = vector.broadcast %cst_35 : f32 to vector<2x32xf32>
    %96 = arith.addf %95, %94 : vector<2x32xf32>
    %97 = arith.divf %95, %96 : vector<2x32xf32>
    %98 = vector.extract_strided_slice %91 {offsets = [0, 32], sizes = [2, 32], strides = [1, 1]} : vector<2x128xf32> to vector<2x32xf32>
    %99 = arith.negf %98 : vector<2x32xf32>
    %100 = math.exp %99 : vector<2x32xf32>
    %cst_36 = arith.constant 1.000000e+00 : f32
    %101 = vector.broadcast %cst_36 : f32 to vector<2x32xf32>
    %102 = arith.addf %101, %100 : vector<2x32xf32>
    %103 = arith.divf %101, %102 : vector<2x32xf32>
    %104 = vector.extract_strided_slice %91 {offsets = [0, 64], sizes = [2, 32], strides = [1, 1]} : vector<2x128xf32> to vector<2x32xf32>
    %105 = math.tanh %104 : vector<2x32xf32>
    %106 = vector.extract_strided_slice %91 {offsets = [0, 96], sizes = [2, 32], strides = [1, 1]} : vector<2x128xf32> to vector<2x32xf32>
    %107 = arith.negf %106 : vector<2x32xf32>
    %108 = math.exp %107 : vector<2x32xf32>
    %cst_37 = arith.constant 1.000000e+00 : f32
    %109 = vector.broadcast %cst_37 : f32 to vector<2x32xf32>
    %110 = arith.addf %109, %108 : vector<2x32xf32>
    %111 = arith.divf %109, %110 : vector<2x32xf32>
    %112 = arith.mulf %103, %48 : vector<2x32xf32>
    %113 = arith.mulf %97, %105 : vector<2x32xf32>
    %114 = arith.addf %112, %113 : vector<2x32xf32>
    %115 = math.tanh %114 : vector<2x32xf32>
    %116 = arith.mulf %111, %115 : vector<2x32xf32>
    %117 = vector.shape_cast %116 : vector<2x32xf32> to vector<2x1x32xf32>
    "tpu.trace_start"() <{level = 10 : i32, message = "bqh,bph->bqp"}> : () -> ()
    %cst_38 = arith.constant dense<0.000000e+00> : vector<2x1x8xf32>
    %118 = tpu.matmul %117, %4, %cst_38 {dimension_numbers = #tpu.dot_dimension_numbers<[2], [2], [1], [1], [0, 0, 0, 1, 1, 1], [0], [0]>} : vector<2x1x32xf32>, vector<2x8x32xf32>, vector<2x1x8xf32> -> vector<2x1x8xf32>
    "tpu.trace_stop"() : () -> ()
    %119 = vector.shape_cast %118 : vector<2x1x8xf32> to vector<2x8xf32>
    %cst_39 = arith.constant 5.000000e-01 : f32
    %120 = vector.broadcast %cst_39 : f32 to vector<2x8xf32>
    %121 = arith.cmpf ogt, %87, %120 : vector<2x8xf32>
    %cst_40 = arith.constant -1.000000e+30 : f32
    %122 = vector.broadcast %cst_40 : f32 to vector<2x8xf32>
    %123 = arith.select %121, %122, %119 : vector<2x8xi1>, vector<2x8xf32>
    %cst_41 = arith.constant dense<0xFF800000> : vector<2xf32>
    %124 = vector.multi_reduction <maximumf>, %123, %cst_41 [1] : vector<2x8xf32> to vector<2xf32>
    %125 = vector.shape_cast %124 : vector<2xf32> to vector<2x1xf32>
    %126 = vector.broadcast %125 : vector<2x1xf32> to vector<2x8xf32>
    %127 = arith.subf %123, %126 : vector<2x8xf32>
    %128 = math.exp %127 : vector<2x8xf32>
    %cst_42 = arith.constant dense<0.000000e+00> : vector<2xf32>
    %129 = vector.multi_reduction <add>, %128, %cst_42 [1] : vector<2x8xf32> to vector<2xf32>
    %130 = vector.shape_cast %129 : vector<2xf32> to vector<2x1xf32>
    %131 = tpu.reciprocal %130 {approx = true} : vector<2x1xf32> -> vector<2x1xf32>
    %132 = vector.broadcast %131 : vector<2x1xf32> to vector<2x8xf32>
    %133 = arith.mulf %128, %132 : vector<2x8xf32>
    %134 = vector.broadcast %c1_i32 : i32 to vector<2x8x8xi32>
    %135 = arith.cmpi eq, %21, %134 : vector<2x8x8xi32>
    %136 = vector.shape_cast %133 : vector<2x8xf32> to vector<2x1x8xf32>
    %137 = vector.shape_cast %136 : vector<2x1x8xf32> to vector<2x1x8xf32>
    %138 = vector.broadcast %137 : vector<2x1x8xf32> to vector<2x8x8xf32>
    %139 = arith.select %135, %138, %73 : vector<2x8x8xi1>, vector<2x8x8xf32>
    %140 = vector.broadcast %125 : vector<2x1xf32> to vector<2x8xf32>
    %141 = arith.cmpf oge, %123, %140 : vector<2x8xf32>
    %c8_i32_43 = arith.constant 8 : i32
    %142 = vector.broadcast %c8_i32_43 : i32 to vector<2x8xi32>
    %143 = arith.select %141, %20, %142 : vector<2x8xi1>, vector<2x8xi32>
    %cst_44 = arith.constant dense<2147483647> : vector<2xi32>
    %144 = vector.multi_reduction <minsi>, %143, %cst_44 [1] : vector<2x8xi32> to vector<2xi32>
    %145 = vector.shape_cast %144 : vector<2xi32> to vector<2x1xi32>
    %146 = vector.broadcast %145 : vector<2x1xi32> to vector<2x8xi32>
    %147 = arith.cmpi eq, %20, %146 : vector<2x8xi32>
    %148 = arith.extui %147 : vector<2x8xi1> to vector<2x8xi32>
    %149 = arith.sitofp %148 : vector<2x8xi32> to vector<2x8xf32>
    %150 = vector.shape_cast %149 : vector<2x8xf32> to vector<2x1x8xf32>
    "tpu.trace_start"() <{level = 10 : i32, message = "bqp,bpg->bqg"}> : () -> ()
    %cst_45 = arith.constant dense<0.000000e+00> : vector<2x1x128xf32>
    %151 = tpu.matmul %150, %7, %cst_45 {dimension_numbers = #tpu.dot_dimension_numbers<[2], [1], [1], [2], [0, 0, 0, 1, 1, 2], [0], [0]>} : vector<2x1x8xf32>, vector<2x8x128xf32>, vector<2x1x128xf32> -> vector<2x1x128xf32>
    "tpu.trace_stop"() : () -> ()
    %152 = vector.shape_cast %151 : vector<2x1x128xf32> to vector<2x128xf32>
    %153 = arith.maximumf %87, %149 : vector<2x8xf32>
    %c2_i32 = arith.constant 2 : i32
    %cst_46 = arith.constant dense<0.000000e+00> : vector<2x128xf32>
    %154 = tpu.matmul %116, %8, %cst_46 {dimension_numbers = #tpu.dot_dimension_numbers<[1], [0], [0], [1], [0, 0, 1, 1], [], []>} : vector<2x32xf32>, vector<32x128xf32>, vector<2x128xf32> -> vector<2x128xf32>
    %155 = arith.addf %152, %154 : vector<2x128xf32>
    %156 = vector.broadcast %9 : vector<1x128xf32> to vector<2x128xf32>
    %157 = arith.addf %155, %156 : vector<2x128xf32>
    %158 = vector.extract_strided_slice %157 {offsets = [0, 0], sizes = [2, 32], strides = [1, 1]} : vector<2x128xf32> to vector<2x32xf32>
    %159 = arith.negf %158 : vector<2x32xf32>
    %160 = math.exp %159 : vector<2x32xf32>
    %cst_47 = arith.constant 1.000000e+00 : f32
    %161 = vector.broadcast %cst_47 : f32 to vector<2x32xf32>
    %162 = arith.addf %161, %160 : vector<2x32xf32>
    %163 = arith.divf %161, %162 : vector<2x32xf32>
    %164 = vector.extract_strided_slice %157 {offsets = [0, 32], sizes = [2, 32], strides = [1, 1]} : vector<2x128xf32> to vector<2x32xf32>
    %165 = arith.negf %164 : vector<2x32xf32>
    %166 = math.exp %165 : vector<2x32xf32>
    %cst_48 = arith.constant 1.000000e+00 : f32
    %167 = vector.broadcast %cst_48 : f32 to vector<2x32xf32>
    %168 = arith.addf %167, %166 : vector<2x32xf32>
    %169 = arith.divf %167, %168 : vector<2x32xf32>
    %170 = vector.extract_strided_slice %157 {offsets = [0, 64], sizes = [2, 32], strides = [1, 1]} : vector<2x128xf32> to vector<2x32xf32>
    %171 = math.tanh %170 : vector<2x32xf32>
    %172 = vector.extract_strided_slice %157 {offsets = [0, 96], sizes = [2, 32], strides = [1, 1]} : vector<2x128xf32> to vector<2x32xf32>
    %173 = arith.negf %172 : vector<2x32xf32>
    %174 = math.exp %173 : vector<2x32xf32>
    %cst_49 = arith.constant 1.000000e+00 : f32
    %175 = vector.broadcast %cst_49 : f32 to vector<2x32xf32>
    %176 = arith.addf %175, %174 : vector<2x32xf32>
    %177 = arith.divf %175, %176 : vector<2x32xf32>
    %178 = arith.mulf %169, %114 : vector<2x32xf32>
    %179 = arith.mulf %163, %171 : vector<2x32xf32>
    %180 = arith.addf %178, %179 : vector<2x32xf32>
    %181 = math.tanh %180 : vector<2x32xf32>
    %182 = arith.mulf %177, %181 : vector<2x32xf32>
    %183 = vector.shape_cast %182 : vector<2x32xf32> to vector<2x1x32xf32>
    "tpu.trace_start"() <{level = 10 : i32, message = "bqh,bph->bqp"}> : () -> ()
    %cst_50 = arith.constant dense<0.000000e+00> : vector<2x1x8xf32>
    %184 = tpu.matmul %183, %4, %cst_50 {dimension_numbers = #tpu.dot_dimension_numbers<[2], [2], [1], [1], [0, 0, 0, 1, 1, 1], [0], [0]>} : vector<2x1x32xf32>, vector<2x8x32xf32>, vector<2x1x8xf32> -> vector<2x1x8xf32>
    "tpu.trace_stop"() : () -> ()
    %185 = vector.shape_cast %184 : vector<2x1x8xf32> to vector<2x8xf32>
    %cst_51 = arith.constant 5.000000e-01 : f32
    %186 = vector.broadcast %cst_51 : f32 to vector<2x8xf32>
    %187 = arith.cmpf ogt, %153, %186 : vector<2x8xf32>
    %cst_52 = arith.constant -1.000000e+30 : f32
    %188 = vector.broadcast %cst_52 : f32 to vector<2x8xf32>
    %189 = arith.select %187, %188, %185 : vector<2x8xi1>, vector<2x8xf32>
    %cst_53 = arith.constant dense<0xFF800000> : vector<2xf32>
    %190 = vector.multi_reduction <maximumf>, %189, %cst_53 [1] : vector<2x8xf32> to vector<2xf32>
    %191 = vector.shape_cast %190 : vector<2xf32> to vector<2x1xf32>
    %192 = vector.broadcast %191 : vector<2x1xf32> to vector<2x8xf32>
    %193 = arith.subf %189, %192 : vector<2x8xf32>
    %194 = math.exp %193 : vector<2x8xf32>
    %cst_54 = arith.constant dense<0.000000e+00> : vector<2xf32>
    %195 = vector.multi_reduction <add>, %194, %cst_54 [1] : vector<2x8xf32> to vector<2xf32>
    %196 = vector.shape_cast %195 : vector<2xf32> to vector<2x1xf32>
    %197 = tpu.reciprocal %196 {approx = true} : vector<2x1xf32> -> vector<2x1xf32>
    %198 = vector.broadcast %197 : vector<2x1xf32> to vector<2x8xf32>
    %199 = arith.mulf %194, %198 : vector<2x8xf32>
    %200 = vector.broadcast %c2_i32 : i32 to vector<2x8x8xi32>
    %201 = arith.cmpi eq, %21, %200 : vector<2x8x8xi32>
    %202 = vector.shape_cast %199 : vector<2x8xf32> to vector<2x1x8xf32>
    %203 = vector.shape_cast %202 : vector<2x1x8xf32> to vector<2x1x8xf32>
    %204 = vector.broadcast %203 : vector<2x1x8xf32> to vector<2x8x8xf32>
    %205 = arith.select %201, %204, %139 : vector<2x8x8xi1>, vector<2x8x8xf32>
    %206 = vector.broadcast %191 : vector<2x1xf32> to vector<2x8xf32>
    %207 = arith.cmpf oge, %189, %206 : vector<2x8xf32>
    %c8_i32_55 = arith.constant 8 : i32
    %208 = vector.broadcast %c8_i32_55 : i32 to vector<2x8xi32>
    %209 = arith.select %207, %20, %208 : vector<2x8xi1>, vector<2x8xi32>
    %cst_56 = arith.constant dense<2147483647> : vector<2xi32>
    %210 = vector.multi_reduction <minsi>, %209, %cst_56 [1] : vector<2x8xi32> to vector<2xi32>
    %211 = vector.shape_cast %210 : vector<2xi32> to vector<2x1xi32>
    %212 = vector.broadcast %211 : vector<2x1xi32> to vector<2x8xi32>
    %213 = arith.cmpi eq, %20, %212 : vector<2x8xi32>
    %214 = arith.extui %213 : vector<2x8xi1> to vector<2x8xi32>
    %215 = arith.sitofp %214 : vector<2x8xi32> to vector<2x8xf32>
    %216 = vector.shape_cast %215 : vector<2x8xf32> to vector<2x1x8xf32>
    "tpu.trace_start"() <{level = 10 : i32, message = "bqp,bpg->bqg"}> : () -> ()
    %cst_57 = arith.constant dense<0.000000e+00> : vector<2x1x128xf32>
    %217 = tpu.matmul %216, %7, %cst_57 {dimension_numbers = #tpu.dot_dimension_numbers<[2], [1], [1], [2], [0, 0, 0, 1, 1, 2], [0], [0]>} : vector<2x1x8xf32>, vector<2x8x128xf32>, vector<2x1x128xf32> -> vector<2x1x128xf32>
    "tpu.trace_stop"() : () -> ()
    %218 = vector.shape_cast %217 : vector<2x1x128xf32> to vector<2x128xf32>
    %219 = arith.maximumf %153, %215 : vector<2x8xf32>
    %c3_i32 = arith.constant 3 : i32
    %cst_58 = arith.constant dense<0.000000e+00> : vector<2x128xf32>
    %220 = tpu.matmul %182, %8, %cst_58 {dimension_numbers = #tpu.dot_dimension_numbers<[1], [0], [0], [1], [0, 0, 1, 1], [], []>} : vector<2x32xf32>, vector<32x128xf32>, vector<2x128xf32> -> vector<2x128xf32>
    %221 = arith.addf %218, %220 : vector<2x128xf32>
    %222 = vector.broadcast %9 : vector<1x128xf32> to vector<2x128xf32>
    %223 = arith.addf %221, %222 : vector<2x128xf32>
    %224 = vector.extract_strided_slice %223 {offsets = [0, 0], sizes = [2, 32], strides = [1, 1]} : vector<2x128xf32> to vector<2x32xf32>
    %225 = arith.negf %224 : vector<2x32xf32>
    %226 = math.exp %225 : vector<2x32xf32>
    %cst_59 = arith.constant 1.000000e+00 : f32
    %227 = vector.broadcast %cst_59 : f32 to vector<2x32xf32>
    %228 = arith.addf %227, %226 : vector<2x32xf32>
    %229 = arith.divf %227, %228 : vector<2x32xf32>
    %230 = vector.extract_strided_slice %223 {offsets = [0, 32], sizes = [2, 32], strides = [1, 1]} : vector<2x128xf32> to vector<2x32xf32>
    %231 = arith.negf %230 : vector<2x32xf32>
    %232 = math.exp %231 : vector<2x32xf32>
    %cst_60 = arith.constant 1.000000e+00 : f32
    %233 = vector.broadcast %cst_60 : f32 to vector<2x32xf32>
    %234 = arith.addf %233, %232 : vector<2x32xf32>
    %235 = arith.divf %233, %234 : vector<2x32xf32>
    %236 = vector.extract_strided_slice %223 {offsets = [0, 64], sizes = [2, 32], strides = [1, 1]} : vector<2x128xf32> to vector<2x32xf32>
    %237 = math.tanh %236 : vector<2x32xf32>
    %238 = vector.extract_strided_slice %223 {offsets = [0, 96], sizes = [2, 32], strides = [1, 1]} : vector<2x128xf32> to vector<2x32xf32>
    %239 = arith.negf %238 : vector<2x32xf32>
    %240 = math.exp %239 : vector<2x32xf32>
    %cst_61 = arith.constant 1.000000e+00 : f32
    %241 = vector.broadcast %cst_61 : f32 to vector<2x32xf32>
    %242 = arith.addf %241, %240 : vector<2x32xf32>
    %243 = arith.divf %241, %242 : vector<2x32xf32>
    %244 = arith.mulf %235, %180 : vector<2x32xf32>
    %245 = arith.mulf %229, %237 : vector<2x32xf32>
    %246 = arith.addf %244, %245 : vector<2x32xf32>
    %247 = math.tanh %246 : vector<2x32xf32>
    %248 = arith.mulf %243, %247 : vector<2x32xf32>
    %249 = vector.shape_cast %248 : vector<2x32xf32> to vector<2x1x32xf32>
    "tpu.trace_start"() <{level = 10 : i32, message = "bqh,bph->bqp"}> : () -> ()
    %cst_62 = arith.constant dense<0.000000e+00> : vector<2x1x8xf32>
    %250 = tpu.matmul %249, %4, %cst_62 {dimension_numbers = #tpu.dot_dimension_numbers<[2], [2], [1], [1], [0, 0, 0, 1, 1, 1], [0], [0]>} : vector<2x1x32xf32>, vector<2x8x32xf32>, vector<2x1x8xf32> -> vector<2x1x8xf32>
    "tpu.trace_stop"() : () -> ()
    %251 = vector.shape_cast %250 : vector<2x1x8xf32> to vector<2x8xf32>
    %cst_63 = arith.constant 5.000000e-01 : f32
    %252 = vector.broadcast %cst_63 : f32 to vector<2x8xf32>
    %253 = arith.cmpf ogt, %219, %252 : vector<2x8xf32>
    %cst_64 = arith.constant -1.000000e+30 : f32
    %254 = vector.broadcast %cst_64 : f32 to vector<2x8xf32>
    %255 = arith.select %253, %254, %251 : vector<2x8xi1>, vector<2x8xf32>
    %cst_65 = arith.constant dense<0xFF800000> : vector<2xf32>
    %256 = vector.multi_reduction <maximumf>, %255, %cst_65 [1] : vector<2x8xf32> to vector<2xf32>
    %257 = vector.shape_cast %256 : vector<2xf32> to vector<2x1xf32>
    %258 = vector.broadcast %257 : vector<2x1xf32> to vector<2x8xf32>
    %259 = arith.subf %255, %258 : vector<2x8xf32>
    %260 = math.exp %259 : vector<2x8xf32>
    %cst_66 = arith.constant dense<0.000000e+00> : vector<2xf32>
    %261 = vector.multi_reduction <add>, %260, %cst_66 [1] : vector<2x8xf32> to vector<2xf32>
    %262 = vector.shape_cast %261 : vector<2xf32> to vector<2x1xf32>
    %263 = tpu.reciprocal %262 {approx = true} : vector<2x1xf32> -> vector<2x1xf32>
    %264 = vector.broadcast %263 : vector<2x1xf32> to vector<2x8xf32>
    %265 = arith.mulf %260, %264 : vector<2x8xf32>
    %266 = vector.broadcast %c3_i32 : i32 to vector<2x8x8xi32>
    %267 = arith.cmpi eq, %21, %266 : vector<2x8x8xi32>
    %268 = vector.shape_cast %265 : vector<2x8xf32> to vector<2x1x8xf32>
    %269 = vector.shape_cast %268 : vector<2x1x8xf32> to vector<2x1x8xf32>
    %270 = vector.broadcast %269 : vector<2x1x8xf32> to vector<2x8x8xf32>
    %271 = arith.select %267, %270, %205 : vector<2x8x8xi1>, vector<2x8x8xf32>
    %272 = vector.broadcast %257 : vector<2x1xf32> to vector<2x8xf32>
    %273 = arith.cmpf oge, %255, %272 : vector<2x8xf32>
    %c8_i32_67 = arith.constant 8 : i32
    %274 = vector.broadcast %c8_i32_67 : i32 to vector<2x8xi32>
    %275 = arith.select %273, %20, %274 : vector<2x8xi1>, vector<2x8xi32>
    %cst_68 = arith.constant dense<2147483647> : vector<2xi32>
    %276 = vector.multi_reduction <minsi>, %275, %cst_68 [1] : vector<2x8xi32> to vector<2xi32>
    %277 = vector.shape_cast %276 : vector<2xi32> to vector<2x1xi32>
    %278 = vector.broadcast %277 : vector<2x1xi32> to vector<2x8xi32>
    %279 = arith.cmpi eq, %20, %278 : vector<2x8xi32>
    %280 = arith.extui %279 : vector<2x8xi1> to vector<2x8xi32>
    %281 = arith.sitofp %280 : vector<2x8xi32> to vector<2x8xf32>
    %282 = vector.shape_cast %281 : vector<2x8xf32> to vector<2x1x8xf32>
    "tpu.trace_start"() <{level = 10 : i32, message = "bqp,bpg->bqg"}> : () -> ()
    %cst_69 = arith.constant dense<0.000000e+00> : vector<2x1x128xf32>
    %283 = tpu.matmul %282, %7, %cst_69 {dimension_numbers = #tpu.dot_dimension_numbers<[2], [1], [1], [2], [0, 0, 0, 1, 1, 2], [0], [0]>} : vector<2x1x8xf32>, vector<2x8x128xf32>, vector<2x1x128xf32> -> vector<2x1x128xf32>
    "tpu.trace_stop"() : () -> ()
    %284 = vector.shape_cast %283 : vector<2x1x128xf32> to vector<2x128xf32>
    %285 = arith.maximumf %219, %281 : vector<2x8xf32>
    %c4_i32 = arith.constant 4 : i32
    %cst_70 = arith.constant dense<0.000000e+00> : vector<2x128xf32>
    %286 = tpu.matmul %248, %8, %cst_70 {dimension_numbers = #tpu.dot_dimension_numbers<[1], [0], [0], [1], [0, 0, 1, 1], [], []>} : vector<2x32xf32>, vector<32x128xf32>, vector<2x128xf32> -> vector<2x128xf32>
    %287 = arith.addf %284, %286 : vector<2x128xf32>
    %288 = vector.broadcast %9 : vector<1x128xf32> to vector<2x128xf32>
    %289 = arith.addf %287, %288 : vector<2x128xf32>
    %290 = vector.extract_strided_slice %289 {offsets = [0, 0], sizes = [2, 32], strides = [1, 1]} : vector<2x128xf32> to vector<2x32xf32>
    %291 = arith.negf %290 : vector<2x32xf32>
    %292 = math.exp %291 : vector<2x32xf32>
    %cst_71 = arith.constant 1.000000e+00 : f32
    %293 = vector.broadcast %cst_71 : f32 to vector<2x32xf32>
    %294 = arith.addf %293, %292 : vector<2x32xf32>
    %295 = arith.divf %293, %294 : vector<2x32xf32>
    %296 = vector.extract_strided_slice %289 {offsets = [0, 32], sizes = [2, 32], strides = [1, 1]} : vector<2x128xf32> to vector<2x32xf32>
    %297 = arith.negf %296 : vector<2x32xf32>
    %298 = math.exp %297 : vector<2x32xf32>
    %cst_72 = arith.constant 1.000000e+00 : f32
    %299 = vector.broadcast %cst_72 : f32 to vector<2x32xf32>
    %300 = arith.addf %299, %298 : vector<2x32xf32>
    %301 = arith.divf %299, %300 : vector<2x32xf32>
    %302 = vector.extract_strided_slice %289 {offsets = [0, 64], sizes = [2, 32], strides = [1, 1]} : vector<2x128xf32> to vector<2x32xf32>
    %303 = math.tanh %302 : vector<2x32xf32>
    %304 = vector.extract_strided_slice %289 {offsets = [0, 96], sizes = [2, 32], strides = [1, 1]} : vector<2x128xf32> to vector<2x32xf32>
    %305 = arith.negf %304 : vector<2x32xf32>
    %306 = math.exp %305 : vector<2x32xf32>
    %cst_73 = arith.constant 1.000000e+00 : f32
    %307 = vector.broadcast %cst_73 : f32 to vector<2x32xf32>
    %308 = arith.addf %307, %306 : vector<2x32xf32>
    %309 = arith.divf %307, %308 : vector<2x32xf32>
    %310 = arith.mulf %301, %246 : vector<2x32xf32>
    %311 = arith.mulf %295, %303 : vector<2x32xf32>
    %312 = arith.addf %310, %311 : vector<2x32xf32>
    %313 = math.tanh %312 : vector<2x32xf32>
    %314 = arith.mulf %309, %313 : vector<2x32xf32>
    %315 = vector.shape_cast %314 : vector<2x32xf32> to vector<2x1x32xf32>
    "tpu.trace_start"() <{level = 10 : i32, message = "bqh,bph->bqp"}> : () -> ()
    %cst_74 = arith.constant dense<0.000000e+00> : vector<2x1x8xf32>
    %316 = tpu.matmul %315, %4, %cst_74 {dimension_numbers = #tpu.dot_dimension_numbers<[2], [2], [1], [1], [0, 0, 0, 1, 1, 1], [0], [0]>} : vector<2x1x32xf32>, vector<2x8x32xf32>, vector<2x1x8xf32> -> vector<2x1x8xf32>
    "tpu.trace_stop"() : () -> ()
    %317 = vector.shape_cast %316 : vector<2x1x8xf32> to vector<2x8xf32>
    %cst_75 = arith.constant 5.000000e-01 : f32
    %318 = vector.broadcast %cst_75 : f32 to vector<2x8xf32>
    %319 = arith.cmpf ogt, %285, %318 : vector<2x8xf32>
    %cst_76 = arith.constant -1.000000e+30 : f32
    %320 = vector.broadcast %cst_76 : f32 to vector<2x8xf32>
    %321 = arith.select %319, %320, %317 : vector<2x8xi1>, vector<2x8xf32>
    %cst_77 = arith.constant dense<0xFF800000> : vector<2xf32>
    %322 = vector.multi_reduction <maximumf>, %321, %cst_77 [1] : vector<2x8xf32> to vector<2xf32>
    %323 = vector.shape_cast %322 : vector<2xf32> to vector<2x1xf32>
    %324 = vector.broadcast %323 : vector<2x1xf32> to vector<2x8xf32>
    %325 = arith.subf %321, %324 : vector<2x8xf32>
    %326 = math.exp %325 : vector<2x8xf32>
    %cst_78 = arith.constant dense<0.000000e+00> : vector<2xf32>
    %327 = vector.multi_reduction <add>, %326, %cst_78 [1] : vector<2x8xf32> to vector<2xf32>
    %328 = vector.shape_cast %327 : vector<2xf32> to vector<2x1xf32>
    %329 = tpu.reciprocal %328 {approx = true} : vector<2x1xf32> -> vector<2x1xf32>
    %330 = vector.broadcast %329 : vector<2x1xf32> to vector<2x8xf32>
    %331 = arith.mulf %326, %330 : vector<2x8xf32>
    %332 = vector.broadcast %c4_i32 : i32 to vector<2x8x8xi32>
    %333 = arith.cmpi eq, %21, %332 : vector<2x8x8xi32>
    %334 = vector.shape_cast %331 : vector<2x8xf32> to vector<2x1x8xf32>
    %335 = vector.shape_cast %334 : vector<2x1x8xf32> to vector<2x1x8xf32>
    %336 = vector.broadcast %335 : vector<2x1x8xf32> to vector<2x8x8xf32>
    %337 = arith.select %333, %336, %271 : vector<2x8x8xi1>, vector<2x8x8xf32>
    %338 = vector.broadcast %323 : vector<2x1xf32> to vector<2x8xf32>
    %339 = arith.cmpf oge, %321, %338 : vector<2x8xf32>
    %c8_i32_79 = arith.constant 8 : i32
    %340 = vector.broadcast %c8_i32_79 : i32 to vector<2x8xi32>
    %341 = arith.select %339, %20, %340 : vector<2x8xi1>, vector<2x8xi32>
    %cst_80 = arith.constant dense<2147483647> : vector<2xi32>
    %342 = vector.multi_reduction <minsi>, %341, %cst_80 [1] : vector<2x8xi32> to vector<2xi32>
    %343 = vector.shape_cast %342 : vector<2xi32> to vector<2x1xi32>
    %344 = vector.broadcast %343 : vector<2x1xi32> to vector<2x8xi32>
    %345 = arith.cmpi eq, %20, %344 : vector<2x8xi32>
    %346 = arith.extui %345 : vector<2x8xi1> to vector<2x8xi32>
    %347 = arith.sitofp %346 : vector<2x8xi32> to vector<2x8xf32>
    %348 = vector.shape_cast %347 : vector<2x8xf32> to vector<2x1x8xf32>
    "tpu.trace_start"() <{level = 10 : i32, message = "bqp,bpg->bqg"}> : () -> ()
    %cst_81 = arith.constant dense<0.000000e+00> : vector<2x1x128xf32>
    %349 = tpu.matmul %348, %7, %cst_81 {dimension_numbers = #tpu.dot_dimension_numbers<[2], [1], [1], [2], [0, 0, 0, 1, 1, 2], [0], [0]>} : vector<2x1x8xf32>, vector<2x8x128xf32>, vector<2x1x128xf32> -> vector<2x1x128xf32>
    "tpu.trace_stop"() : () -> ()
    %350 = vector.shape_cast %349 : vector<2x1x128xf32> to vector<2x128xf32>
    %351 = arith.maximumf %285, %347 : vector<2x8xf32>
    %c5_i32 = arith.constant 5 : i32
    %cst_82 = arith.constant dense<0.000000e+00> : vector<2x128xf32>
    %352 = tpu.matmul %314, %8, %cst_82 {dimension_numbers = #tpu.dot_dimension_numbers<[1], [0], [0], [1], [0, 0, 1, 1], [], []>} : vector<2x32xf32>, vector<32x128xf32>, vector<2x128xf32> -> vector<2x128xf32>
    %353 = arith.addf %350, %352 : vector<2x128xf32>
    %354 = vector.broadcast %9 : vector<1x128xf32> to vector<2x128xf32>
    %355 = arith.addf %353, %354 : vector<2x128xf32>
    %356 = vector.extract_strided_slice %355 {offsets = [0, 0], sizes = [2, 32], strides = [1, 1]} : vector<2x128xf32> to vector<2x32xf32>
    %357 = arith.negf %356 : vector<2x32xf32>
    %358 = math.exp %357 : vector<2x32xf32>
    %cst_83 = arith.constant 1.000000e+00 : f32
    %359 = vector.broadcast %cst_83 : f32 to vector<2x32xf32>
    %360 = arith.addf %359, %358 : vector<2x32xf32>
    %361 = arith.divf %359, %360 : vector<2x32xf32>
    %362 = vector.extract_strided_slice %355 {offsets = [0, 32], sizes = [2, 32], strides = [1, 1]} : vector<2x128xf32> to vector<2x32xf32>
    %363 = arith.negf %362 : vector<2x32xf32>
    %364 = math.exp %363 : vector<2x32xf32>
    %cst_84 = arith.constant 1.000000e+00 : f32
    %365 = vector.broadcast %cst_84 : f32 to vector<2x32xf32>
    %366 = arith.addf %365, %364 : vector<2x32xf32>
    %367 = arith.divf %365, %366 : vector<2x32xf32>
    %368 = vector.extract_strided_slice %355 {offsets = [0, 64], sizes = [2, 32], strides = [1, 1]} : vector<2x128xf32> to vector<2x32xf32>
    %369 = math.tanh %368 : vector<2x32xf32>
    %370 = vector.extract_strided_slice %355 {offsets = [0, 96], sizes = [2, 32], strides = [1, 1]} : vector<2x128xf32> to vector<2x32xf32>
    %371 = arith.negf %370 : vector<2x32xf32>
    %372 = math.exp %371 : vector<2x32xf32>
    %cst_85 = arith.constant 1.000000e+00 : f32
    %373 = vector.broadcast %cst_85 : f32 to vector<2x32xf32>
    %374 = arith.addf %373, %372 : vector<2x32xf32>
    %375 = arith.divf %373, %374 : vector<2x32xf32>
    %376 = arith.mulf %367, %312 : vector<2x32xf32>
    %377 = arith.mulf %361, %369 : vector<2x32xf32>
    %378 = arith.addf %376, %377 : vector<2x32xf32>
    %379 = math.tanh %378 : vector<2x32xf32>
    %380 = arith.mulf %375, %379 : vector<2x32xf32>
    %381 = vector.shape_cast %380 : vector<2x32xf32> to vector<2x1x32xf32>
    "tpu.trace_start"() <{level = 10 : i32, message = "bqh,bph->bqp"}> : () -> ()
    %cst_86 = arith.constant dense<0.000000e+00> : vector<2x1x8xf32>
    %382 = tpu.matmul %381, %4, %cst_86 {dimension_numbers = #tpu.dot_dimension_numbers<[2], [2], [1], [1], [0, 0, 0, 1, 1, 1], [0], [0]>} : vector<2x1x32xf32>, vector<2x8x32xf32>, vector<2x1x8xf32> -> vector<2x1x8xf32>
    "tpu.trace_stop"() : () -> ()
    %383 = vector.shape_cast %382 : vector<2x1x8xf32> to vector<2x8xf32>
    %cst_87 = arith.constant 5.000000e-01 : f32
    %384 = vector.broadcast %cst_87 : f32 to vector<2x8xf32>
    %385 = arith.cmpf ogt, %351, %384 : vector<2x8xf32>
    %cst_88 = arith.constant -1.000000e+30 : f32
    %386 = vector.broadcast %cst_88 : f32 to vector<2x8xf32>
    %387 = arith.select %385, %386, %383 : vector<2x8xi1>, vector<2x8xf32>
    %cst_89 = arith.constant dense<0xFF800000> : vector<2xf32>
    %388 = vector.multi_reduction <maximumf>, %387, %cst_89 [1] : vector<2x8xf32> to vector<2xf32>
    %389 = vector.shape_cast %388 : vector<2xf32> to vector<2x1xf32>
    %390 = vector.broadcast %389 : vector<2x1xf32> to vector<2x8xf32>
    %391 = arith.subf %387, %390 : vector<2x8xf32>
    %392 = math.exp %391 : vector<2x8xf32>
    %cst_90 = arith.constant dense<0.000000e+00> : vector<2xf32>
    %393 = vector.multi_reduction <add>, %392, %cst_90 [1] : vector<2x8xf32> to vector<2xf32>
    %394 = vector.shape_cast %393 : vector<2xf32> to vector<2x1xf32>
    %395 = tpu.reciprocal %394 {approx = true} : vector<2x1xf32> -> vector<2x1xf32>
    %396 = vector.broadcast %395 : vector<2x1xf32> to vector<2x8xf32>
    %397 = arith.mulf %392, %396 : vector<2x8xf32>
    %398 = vector.broadcast %c5_i32 : i32 to vector<2x8x8xi32>
    %399 = arith.cmpi eq, %21, %398 : vector<2x8x8xi32>
    %400 = vector.shape_cast %397 : vector<2x8xf32> to vector<2x1x8xf32>
    %401 = vector.shape_cast %400 : vector<2x1x8xf32> to vector<2x1x8xf32>
    %402 = vector.broadcast %401 : vector<2x1x8xf32> to vector<2x8x8xf32>
    %403 = arith.select %399, %402, %337 : vector<2x8x8xi1>, vector<2x8x8xf32>
    %404 = vector.broadcast %389 : vector<2x1xf32> to vector<2x8xf32>
    %405 = arith.cmpf oge, %387, %404 : vector<2x8xf32>
    %c8_i32_91 = arith.constant 8 : i32
    %406 = vector.broadcast %c8_i32_91 : i32 to vector<2x8xi32>
    %407 = arith.select %405, %20, %406 : vector<2x8xi1>, vector<2x8xi32>
    %cst_92 = arith.constant dense<2147483647> : vector<2xi32>
    %408 = vector.multi_reduction <minsi>, %407, %cst_92 [1] : vector<2x8xi32> to vector<2xi32>
    %409 = vector.shape_cast %408 : vector<2xi32> to vector<2x1xi32>
    %410 = vector.broadcast %409 : vector<2x1xi32> to vector<2x8xi32>
    %411 = arith.cmpi eq, %20, %410 : vector<2x8xi32>
    %412 = arith.extui %411 : vector<2x8xi1> to vector<2x8xi32>
    %413 = arith.sitofp %412 : vector<2x8xi32> to vector<2x8xf32>
    %414 = vector.shape_cast %413 : vector<2x8xf32> to vector<2x1x8xf32>
    "tpu.trace_start"() <{level = 10 : i32, message = "bqp,bpg->bqg"}> : () -> ()
    %cst_93 = arith.constant dense<0.000000e+00> : vector<2x1x128xf32>
    %415 = tpu.matmul %414, %7, %cst_93 {dimension_numbers = #tpu.dot_dimension_numbers<[2], [1], [1], [2], [0, 0, 0, 1, 1, 2], [0], [0]>} : vector<2x1x8xf32>, vector<2x8x128xf32>, vector<2x1x128xf32> -> vector<2x1x128xf32>
    "tpu.trace_stop"() : () -> ()
    %416 = vector.shape_cast %415 : vector<2x1x128xf32> to vector<2x128xf32>
    %417 = arith.maximumf %351, %413 : vector<2x8xf32>
    %c6_i32 = arith.constant 6 : i32
    %cst_94 = arith.constant dense<0.000000e+00> : vector<2x128xf32>
    %418 = tpu.matmul %380, %8, %cst_94 {dimension_numbers = #tpu.dot_dimension_numbers<[1], [0], [0], [1], [0, 0, 1, 1], [], []>} : vector<2x32xf32>, vector<32x128xf32>, vector<2x128xf32> -> vector<2x128xf32>
    %419 = arith.addf %416, %418 : vector<2x128xf32>
    %420 = vector.broadcast %9 : vector<1x128xf32> to vector<2x128xf32>
    %421 = arith.addf %419, %420 : vector<2x128xf32>
    %422 = vector.extract_strided_slice %421 {offsets = [0, 0], sizes = [2, 32], strides = [1, 1]} : vector<2x128xf32> to vector<2x32xf32>
    %423 = arith.negf %422 : vector<2x32xf32>
    %424 = math.exp %423 : vector<2x32xf32>
    %cst_95 = arith.constant 1.000000e+00 : f32
    %425 = vector.broadcast %cst_95 : f32 to vector<2x32xf32>
    %426 = arith.addf %425, %424 : vector<2x32xf32>
    %427 = arith.divf %425, %426 : vector<2x32xf32>
    %428 = vector.extract_strided_slice %421 {offsets = [0, 32], sizes = [2, 32], strides = [1, 1]} : vector<2x128xf32> to vector<2x32xf32>
    %429 = arith.negf %428 : vector<2x32xf32>
    %430 = math.exp %429 : vector<2x32xf32>
    %cst_96 = arith.constant 1.000000e+00 : f32
    %431 = vector.broadcast %cst_96 : f32 to vector<2x32xf32>
    %432 = arith.addf %431, %430 : vector<2x32xf32>
    %433 = arith.divf %431, %432 : vector<2x32xf32>
    %434 = vector.extract_strided_slice %421 {offsets = [0, 64], sizes = [2, 32], strides = [1, 1]} : vector<2x128xf32> to vector<2x32xf32>
    %435 = math.tanh %434 : vector<2x32xf32>
    %436 = vector.extract_strided_slice %421 {offsets = [0, 96], sizes = [2, 32], strides = [1, 1]} : vector<2x128xf32> to vector<2x32xf32>
    %437 = arith.negf %436 : vector<2x32xf32>
    %438 = math.exp %437 : vector<2x32xf32>
    %cst_97 = arith.constant 1.000000e+00 : f32
    %439 = vector.broadcast %cst_97 : f32 to vector<2x32xf32>
    %440 = arith.addf %439, %438 : vector<2x32xf32>
    %441 = arith.divf %439, %440 : vector<2x32xf32>
    %442 = arith.mulf %433, %378 : vector<2x32xf32>
    %443 = arith.mulf %427, %435 : vector<2x32xf32>
    %444 = arith.addf %442, %443 : vector<2x32xf32>
    %445 = math.tanh %444 : vector<2x32xf32>
    %446 = arith.mulf %441, %445 : vector<2x32xf32>
    %447 = vector.shape_cast %446 : vector<2x32xf32> to vector<2x1x32xf32>
    "tpu.trace_start"() <{level = 10 : i32, message = "bqh,bph->bqp"}> : () -> ()
    %cst_98 = arith.constant dense<0.000000e+00> : vector<2x1x8xf32>
    %448 = tpu.matmul %447, %4, %cst_98 {dimension_numbers = #tpu.dot_dimension_numbers<[2], [2], [1], [1], [0, 0, 0, 1, 1, 1], [0], [0]>} : vector<2x1x32xf32>, vector<2x8x32xf32>, vector<2x1x8xf32> -> vector<2x1x8xf32>
    "tpu.trace_stop"() : () -> ()
    %449 = vector.shape_cast %448 : vector<2x1x8xf32> to vector<2x8xf32>
    %cst_99 = arith.constant 5.000000e-01 : f32
    %450 = vector.broadcast %cst_99 : f32 to vector<2x8xf32>
    %451 = arith.cmpf ogt, %417, %450 : vector<2x8xf32>
    %cst_100 = arith.constant -1.000000e+30 : f32
    %452 = vector.broadcast %cst_100 : f32 to vector<2x8xf32>
    %453 = arith.select %451, %452, %449 : vector<2x8xi1>, vector<2x8xf32>
    %cst_101 = arith.constant dense<0xFF800000> : vector<2xf32>
    %454 = vector.multi_reduction <maximumf>, %453, %cst_101 [1] : vector<2x8xf32> to vector<2xf32>
    %455 = vector.shape_cast %454 : vector<2xf32> to vector<2x1xf32>
    %456 = vector.broadcast %455 : vector<2x1xf32> to vector<2x8xf32>
    %457 = arith.subf %453, %456 : vector<2x8xf32>
    %458 = math.exp %457 : vector<2x8xf32>
    %cst_102 = arith.constant dense<0.000000e+00> : vector<2xf32>
    %459 = vector.multi_reduction <add>, %458, %cst_102 [1] : vector<2x8xf32> to vector<2xf32>
    %460 = vector.shape_cast %459 : vector<2xf32> to vector<2x1xf32>
    %461 = tpu.reciprocal %460 {approx = true} : vector<2x1xf32> -> vector<2x1xf32>
    %462 = vector.broadcast %461 : vector<2x1xf32> to vector<2x8xf32>
    %463 = arith.mulf %458, %462 : vector<2x8xf32>
    %464 = vector.broadcast %c6_i32 : i32 to vector<2x8x8xi32>
    %465 = arith.cmpi eq, %21, %464 : vector<2x8x8xi32>
    %466 = vector.shape_cast %463 : vector<2x8xf32> to vector<2x1x8xf32>
    %467 = vector.shape_cast %466 : vector<2x1x8xf32> to vector<2x1x8xf32>
    %468 = vector.broadcast %467 : vector<2x1x8xf32> to vector<2x8x8xf32>
    %469 = arith.select %465, %468, %403 : vector<2x8x8xi1>, vector<2x8x8xf32>
    %470 = vector.broadcast %455 : vector<2x1xf32> to vector<2x8xf32>
    %471 = arith.cmpf oge, %453, %470 : vector<2x8xf32>
    %c8_i32_103 = arith.constant 8 : i32
    %472 = vector.broadcast %c8_i32_103 : i32 to vector<2x8xi32>
    %473 = arith.select %471, %20, %472 : vector<2x8xi1>, vector<2x8xi32>
    %cst_104 = arith.constant dense<2147483647> : vector<2xi32>
    %474 = vector.multi_reduction <minsi>, %473, %cst_104 [1] : vector<2x8xi32> to vector<2xi32>
    %475 = vector.shape_cast %474 : vector<2xi32> to vector<2x1xi32>
    %476 = vector.broadcast %475 : vector<2x1xi32> to vector<2x8xi32>
    %477 = arith.cmpi eq, %20, %476 : vector<2x8xi32>
    %478 = arith.extui %477 : vector<2x8xi1> to vector<2x8xi32>
    %479 = arith.sitofp %478 : vector<2x8xi32> to vector<2x8xf32>
    %480 = vector.shape_cast %479 : vector<2x8xf32> to vector<2x1x8xf32>
    "tpu.trace_start"() <{level = 10 : i32, message = "bqp,bpg->bqg"}> : () -> ()
    %cst_105 = arith.constant dense<0.000000e+00> : vector<2x1x128xf32>
    %481 = tpu.matmul %480, %7, %cst_105 {dimension_numbers = #tpu.dot_dimension_numbers<[2], [1], [1], [2], [0, 0, 0, 1, 1, 2], [0], [0]>} : vector<2x1x8xf32>, vector<2x8x128xf32>, vector<2x1x128xf32> -> vector<2x1x128xf32>
    "tpu.trace_stop"() : () -> ()
    %482 = vector.shape_cast %481 : vector<2x1x128xf32> to vector<2x128xf32>
    %483 = arith.maximumf %417, %479 : vector<2x8xf32>
    %c7_i32 = arith.constant 7 : i32
    %cst_106 = arith.constant dense<0.000000e+00> : vector<2x128xf32>
    %484 = tpu.matmul %446, %8, %cst_106 {dimension_numbers = #tpu.dot_dimension_numbers<[1], [0], [0], [1], [0, 0, 1, 1], [], []>} : vector<2x32xf32>, vector<32x128xf32>, vector<2x128xf32> -> vector<2x128xf32>
    %485 = arith.addf %482, %484 : vector<2x128xf32>
    %486 = vector.broadcast %9 : vector<1x128xf32> to vector<2x128xf32>
    %487 = arith.addf %485, %486 : vector<2x128xf32>
    %488 = vector.extract_strided_slice %487 {offsets = [0, 0], sizes = [2, 32], strides = [1, 1]} : vector<2x128xf32> to vector<2x32xf32>
    %489 = arith.negf %488 : vector<2x32xf32>
    %490 = math.exp %489 : vector<2x32xf32>
    %cst_107 = arith.constant 1.000000e+00 : f32
    %491 = vector.broadcast %cst_107 : f32 to vector<2x32xf32>
    %492 = arith.addf %491, %490 : vector<2x32xf32>
    %493 = arith.divf %491, %492 : vector<2x32xf32>
    %494 = vector.extract_strided_slice %487 {offsets = [0, 32], sizes = [2, 32], strides = [1, 1]} : vector<2x128xf32> to vector<2x32xf32>
    %495 = arith.negf %494 : vector<2x32xf32>
    %496 = math.exp %495 : vector<2x32xf32>
    %cst_108 = arith.constant 1.000000e+00 : f32
    %497 = vector.broadcast %cst_108 : f32 to vector<2x32xf32>
    %498 = arith.addf %497, %496 : vector<2x32xf32>
    %499 = arith.divf %497, %498 : vector<2x32xf32>
    %500 = vector.extract_strided_slice %487 {offsets = [0, 64], sizes = [2, 32], strides = [1, 1]} : vector<2x128xf32> to vector<2x32xf32>
    %501 = math.tanh %500 : vector<2x32xf32>
    %502 = vector.extract_strided_slice %487 {offsets = [0, 96], sizes = [2, 32], strides = [1, 1]} : vector<2x128xf32> to vector<2x32xf32>
    %503 = arith.negf %502 : vector<2x32xf32>
    %504 = math.exp %503 : vector<2x32xf32>
    %cst_109 = arith.constant 1.000000e+00 : f32
    %505 = vector.broadcast %cst_109 : f32 to vector<2x32xf32>
    %506 = arith.addf %505, %504 : vector<2x32xf32>
    %507 = arith.divf %505, %506 : vector<2x32xf32>
    %508 = arith.mulf %499, %444 : vector<2x32xf32>
    %509 = arith.mulf %493, %501 : vector<2x32xf32>
    %510 = arith.addf %508, %509 : vector<2x32xf32>
    %511 = math.tanh %510 : vector<2x32xf32>
    %512 = arith.mulf %507, %511 : vector<2x32xf32>
    %513 = vector.shape_cast %512 : vector<2x32xf32> to vector<2x1x32xf32>
    "tpu.trace_start"() <{level = 10 : i32, message = "bqh,bph->bqp"}> : () -> ()
    %cst_110 = arith.constant dense<0.000000e+00> : vector<2x1x8xf32>
    %514 = tpu.matmul %513, %4, %cst_110 {dimension_numbers = #tpu.dot_dimension_numbers<[2], [2], [1], [1], [0, 0, 0, 1, 1, 1], [0], [0]>} : vector<2x1x32xf32>, vector<2x8x32xf32>, vector<2x1x8xf32> -> vector<2x1x8xf32>
    "tpu.trace_stop"() : () -> ()
    %515 = vector.shape_cast %514 : vector<2x1x8xf32> to vector<2x8xf32>
    %cst_111 = arith.constant 5.000000e-01 : f32
    %516 = vector.broadcast %cst_111 : f32 to vector<2x8xf32>
    %517 = arith.cmpf ogt, %483, %516 : vector<2x8xf32>
    %cst_112 = arith.constant -1.000000e+30 : f32
    %518 = vector.broadcast %cst_112 : f32 to vector<2x8xf32>
    %519 = arith.select %517, %518, %515 : vector<2x8xi1>, vector<2x8xf32>
    %cst_113 = arith.constant dense<0xFF800000> : vector<2xf32>
    %520 = vector.multi_reduction <maximumf>, %519, %cst_113 [1] : vector<2x8xf32> to vector<2xf32>
    %521 = vector.shape_cast %520 : vector<2xf32> to vector<2x1xf32>
    %522 = vector.broadcast %521 : vector<2x1xf32> to vector<2x8xf32>
    %523 = arith.subf %519, %522 : vector<2x8xf32>
    %524 = math.exp %523 : vector<2x8xf32>
    %cst_114 = arith.constant dense<0.000000e+00> : vector<2xf32>
    %525 = vector.multi_reduction <add>, %524, %cst_114 [1] : vector<2x8xf32> to vector<2xf32>
    %526 = vector.shape_cast %525 : vector<2xf32> to vector<2x1xf32>
    %527 = tpu.reciprocal %526 {approx = true} : vector<2x1xf32> -> vector<2x1xf32>
    %528 = vector.broadcast %527 : vector<2x1xf32> to vector<2x8xf32>
    %529 = arith.mulf %524, %528 : vector<2x8xf32>
    %530 = vector.broadcast %c7_i32 : i32 to vector<2x8x8xi32>
    %531 = arith.cmpi eq, %21, %530 : vector<2x8x8xi32>
    %532 = vector.shape_cast %529 : vector<2x8xf32> to vector<2x1x8xf32>
    %533 = vector.shape_cast %532 : vector<2x1x8xf32> to vector<2x1x8xf32>
    %534 = vector.broadcast %533 : vector<2x1x8xf32> to vector<2x8x8xf32>
    %535 = arith.select %531, %534, %469 : vector<2x8x8xi1>, vector<2x8x8xf32>
    %536 = vector.broadcast %521 : vector<2x1xf32> to vector<2x8xf32>
    %537 = arith.cmpf oge, %519, %536 : vector<2x8xf32>
    %c8_i32_115 = arith.constant 8 : i32
    %538 = vector.broadcast %c8_i32_115 : i32 to vector<2x8xi32>
    %539 = arith.select %537, %20, %538 : vector<2x8xi1>, vector<2x8xi32>
    %cst_116 = arith.constant dense<2147483647> : vector<2xi32>
    %540 = vector.multi_reduction <minsi>, %539, %cst_116 [1] : vector<2x8xi32> to vector<2xi32>
    %541 = vector.shape_cast %540 : vector<2xi32> to vector<2x1xi32>
    %542 = vector.broadcast %541 : vector<2x1xi32> to vector<2x8xi32>
    %543 = arith.cmpi eq, %20, %542 : vector<2x8xi32>
    %544 = arith.extui %543 : vector<2x8xi1> to vector<2x8xi32>
    %545 = arith.sitofp %544 : vector<2x8xi32> to vector<2x8xf32>
    %546 = vector.shape_cast %545 : vector<2x8xf32> to vector<2x1x8xf32>
    "tpu.trace_start"() <{level = 10 : i32, message = "bqp,bpg->bqg"}> : () -> ()
    %cst_117 = arith.constant dense<0.000000e+00> : vector<2x1x128xf32>
    %547 = tpu.matmul %546, %7, %cst_117 {dimension_numbers = #tpu.dot_dimension_numbers<[2], [1], [1], [2], [0, 0, 0, 1, 1, 2], [0], [0]>} : vector<2x1x8xf32>, vector<2x8x128xf32>, vector<2x1x128xf32> -> vector<2x1x128xf32>
    "tpu.trace_stop"() : () -> ()
    %548 = vector.shape_cast %547 : vector<2x1x128xf32> to vector<2x128xf32>
    %549 = arith.maximumf %483, %545 : vector<2x8xf32>
    %c8_i32_118 = arith.constant 8 : i32
    %c0_119 = arith.constant 0 : index
    %c0_120 = arith.constant 0 : index
    %c0_121 = arith.constant 0 : index
    %550 = vector.load %arg10[%c0_119, %c0_120, %c0_121] : memref<2x8x8xf32, #tpu.memory_space<vmem>>, vector<2x8x8xf32>
    tpu.vector_store %arg10[%c0_119, %c0_120, %c0_121], %535 {strides = array<i32>} : memref<2x8x8xf32, #tpu.memory_space<vmem>>, vector<2x8x8xf32>,
    return
  }
  func.func @transform_0(%arg0: i32) -> (i32, i32) {
    %c0_i32 = arith.constant 0 : i32
    %c0_i32_0 = arith.constant 0 : i32
    %c0_i32_1 = arith.constant 0 : i32
    return %c0_i32, %c0_i32_0 : i32, i32
  }
  func.func @transform_1(%arg0: i32) -> (i32, i32, i32) {
    %c0_i32 = arith.constant 0 : i32
    %c0_i32_0 = arith.constant 0 : i32
    %c0_i32_1 = arith.constant 0 : i32
    %c0_i32_2 = arith.constant 0 : i32
    return %c0_i32, %c0_i32_0, %c0_i32_1 : i32, i32, i32
  }
  func.func @transform_2(%arg0: i32) -> (i32, i32) {
    %c0_i32 = arith.constant 0 : i32
    %c0_i32_0 = arith.constant 0 : i32
    %c0_i32_1 = arith.constant 0 : i32
    return %c0_i32, %c0_i32_0 : i32, i32
  }
  func.func @transform_3(%arg0: i32) -> (i32, i32) {
    %c0_i32 = arith.constant 0 : i32
    %c0_i32_0 = arith.constant 0 : i32
    %c0_i32_1 = arith.constant 0 : i32
    return %c0_i32, %c0_i32_0 : i32, i32
  }
  func.func @transform_4(%arg0: i32) -> (i32, i32) {
    %c0_i32 = arith.constant 0 : i32
    %c0_i32_0 = arith.constant 0 : i32
    %c0_i32_1 = arith.constant 0 : i32
    return %c0_i32, %c0_i32_0 : i32, i32
  }
  func.func @transform_5(%arg0: i32) -> (i32, i32) {
    %c0_i32 = arith.constant 0 : i32
    %c0_i32_0 = arith.constant 0 : i32
    %c0_i32_1 = arith.constant 0 : i32
    return %c0_i32, %c0_i32_0 : i32, i32
  }
  func.func @transform_6(%arg0: i32) -> (i32, i32) {
    %c0_i32 = arith.constant 0 : i32
    %c0_i32_0 = arith.constant 0 : i32
    %c0_i32_1 = arith.constant 0 : i32
    return %c0_i32, %c0_i32_0 : i32, i32
  }
  func.func @transform_7(%arg0: i32) -> (i32, i32) {
    %c0_i32 = arith.constant 0 : i32
    %c0_i32_0 = arith.constant 0 : i32
    %c0_i32_1 = arith.constant 0 : i32
    return %c0_i32, %c0_i32_0 : i32, i32
  }
  func.func @transform_8(%arg0: i32) -> (i32, i32) {
    %c0_i32 = arith.constant 0 : i32
    %c0_i32_0 = arith.constant 0 : i32
    %c0_i32_1 = arith.constant 0 : i32
    return %c0_i32, %c0_i32_0 : i32, i32
  }
  func.func @transform_9(%arg0: i32) -> (i32, i32, i32) {
    %c0_i32 = arith.constant 0 : i32
    %c0_i32_0 = arith.constant 0 : i32
    %c0_i32_1 = arith.constant 0 : i32
    %c0_i32_2 = arith.constant 0 : i32
    return %c0_i32, %c0_i32_0, %c0_i32_1 : i32, i32, i32
  }
}

</mosaic_0001>

<llo_original>
// kernel: double_pointer_forward.1
$region0: #{double_pointer_forward.1}
  #allocation0 [shape = 'u32[]', space=smem, size = 0x4, offset = 0x4, fixed_abs, tag = 'smem constant byte address 0x4 - core index']
  #allocation1 [shape = 'u32[144,128]{1,0:T(1,128)}', space=vmem, size = 0x12000, scoped, tag = 'internal scratch']
  %s0 = inlined_call_operand.vmem [shape: f32[2,32], index: 0, kind: input, shape index: {}]
  %s1 = inlined_call_operand.hbm [shape: f32[2,8,32], index: 1, kind: input, shape index: {}]
  %s2 = inlined_call_operand.vmem [shape: f32[2,8], index: 2, kind: input, shape index: {}]
  %s3 = inlined_call_operand.vmem [shape: f32[32,32], index: 3, kind: input, shape index: {}]
  %s4 = inlined_call_operand.vmem [shape: f32[1,32], index: 4, kind: input, shape index: {}]
  %s5 = inlined_call_operand.vmem [shape: f32[32,128], index: 5, kind: input, shape index: {}]
  %s6 = inlined_call_operand.vmem [shape: f32[32,128], index: 6, kind: input, shape index: {}]
  %s7 = inlined_call_operand.vmem [shape: f32[1,128], index: 7, kind: input, shape index: {}]
  %s8 = inlined_call_operand.vmem [shape: f32[32,32], index: 8, kind: input, shape index: {}]
  %s9 = inlined_call_operand.hbm [shape: f32[2,8,8], index: 9, kind: output, shape index: {}]
  %s10 = sld [smem:[#allocation0]]
  $region50: #{double_pointer_forward.1} parent=0
    _
  %s12 = ssub.s32 1, %s10
  %s13 = scalar_select 0, %s12, %s10
  $region1: #{double_pointer_forward.1} parent=0
    #allocation2 [shape = 'u8[8192]{0}', space=vmem, size = 0x2000, scoped, tag = 'input window, operand 1, single buffered']
    #allocation3 [shape = 's32[1]{0}', space=sflag, size = 0x4, scoped, tag = 'scoped memory for double_pointer_forward.1']
    #allocation4 [shape = 's32[1]{0}', space=sflag, size = 0x4, scoped, tag = 'scoped memory for double_pointer_forward.1']
    #allocation5 [shape = 'u8[8192]{0}', space=vmem, size = 0x2000, scoped, tag = 'output window, operand 0, single buffered']
    %14 = vsyncpa [#allocation3], 0
    %15 = vsyncpa [#allocation4], 0
    // Predicated region
    $region2: #{double_pointer_forward.1} parent=1 // pred_check
      _
    $region3: #{double_pointer_forward.1} parent=1 // pred_check_branch
      %17 = sbr.rel (0) target = $region5
    $region4: #{double_pointer_forward.1} parent=1 // pred_region
      _
    $region5: #{double_pointer_forward.1} parent=1 // pred_fallthru
      _
    // Predicated region
    $region6: #{double_pointer_forward.1} parent=1 // pred_check
      _
    $region7: #{double_pointer_forward.1} parent=1 // pred_check_branch
      %19 = sbr.rel (0) target = $region9
    $region8: #{double_pointer_forward.1} parent=1 // pred_region
      %s21 = ssub.s32 256, 256
      %22 = vsyncadd [#allocation3], %s21
      %s23 = sshll.u32 [#allocation2], 4
      %s24 = int_to_ptr.vmem [resolvable:$true] %s23
      %29 = dma.hbm_to_vmem [thread:$0]  %s1, 256, %s24, [#allocation3], 128, 128, 8
    $region9: #{double_pointer_forward.1} parent=1 // pred_fallthru
      _
    // Predicated region
    $region10: #{double_pointer_forward.1} parent=1 // pred_check
      _
    $region11: #{double_pointer_forward.1} parent=1 // pred_check_branch
      %31 = sbr.rel (0) target = $region13
    $region12: #{double_pointer_forward.1} parent=1 // pred_region
      _
    $region13: #{double_pointer_forward.1} parent=1 // pred_fallthru
      _
    // Predicated region
    $region14: #{double_pointer_forward.1} parent=1 // pred_check
      _
    $region15: #{double_pointer_forward.1} parent=1 // pred_check_branch
      %33 = sbr.rel (0) target = $region17
    $region16: #{double_pointer_forward.1} parent=1 // pred_region
      _
    $region17: #{double_pointer_forward.1} parent=1 // pred_fallthru
      _
    // Predicated region
    $region18: #{double_pointer_forward.1} parent=1 // pred_check
      _
    $region19: #{double_pointer_forward.1} parent=1 // pred_check_branch
      %35 = sbr.rel (0) target = $region21
    $region20: #{double_pointer_forward.1} parent=1 // pred_region
      _
    $region21: #{double_pointer_forward.1} parent=1 // pred_fallthru
      _
    // Predicated region
    $region22: #{double_pointer_forward.1} parent=1 // pred_check
      _
    $region23: #{double_pointer_forward.1} parent=1 // pred_check_branch
      %37 = sbr.rel (0) target = $region25
    $region24: #{double_pointer_forward.1} parent=1 // pred_region
      _
    $region25: #{double_pointer_forward.1} parent=1 // pred_fallthru
      _
    // Predicated region
    $region26: #{double_pointer_forward.1} parent=1 // pred_check
      _
    $region27: #{double_pointer_forward.1} parent=1 // pred_check_branch
      %39 = sbr.rel (0) target = $region29
    $region28: #{double_pointer_forward.1} parent=1 // pred_region
      _
    $region29: #{double_pointer_forward.1} parent=1 // pred_fallthru
      _
    // Predicated region
    $region30: #{double_pointer_forward.1} parent=1 // pred_check
      _
    $region31: #{double_pointer_forward.1} parent=1 // pred_check_branch
      %41 = sbr.rel (0) target = $region33
    $region32: #{double_pointer_forward.1} parent=1 // pred_region
      _
    $region33: #{double_pointer_forward.1} parent=1 // pred_fallthru
      _
    // Predicated region
    $region34: #{double_pointer_forward.1} parent=1 // pred_check
      _
    $region35: #{double_pointer_forward.1} parent=1 // pred_check_branch
      %43 = sbr.rel (0) target = $region37
    $region36: #{double_pointer_forward.1} parent=1 // pred_region
      _
    $region37: #{double_pointer_forward.1} parent=1 // pred_fallthru
      _
    // Predicated region
    $region38: #{double_pointer_forward.1} parent=1 // pred_check
      _
    $region39: #{double_pointer_forward.1} parent=1 // pred_check_branch
      %45 = sbr.rel (0) target = $region41
    $region40: #{double_pointer_forward.1} parent=1 // pred_region
      %46 = dma.done [#allocation3], 256
    $region41: #{double_pointer_forward.1} parent=1 // pred_fallthru
      _
    %v47 = vld [vmem:[#allocation2] sm:$0xff]
    %v48 = vld [vmem:[#allocation2 + $0x8] sm:$0xff]
    %v49 = vld [vmem:[%s8] sm:$0xff]
    %v50 = vld [vmem:[%s8 + $0x8] sm:$0xff]
    %v51 = vld [vmem:[%s8 + $0x10] sm:$0xff]
    %v52 = vld [vmem:[%s8 + $0x18] sm:$0xff]
    %vm53 = vcmask 261120
    %v55 = vsel %vm53, %v47, 0
    %v58 = vsel %vm53, %v48, 0
    %60 = vmatprep.subr.mxu0 0.0
    %61 = vmatpush1.msra.mxu0 %v49
    %62 = vmatprep.subr.mxu0 0.0
    %63 = vmatpush1.msra.mxu0 %v50
    %64 = vmatprep.subr.mxu0 0.0
    %65 = vmatpush1.msra.mxu0 %v51
    %66 = vmatprep.subr.mxu0 0.0
    %67 = vmatpush1.msra.mxu0 %v52
    %68 = vmatprep.subr.mxu0 0.0
    %69 = vmatpush1.msra.mxu0 0.0
    %70 = vmatprep.subr.mxu0 0.0
    %71 = vmatpush1.msra.mxu0 0.0
    %72 = vmatprep.subr.mxu0 0.0
    %73 = vmatpush1.msra.mxu0 0.0
    %74 = vmatprep.subr.mxu0 0.0
    %75 = vmatpush1.msra.mxu0 0.0
    %76 = vmatprep.subr.mxu0 0.0
    %77 = vmatpush1.msra.mxu0 0.0
    %78 = vmatprep.subr.mxu0 0.0
    %79 = vmatpush1.msra.mxu0 0.0
    %80 = vmatprep.subr.mxu0 0.0
    %81 = vmatpush1.msra.mxu0 0.0
    %82 = vmatprep.subr.mxu0 0.0
    %83 = vmatpush1.msra.mxu0 0.0
    %84 = vmatprep.subr.mxu0 0.0
    %85 = vmatpush1.msra.mxu0 0.0
    %86 = vmatprep.subr.mxu0 0.0
    %87 = vmatpush1.msra.mxu0 0.0
    %88 = vmatprep.subr.mxu0 0.0
    %89 = vmatpush1.msra.mxu0 0.0
    %90 = vmatprep.subr.mxu0 0.0
    %91 = vmatpush1.msra.mxu0 0.0
    %92 = vmatprep.subr.mxu0 0.0
    %93 = vmatpush1.msra.mxu0 0.0
    %94 = vmatprep.subr.mxu0 0.0
    %95 = vmatpush1.msra.mxu0 0.0
    %96 = vmatprep.subr.mxu0 0.0
    %97 = vmatpush1.msra.mxu0 0.0
    %98 = vmatprep.subr.mxu0 0.0
    %99 = vmatpush1.msra.mxu0 0.0
    %100 = vmatprep.subr.mxu0 0.0
    %101 = vmatpush1.msra.mxu0 0.0
    %102 = vmatprep.subr.mxu0 0.0
    %103 = vmatpush1.msra.mxu0 0.0
    %104 = vmatprep.subr.mxu0 0.0
    %105 = vmatpush1.msra.mxu0 0.0
    %106 = vmatprep.subr.mxu0 0.0
    %107 = vmatpush1.msra.mxu0 0.0
    %108 = vmatprep.subr.mxu0 0.0
    %109 = vmatpush1.msra.mxu0 0.0
    %110 = vmatprep.subr.mxu0 0.0
    %111 = vmatpush1.msra.mxu0 0.0
    %112 = vmatprep.subr.mxu0 0.0
    %113 = vmatpush1.msra.mxu0 0.0
    %114 = vmatprep.subr.mxu0 0.0
    %115 = vmatpush1.msra.mxu0 0.0
    %116 = vmatprep.subr.mxu0 0.0
    %117 = vmatpush1.msra.mxu0 0.0
    %118 = vmatprep.subr.mxu0 0.0
    %119 = vmatpush1.msra.mxu0 0.0
    %120 = vmatprep.subr.mxu0 0.0
    %121 = vmatpush1.msra.mxu0 0.0
    %122 = vmatprep.subr.mxu0 0.0
    %123 = vmatpush1.msra.mxu0 0.0
    %124 = vmatprep.mubr.f32.mxu0 0.0
    %125 = vmatmul.mubr.f32.gmra.mrb[0].mxu0 %v55
    %v126 = vpop.f32.mrb[0].mxu0
    %v127 = vadd.f32 0.0, %v126
    %v128 = vpop.f32.mrb[0].mxu0
    %129 = vmatprep.mubr.f32.mxu0 0.0
    %130 = vmatmul.mubr.f32.gmra.mrb[0].mxu0 %v58
    %v131 = vpop.f32.mrb[0].mxu0
    %v132 = vadd.f32 0.0, %v131
    %v133 = vpop.f32.mrb[0].mxu0
    %134 = vdwg.mxu0
    %v135 = vld [vmem:[%s5] sm:$0xff]
    %v136 = vld [vmem:[%s5 + $0x8] sm:$0xff]
    %v137 = vld [vmem:[%s5 + $0x10] sm:$0xff]
    %v138 = vld [vmem:[%s5 + $0x18] sm:$0xff]
    %139 = vmatprep.subr.mxu0 0.0
    %140 = vmatpush1.msra.mxu0 %v135
    %141 = vmatprep.subr.mxu0 0.0
    %142 = vmatpush1.msra.mxu0 %v136
    %143 = vmatprep.subr.mxu0 0.0
    %144 = vmatpush1.msra.mxu0 %v137
    %145 = vmatprep.subr.mxu0 0.0
    %146 = vmatpush1.msra.mxu0 %v138
    %147 = vmatprep.subr.mxu0 0.0
    %148 = vmatpush1.msra.mxu0 0.0
    %149 = vmatprep.subr.mxu0 0.0
    %150 = vmatpush1.msra.mxu0 0.0
    %151 = vmatprep.subr.mxu0 0.0
    %152 = vmatpush1.msra.mxu0 0.0
    %153 = vmatprep.subr.mxu0 0.0
    %154 = vmatpush1.msra.mxu0 0.0
    %155 = vmatprep.subr.mxu0 0.0
    %156 = vmatpush1.msra.mxu0 0.0
    %157 = vmatprep.subr.mxu0 0.0
    %158 = vmatpush1.msra.mxu0 0.0
    %159 = vmatprep.subr.mxu0 0.0
    %160 = vmatpush1.msra.mxu0 0.0
    %161 = vmatprep.subr.mxu0 0.0
    %162 = vmatpush1.msra.mxu0 0.0
    %163 = vmatprep.subr.mxu0 0.0
    %164 = vmatpush1.msra.mxu0 0.0
    %165 = vmatprep.subr.mxu0 0.0
    %166 = vmatpush1.msra.mxu0 0.0
    %167 = vmatprep.subr.mxu0 0.0
    %168 = vmatpush1.msra.mxu0 0.0
    %169 = vmatprep.subr.mxu0 0.0
    %170 = vmatpush1.msra.mxu0 0.0
    %171 = vmatprep.subr.mxu0 0.0
    %172 = vmatpush1.msra.mxu0 0.0
    %173 = vmatprep.subr.mxu0 0.0
    %174 = vmatpush1.msra.mxu0 0.0
    %175 = vmatprep.subr.mxu0 0.0
    %176 = vmatpush1.msra.mxu0 0.0
    %177 = vmatprep.subr.mxu0 0.0
    %178 = vmatpush1.msra.mxu0 0.0
    %179 = vmatprep.subr.mxu0 0.0
    %180 = vmatpush1.msra.mxu0 0.0
    %181 = vmatprep.subr.mxu0 0.0
    %182 = vmatpush1.msra.mxu0 0.0
    %183 = vmatprep.subr.mxu0 0.0
    %184 = vmatpush1.msra.mxu0 0.0
    %185 = vmatprep.subr.mxu0 0.0
    %186 = vmatpush1.msra.mxu0 0.0
    %187 = vmatprep.subr.mxu0 0.0
    %188 = vmatpush1.msra.mxu0 0.0
    %189 = vmatprep.subr.mxu0 0.0
    %190 = vmatpush1.msra.mxu0 0.0
    %191 = vmatprep.subr.mxu0 0.0
    %192 = vmatpush1.msra.mxu0 0.0
    %193 = vmatprep.subr.mxu0 0.0
    %194 = vmatpush1.msra.mxu0 0.0
    %195 = vmatprep.subr.mxu0 0.0
    %196 = vmatpush1.msra.mxu0 0.0
    %197 = vmatprep.subr.mxu0 0.0
    %198 = vmatpush1.msra.mxu0 0.0
    %199 = vmatprep.subr.mxu0 0.0
    %200 = vmatpush1.msra.mxu0 0.0
    %201 = vmatprep.subr.mxu0 0.0
    %202 = vmatpush1.msra.mxu0 0.0
    %203 = vmatprep.mubr.f32.mxu0 0.0
    %204 = vmatmul.mubr.f32.gmra.mrb[0].mxu0 %v55
    %v205 = vpop.f32.mrb[0].mxu0
    %v206 = vadd.f32 0.0, %v205
    %v207 = vpop.f32.mrb[0].mxu0
    %208 = vmatprep.mubr.f32.mxu0 0.0
    %209 = vmatmul.mubr.f32.gmra.mrb[0].mxu0 %v58
    %v210 = vpop.f32.mrb[0].mxu0
    %v211 = vadd.f32 0.0, %v210
    %v212 = vpop.f32.mrb[0].mxu0
    %213 = vdwg.mxu0
    %v214 = vld [vmem:[%s6] sm:$0xff]
    %v215 = vld [vmem:[%s6 + $0x8] sm:$0xff]
    %v216 = vld [vmem:[%s6 + $0x10] sm:$0xff]
    %v217 = vld [vmem:[%s6 + $0x18] sm:$0xff]
    %v218 = vld [vmem:[%s7] sm:$0x1]
    %v219 = vld [vmem:[%s0] sm:$0x3]
    %v220 = vld [vmem:[%s3] sm:$0xff]
    %v221 = vld [vmem:[%s3 + $0x8] sm:$0xff]
    %v222 = vld [vmem:[%s3 + $0x10] sm:$0xff]
    %v223 = vld [vmem:[%s3 + $0x18] sm:$0xff]
    %v224 = vld [vmem:[%s4] sm:$0x1]
    %v226 = vlaneseq
    %v227 = vshrl.u32 %v226, 7
    %v228 = vsub.s32 0, %v227
    %v229 = vrot.slane %v224, %v228
    %v232 = vsel %vm53, %v219, 0
    %234 = vmatprep.subr.mxu0 0.0
    %235 = vmatpush1.msra.mxu0 %v220
    %236 = vmatprep.subr.mxu0 0.0
    %237 = vmatpush1.msra.mxu0 %v221
    %238 = vmatprep.subr.mxu0 0.0
    %239 = vmatpush1.msra.mxu0 %v222
    %240 = vmatprep.subr.mxu0 0.0
    %241 = vmatpush1.msra.mxu0 %v223
    %242 = vmatprep.subr.mxu0 0.0
    %243 = vmatpush1.msra.mxu0 0.0
    %244 = vmatprep.subr.mxu0 0.0
    %245 = vmatpush1.msra.mxu0 0.0
    %246 = vmatprep.subr.mxu0 0.0
    %247 = vmatpush1.msra.mxu0 0.0
    %248 = vmatprep.subr.mxu0 0.0
    %249 = vmatpush1.msra.mxu0 0.0
    %250 = vmatprep.subr.mxu0 0.0
    %251 = vmatpush1.msra.mxu0 0.0
    %252 = vmatprep.subr.mxu0 0.0
    %253 = vmatpush1.msra.mxu0 0.0
    %254 = vmatprep.subr.mxu0 0.0
    %255 = vmatpush1.msra.mxu0 0.0
    %256 = vmatprep.subr.mxu0 0.0
    %257 = vmatpush1.msra.mxu0 0.0
    %258 = vmatprep.subr.mxu0 0.0
    %259 = vmatpush1.msra.mxu0 0.0
    %260 = vmatprep.subr.mxu0 0.0
    %261 = vmatpush1.msra.mxu0 0.0
    %262 = vmatprep.subr.mxu0 0.0
    %263 = vmatpush1.msra.mxu0 0.0
    %264 = vmatprep.subr.mxu0 0.0
    %265 = vmatpush1.msra.mxu0 0.0
    %266 = vmatprep.subr.mxu0 0.0
    %267 = vmatpush1.msra.mxu0 0.0
    %268 = vmatprep.subr.mxu0 0.0
    %269 = vmatpush1.msra.mxu0 0.0
    %270 = vmatprep.subr.mxu0 0.0
    %271 = vmatpush1.msra.mxu0 0.0
    %272 = vmatprep.subr.mxu0 0.0
    %273 = vmatpush1.msra.mxu0 0.0
    %274 = vmatprep.subr.mxu0 0.0
    %275 = vmatpush1.msra.mxu0 0.0
    %276 = vmatprep.subr.mxu0 0.0
    %277 = vmatpush1.msra.mxu0 0.0
    %278 = vmatprep.subr.mxu0 0.0
    %279 = vmatpush1.msra.mxu0 0.0
    %280 = vmatprep.subr.mxu0 0.0
    %281 = vmatpush1.msra.mxu0 0.0
    %282 = vmatprep.subr.mxu0 0.0
    %283 = vmatpush1.msra.mxu0 0.0
    %284 = vmatprep.subr.mxu0 0.0
    %285 = vmatpush1.msra.mxu0 0.0
    %286 = vmatprep.subr.mxu0 0.0
    %287 = vmatpush1.msra.mxu0 0.0
    %288 = vmatprep.subr.mxu0 0.0
    %289 = vmatpush1.msra.mxu0 0.0
    %290 = vmatprep.subr.mxu0 0.0
    %291 = vmatpush1.msra.mxu0 0.0
    %292 = vmatprep.subr.mxu0 0.0
    %293 = vmatpush1.msra.mxu0 0.0
    %294 = vmatprep.subr.mxu0 0.0
    %295 = vmatpush1.msra.mxu0 0.0
    %296 = vmatprep.subr.mxu0 0.0
    %297 = vmatpush1.msra.mxu0 0.0
    %298 = vmatprep.mubr.f32.mxu0 0.0
    %299 = vmatmul.mubr.f32.gmra.mrb[0].mxu0 %v232
    %v300 = vpop.f32.mrb[0].mxu0
    %v301 = vadd.f32 %v229, %v300
    %v302 = vpop.f32.mrb[0].mxu0
    %303 = vdwg.mxu0
    %v304 = vld [vmem:[%s2] sm:$0x3]
    %v305 = vlaneseq
    %v306 = vand.u32 %v305, 127
    %v307 = vlaneseq
    %v308 = vshrl.u32 %v307, 7
    %v310 = vlaneseq
    %v311 = vshrl.u32 %v310, 7
    %v312 = vsub.s32 0, %v311
    %v313 = vrot.slane %v218, %v312
    %v316 = vsel %vm53, %v301, 0
    %318 = vmatprep.subr.mxu0 0.0
    %319 = vmatpush1.msra.mxu0 %v214
    %320 = vmatprep.subr.mxu0 0.0
    %321 = vmatpush1.msra.mxu0 %v215
    %322 = vmatprep.subr.mxu0 0.0
    %323 = vmatpush1.msra.mxu0 %v216
    %324 = vmatprep.subr.mxu0 0.0
    %325 = vmatpush1.msra.mxu0 %v217
    %326 = vmatprep.subr.mxu0 0.0
    %327 = vmatpush1.msra.mxu0 0.0
    %328 = vmatprep.subr.mxu0 0.0
    %329 = vmatpush1.msra.mxu0 0.0
    %330 = vmatprep.subr.mxu0 0.0
    %331 = vmatpush1.msra.mxu0 0.0
    %332 = vmatprep.subr.mxu0 0.0
    %333 = vmatpush1.msra.mxu0 0.0
    %334 = vmatprep.subr.mxu0 0.0
    %335 = vmatpush1.msra.mxu0 0.0
    %336 = vmatprep.subr.mxu0 0.0
    %337 = vmatpush1.msra.mxu0 0.0
    %338 = vmatprep.subr.mxu0 0.0
    %339 = vmatpush1.msra.mxu0 0.0
    %340 = vmatprep.subr.mxu0 0.0
    %341 = vmatpush1.msra.mxu0 0.0
    %342 = vmatprep.subr.mxu0 0.0
    %343 = vmatpush1.msra.mxu0 0.0
    %344 = vmatprep.subr.mxu0 0.0
    %345 = vmatpush1.msra.mxu0 0.0
    %346 = vmatprep.subr.mxu0 0.0
    %347 = vmatpush1.msra.mxu0 0.0
    %348 = vmatprep.subr.mxu0 0.0
    %349 = vmatpush1.msra.mxu0 0.0
    %350 = vmatprep.subr.mxu0 0.0
    %351 = vmatpush1.msra.mxu0 0.0
    %352 = vmatprep.subr.mxu0 0.0
    %353 = vmatpush1.msra.mxu0 0.0
    %354 = vmatprep.subr.mxu0 0.0
    %355 = vmatpush1.msra.mxu0 0.0
    %356 = vmatprep.subr.mxu0 0.0
    %357 = vmatpush1.msra.mxu0 0.0
    %358 = vmatprep.subr.mxu0 0.0
    %359 = vmatpush1.msra.mxu0 0.0
    %360 = vmatprep.subr.mxu0 0.0
    %361 = vmatpush1.msra.mxu0 0.0
    %362 = vmatprep.subr.mxu0 0.0
    %363 = vmatpush1.msra.mxu0 0.0
    %364 = vmatprep.subr.mxu0 0.0
    %365 = vmatpush1.msra.mxu0 0.0
    %366 = vmatprep.subr.mxu0 0.0
    %367 = vmatpush1.msra.mxu0 0.0
    %368 = vmatprep.subr.mxu0 0.0
    %369 = vmatpush1.msra.mxu0 0.0
    %370 = vmatprep.subr.mxu0 0.0
    %371 = vmatpush1.msra.mxu0 0.0
    %372 = vmatprep.subr.mxu0 0.0
    %373 = vmatpush1.msra.mxu0 0.0
    %374 = vmatprep.subr.mxu0 0.0
    %375 = vmatpush1.msra.mxu0 0.0
    %376 = vmatprep.subr.mxu0 0.0
    %377 = vmatpush1.msra.mxu0 0.0
    %378 = vmatprep.subr.mxu0 0.0
    %379 = vmatpush1.msra.mxu0 0.0
    %380 = vmatprep.subr.mxu0 0.0
    %381 = vmatpush1.msra.mxu0 0.0
    %382 = vmatprep.mubr.f32.mxu0 0.0
    %383 = vmatmul.mubr.f32.gmra.mrb[0].mxu0 %v316
    %v384 = vpop.f32.mrb[0].mxu0
    %v385 = vadd.f32 %v313, %v384
    %v386 = vpop.f32.mrb[0].mxu0
    %387 = vdwg.mxu0
    %v388 = vxor.u32 %v385, 2147483648
    %v389 = vmul.f32 %v388, 1.442695
    %v390 = vpow.pop %v389
    %v391 = vadd.f32 %v390, 1.0
    %v392 = vrcp.pop %v391
    %v393 = vmul.f32 1.0, %v392
    %v394 = vtanh.pop %v385
    %v395 = vmul.f32 %v393, 0.0
    %397 = vrot.lane.b32.xlu0 %v394, 64
    %v398 = vpop.permute.xlu0 %397
    %v400 = vmul.f32 %v393, %v398
    %402 = vrot.lane.b32.xlu0 %v400, 32
    %v403 = vpop.permute.xlu0 %402
    %v405 = vadd.f32 %v395, %v403
    %v406 = vtanh.pop %v405
    %408 = vrot.lane.b32.xlu0 %v406, 64
    %v409 = vpop.permute.xlu0 %408
    %v411 = vmul.f32 %v393, %v409
    %v414 = vunpack.c.l.s4 1966171168
    %v415 = vunpack.c.0.s8 %v414
    %v416 = vlaneseq
    %v417 = vshrl.u32 %v416, 7
    %v418 = vsub.s32 %v415, %v417
    %v419 = vrot.slane %v411, %v418
    %v420 = vcombine.high %v419, %v419
    %v422 = vunpack.c.l.s4 1966171168
    %v423 = vunpack.c.0.s8 %v422
    %v424 = vlaneseq
    %v425 = vshrl.u32 %v424, 7
    %v426 = vsub.s32 %v423, %v425
    %v427 = vrot.slane %v419, %v426
    %v429 = vunpack.c.l.s4 1966171168
    %v430 = vunpack.c.0.s8 %v429
    %v431 = vlaneseq
    %v432 = vshrl.u32 %v431, 7
    %v433 = vsub.s32 %v430, %v432
    %v434 = vrot.slane %v420, %v433
    %v435 = vlaneseq
    %v436 = vshrl.u32 %v435, 7
    %v437 = vsub.s32 0, %v436
    %v438 = vrot.slane %v427, %v437
    %439 = vrot.lane.b32.xlu0 %v438, 32
    %v440 = vpop.permute.xlu0 %439
    %v441 = vsel %vm53, %v440, 0
    %v444 = vsel %vm53, %v127, 0
    %446 = vmatprep.subr.mxu0 0.0
    %447 = vmatpush1.xpose.msra.mxu0 %v444
    %448 = vmatprep.subr.mxu0 0.0
    %449 = vmatpush1.xpose.msra.mxu0 0.0
    %450 = vmatprep.subr.mxu0 0.0
    %451 = vmatpush1.xpose.msra.mxu0 0.0
    %452 = vmatprep.subr.mxu0 0.0
    %453 = vmatpush1.xpose.msra.mxu0 0.0
    %454 = vmatprep.subr.mxu0 0.0
    %455 = vmatpush1.xpose.msra.mxu0 0.0
    %456 = vmatprep.subr.mxu0 0.0
    %457 = vmatpush1.xpose.msra.mxu0 0.0
    %458 = vmatprep.subr.mxu0 0.0
    %459 = vmatpush1.xpose.msra.mxu0 0.0
    %460 = vmatprep.subr.mxu0 0.0
    %461 = vmatpush1.xpose.msra.mxu0 0.0
    %462 = vmatprep.subr.mxu0 0.0
    %463 = vmatpush1.xpose.msra.mxu0 0.0
    %464 = vmatprep.subr.mxu0 0.0
    %465 = vmatpush1.xpose.msra.mxu0 0.0
    %466 = vmatprep.subr.mxu0 0.0
    %467 = vmatpush1.xpose.msra.mxu0 0.0
    %468 = vmatprep.subr.mxu0 0.0
    %469 = vmatpush1.xpose.msra.mxu0 0.0
    %470 = vmatprep.subr.mxu0 0.0
    %471 = vmatpush1.xpose.msra.mxu0 0.0
    %472 = vmatprep.subr.mxu0 0.0
    %473 = vmatpush1.xpose.msra.mxu0 0.0
    %474 = vmatprep.subr.mxu0 0.0
    %475 = vmatpush1.xpose.msra.mxu0 0.0
    %476 = vmatprep.subr.mxu0 0.0
    %477 = vmatpush1.xpose.msra.mxu0 0.0
    %478 = vmatprep.subr.mxu0 0.0
    %479 = vmatpush1.xpose.msra.mxu0 0.0
    %480 = vmatprep.subr.mxu0 0.0
    %481 = vmatpush1.xpose.msra.mxu0 0.0
    %482 = vmatprep.subr.mxu0 0.0
    %483 = vmatpush1.xpose.msra.mxu0 0.0
    %484 = vmatprep.subr.mxu0 0.0
    %485 = vmatpush1.xpose.msra.mxu0 0.0
    %486 = vmatprep.subr.mxu0 0.0
    %487 = vmatpush1.xpose.msra.mxu0 0.0
    %488 = vmatprep.subr.mxu0 0.0
    %489 = vmatpush1.xpose.msra.mxu0 0.0
    %490 = vmatprep.subr.mxu0 0.0
    %491 = vmatpush1.xpose.msra.mxu0 0.0
    %492 = vmatprep.subr.mxu0 0.0
    %493 = vmatpush1.xpose.msra.mxu0 0.0
    %494 = vmatprep.subr.mxu0 0.0
    %495 = vmatpush1.xpose.msra.mxu0 0.0
    %496 = vmatprep.subr.mxu0 0.0
    %497 = vmatpush1.xpose.msra.mxu0 0.0
    %498 = vmatprep.subr.mxu0 0.0
    %499 = vmatpush1.xpose.msra.mxu0 0.0
    %500 = vmatprep.subr.mxu0 0.0
    %501 = vmatpush1.xpose.msra.mxu0 0.0
    %502 = vmatprep.subr.mxu0 0.0
    %503 = vmatpush1.xpose.msra.mxu0 0.0
    %504 = vmatprep.subr.mxu0 0.0
    %505 = vmatpush1.xpose.msra.mxu0 0.0
    %506 = vmatprep.subr.mxu0 0.0
    %507 = vmatpush1.xpose.msra.mxu0 0.0
    %508 = vmatprep.subr.mxu0 0.0
    %509 = vmatpush1.xpose.msra.mxu0 0.0
    %510 = vmatprep.mubr.f32.mxu0 0.0
    %511 = vmatmul.mubr.f32.gmra.mrb[0].mxu0 %v441
    %v512 = vpop.f32.mrb[0].mxu0
    %v513 = vadd.f32 0.0, %v512
    %v514 = vpop.f32.mrb[0].mxu0
    %515 = vdwg.mxu0
    %v516 = vlaneseq
    %v517 = vshrl.u32 %v516, 7
    %v518 = vsub.s32 0, %v517
    %v519 = vrot.slane %v434, %v518
    %520 = vrot.lane.b32.xlu0 %v519, 32
    %v521 = vpop.permute.xlu0 %520
    %v522 = vsel %vm53, %v521, 0
    %v525 = vsel %vm53, %v132, 0
    %527 = vmatprep.subr.mxu0 0.0
    %528 = vmatpush1.xpose.msra.mxu0 %v525
    %529 = vmatprep.subr.mxu0 0.0
    %530 = vmatpush1.xpose.msra.mxu0 0.0
    %531 = vmatprep.subr.mxu0 0.0
    %532 = vmatpush1.xpose.msra.mxu0 0.0
    %533 = vmatprep.subr.mxu0 0.0
    %534 = vmatpush1.xpose.msra.mxu0 0.0
    %535 = vmatprep.subr.mxu0 0.0
    %536 = vmatpush1.xpose.msra.mxu0 0.0
    %537 = vmatprep.subr.mxu0 0.0
    %538 = vmatpush1.xpose.msra.mxu0 0.0
    %539 = vmatprep.subr.mxu0 0.0
    %540 = vmatpush1.xpose.msra.mxu0 0.0
    %541 = vmatprep.subr.mxu0 0.0
    %542 = vmatpush1.xpose.msra.mxu0 0.0
    %543 = vmatprep.subr.mxu0 0.0
    %544 = vmatpush1.xpose.msra.mxu0 0.0
    %545 = vmatprep.subr.mxu0 0.0
    %546 = vmatpush1.xpose.msra.mxu0 0.0
    %547 = vmatprep.subr.mxu0 0.0
    %548 = vmatpush1.xpose.msra.mxu0 0.0
    %549 = vmatprep.subr.mxu0 0.0
    %550 = vmatpush1.xpose.msra.mxu0 0.0
    %551 = vmatprep.subr.mxu0 0.0
    %552 = vmatpush1.xpose.msra.mxu0 0.0
    %553 = vmatprep.subr.mxu0 0.0
    %554 = vmatpush1.xpose.msra.mxu0 0.0
    %555 = vmatprep.subr.mxu0 0.0
    %556 = vmatpush1.xpose.msra.mxu0 0.0
    %557 = vmatprep.subr.mxu0 0.0
    %558 = vmatpush1.xpose.msra.mxu0 0.0
    %559 = vmatprep.subr.mxu0 0.0
    %560 = vmatpush1.xpose.msra.mxu0 0.0
    %561 = vmatprep.subr.mxu0 0.0
    %562 = vmatpush1.xpose.msra.mxu0 0.0
    %563 = vmatprep.subr.mxu0 0.0
    %564 = vmatpush1.xpose.msra.mxu0 0.0
    %565 = vmatprep.subr.mxu0 0.0
    %566 = vmatpush1.xpose.msra.mxu0 0.0
    %567 = vmatprep.subr.mxu0 0.0
    %568 = vmatpush1.xpose.msra.mxu0 0.0
    %569 = vmatprep.subr.mxu0 0.0
    %570 = vmatpush1.xpose.msra.mxu0 0.0
    %571 = vmatprep.subr.mxu0 0.0
    %572 = vmatpush1.xpose.msra.mxu0 0.0
    %573 = vmatprep.subr.mxu0 0.0
    %574 = vmatpush1.xpose.msra.mxu0 0.0
    %575 = vmatprep.subr.mxu0 0.0
    %576 = vmatpush1.xpose.msra.mxu0 0.0
    %577 = vmatprep.subr.mxu0 0.0
    %578 = vmatpush1.xpose.msra.mxu0 0.0
    %579 = vmatprep.subr.mxu0 0.0
    %580 = vmatpush1.xpose.msra.mxu0 0.0
    %581 = vmatprep.subr.mxu0 0.0
    %582 = vmatpush1.xpose.msra.mxu0 0.0
    %583 = vmatprep.subr.mxu0 0.0
    %584 = vmatpush1.xpose.msra.mxu0 0.0
    %585 = vmatprep.subr.mxu0 0.0
    %586 = vmatpush1.xpose.msra.mxu0 0.0
    %587 = vmatprep.subr.mxu0 0.0
    %588 = vmatpush1.xpose.msra.mxu0 0.0
    %589 = vmatprep.subr.mxu0 0.0
    %590 = vmatpush1.xpose.msra.mxu0 0.0
    %591 = vmatprep.mubr.f32.mxu0 0.0
    %592 = vmatmul.mubr.f32.gmra.mrb[0].mxu0 %v522
    %v593 = vpop.f32.mrb[0].mxu0
    %v594 = vadd.f32 0.0, %v593
    %v595 = vpop.f32.mrb[0].mxu0
    %596 = vdwg.mxu0
    %vm597 = vcmp.gt.f32.partialorder %v304, 0.5
    %v600 = vrot.slane %v594, 7
    %vm601 = vcmask 1041409
    %v602 = vsel %vm601, %v600, %v513
    %v604 = vsel %vm597, -1e+30, %v602
    %vm605 = vcmask 58368
    %v606 = vsel %vm605, %v604, -inf
    %607 = vmax.xlane.f32.xlu0 %v606
    %v608 = vpop.xlane.xlu0 %607
    %v609 = vsub.f32 %v604, %v608
    %v610 = vmul.f32 %v609, 1.442695
    %v611 = vpow.pop %v610
    %v612 = vsel %vm605, %v611, 0.0
    %613 = vadd.xlane.f32.xlu0 %v612
    %v614 = vpop.xlane.xlu0 %613
    %v615 = vrcp.pop %v614
    %v616 = vmul.f32 %v611, %v615
    %vm617 = vcmp.eq.s32.totalorder %v308, 0
    %v620 = vunpack.c.l.s4 1966171168
    %v621 = vunpack.c.0.s8 %v620
    %v622 = vlaneseq
    %v623 = vshrl.u32 %v622, 7
    %v624 = vsub.s32 %v621, %v623
    %v625 = vrot.slane %v616, %v624
    %v626 = vcombine.high %v625, %v625
    %v628 = vunpack.c.l.s4 1966171168
    %v629 = vunpack.c.0.s8 %v628
    %v630 = vlaneseq
    %v631 = vshrl.u32 %v630, 7
    %v632 = vsub.s32 %v629, %v631
    %v633 = vrot.slane %v625, %v632
    %v635 = vunpack.c.l.s4 1966171168
    %v636 = vunpack.c.0.s8 %v635
    %v637 = vlaneseq
    %v638 = vshrl.u32 %v637, 7
    %v639 = vsub.s32 %v636, %v638
    %v640 = vrot.slane %v626, %v639
    %v641 = vlaneseq
    %v642 = vshrl.u32 %v641, 7
    %v643 = vsub.s32 0, %v642
    %v644 = vrot.slane %v633, %v643
    %v645 = vlaneseq
    %v646 = vshrl.u32 %v645, 7
    %v647 = vsub.s32 0, %v646
    %v648 = vrot.slane %v640, %v647
    %v651 = vsel %vm617, %v644, 0.0
    %v652 = vsel %vm617, %v648, 0.0
    %vm653 = vcmp.ge.f32.partialorder %v604, %v608
    %v654 = vsel %vm653, %v306, 8
    %v655 = vsel %vm605, %v654, 2147483647
    %v656 = vand.u32 %v655, 65535
    %v657 = vshra.s32 %v655, 16
    %v658 = vcvt.s32.f32 %v656
    %v659 = vcvt.s32.f32 %v657
    %660 = vmin.xlane.f32.xlu0 %v659
    %v661 = vpop.xlane.xlu0 %660
    %vm662 = vcmp.eq.f32.partialorder %v659, %v661
    %v663 = vsel %vm662, %v658, inf
    %664 = vmin.xlane.f32.xlu0 %v663
    %v665 = vpop.xlane.xlu0 %664
    %v666 = vcvt.f32.s32 %v665
    %v667 = vcvt.f32.s32 %v661
    %v668 = vshll.u32 %v667, 16
    %v669 = vadd.s32 %v668, %v666
    %vm670 = vcmp.eq.s32.totalorder %v306, %v669
    %v671 = vsel %vm670, 1, 0
    %v672 = vcvt.s32.f32 %v671
    %v675 = vunpack.c.l.s4 1966171168
    %v676 = vunpack.c.0.s8 %v675
    %v677 = vlaneseq
    %v678 = vshrl.u32 %v677, 7
    %v679 = vsub.s32 %v676, %v678
    %v680 = vrot.slane %v672, %v679
    %v681 = vcombine.high %v680, %v680
    %v683 = vunpack.c.l.s4 1966171168
    %v684 = vunpack.c.0.s8 %v683
    %v685 = vlaneseq
    %v686 = vshrl.u32 %v685, 7
    %v687 = vsub.s32 %v684, %v686
    %v688 = vrot.slane %v680, %v687
    %v690 = vunpack.c.l.s4 1966171168
    %v691 = vunpack.c.0.s8 %v690
    %v692 = vlaneseq
    %v693 = vshrl.u32 %v692, 7
    %v694 = vsub.s32 %v691, %v693
    %v695 = vrot.slane %v681, %v694
    %vm696 = vcmask 64512
    %v697 = vsel %vm696, %v688, 0
    %699 = vmatprep.subr.mxu0 0.0
    %700 = vmatpush1.msra.mxu0 %v206
    %701 = vmatprep.subr.mxu0 0.0
    %702 = vmatpush1.msra.mxu0 0.0
    %703 = vmatprep.subr.mxu0 0.0
    %704 = vmatpush1.msra.mxu0 0.0
    %705 = vmatprep.subr.mxu0 0.0
    %706 = vmatpush1.msra.mxu0 0.0
    %707 = vmatprep.subr.mxu0 0.0
    %708 = vmatpush1.msra.mxu0 0.0
    %709 = vmatprep.subr.mxu0 0.0
    %710 = vmatpush1.msra.mxu0 0.0
    %711 = vmatprep.subr.mxu0 0.0
    %712 = vmatpush1.msra.mxu0 0.0
    %713 = vmatprep.subr.mxu0 0.0
    %714 = vmatpush1.msra.mxu0 0.0
    %715 = vmatprep.subr.mxu0 0.0
    %716 = vmatpush1.msra.mxu0 0.0
    %717 = vmatprep.subr.mxu0 0.0
    %718 = vmatpush1.msra.mxu0 0.0
    %719 = vmatprep.subr.mxu0 0.0
    %720 = vmatpush1.msra.mxu0 0.0
    %721 = vmatprep.subr.mxu0 0.0
    %722 = vmatpush1.msra.mxu0 0.0
    %723 = vmatprep.subr.mxu0 0.0
    %724 = vmatpush1.msra.mxu0 0.0
    %725 = vmatprep.subr.mxu0 0.0
    %726 = vmatpush1.msra.mxu0 0.0
    %727 = vmatprep.subr.mxu0 0.0
    %728 = vmatpush1.msra.mxu0 0.0
    %729 = vmatprep.subr.mxu0 0.0
    %730 = vmatpush1.msra.mxu0 0.0
    %731 = vmatprep.subr.mxu0 0.0
    %732 = vmatpush1.msra.mxu0 0.0
    %733 = vmatprep.subr.mxu0 0.0
    %734 = vmatpush1.msra.mxu0 0.0
    %735 = vmatprep.subr.mxu0 0.0
    %736 = vmatpush1.msra.mxu0 0.0
    %737 = vmatprep.subr.mxu0 0.0
    %738 = vmatpush1.msra.mxu0 0.0
    %739 = vmatprep.subr.mxu0 0.0
    %740 = vmatpush1.msra.mxu0 0.0
    %741 = vmatprep.subr.mxu0 0.0
    %742 = vmatpush1.msra.mxu0 0.0
    %743 = vmatprep.subr.mxu0 0.0
    %744 = vmatpush1.msra.mxu0 0.0
    %745 = vmatprep.subr.mxu0 0.0
    %746 = vmatpush1.msra.mxu0 0.0
    %747 = vmatprep.subr.mxu0 0.0
    %748 = vmatpush1.msra.mxu0 0.0
    %749 = vmatprep.subr.mxu0 0.0
    %750 = vmatpush1.msra.mxu0 0.0
    %751 = vmatprep.subr.mxu0 0.0
    %752 = vmatpush1.msra.mxu0 0.0
    %753 = vmatprep.subr.mxu0 0.0
    %754 = vmatpush1.msra.mxu0 0.0
    %755 = vmatprep.subr.mxu0 0.0
    %756 = vmatpush1.msra.mxu0 0.0
    %757 = vmatprep.subr.mxu0 0.0
    %758 = vmatpush1.msra.mxu0 0.0
    %759 = vmatprep.subr.mxu0 0.0
    %760 = vmatpush1.msra.mxu0 0.0
    %761 = vmatprep.subr.mxu0 0.0
    %762 = vmatpush1.msra.mxu0 0.0
    %763 = vmatprep.mubr.f32.mxu0 0.0
    %764 = vmatmul.mubr.f32.gmra.mrb[0].mxu0 %v697
    %v765 = vpop.f32.mrb[0].mxu0
    %v766 = vadd.f32 0.0, %v765
    %v767 = vpop.f32.mrb[0].mxu0
    %768 = vdwg.mxu0
    %v769 = vsel %vm696, %v695, 0
    %771 = vmatprep.subr.mxu0 0.0
    %772 = vmatpush1.msra.mxu0 %v211
    %773 = vmatprep.subr.mxu0 0.0
    %774 = vmatpush1.msra.mxu0 0.0
    %775 = vmatprep.subr.mxu0 0.0
    %776 = vmatpush1.msra.mxu0 0.0
    %777 = vmatprep.subr.mxu0 0.0
    %778 = vmatpush1.msra.mxu0 0.0
    %779 = vmatprep.subr.mxu0 0.0
    %780 = vmatpush1.msra.mxu0 0.0
    %781 = vmatprep.subr.mxu0 0.0
    %782 = vmatpush1.msra.mxu0 0.0
    %783 = vmatprep.subr.mxu0 0.0
    %784 = vmatpush1.msra.mxu0 0.0
    %785 = vmatprep.subr.mxu0 0.0
    %786 = vmatpush1.msra.mxu0 0.0
    %787 = vmatprep.subr.mxu0 0.0
    %788 = vmatpush1.msra.mxu0 0.0
    %789 = vmatprep.subr.mxu0 0.0
    %790 = vmatpush1.msra.mxu0 0.0
    %791 = vmatprep.subr.mxu0 0.0
    %792 = vmatpush1.msra.mxu0 0.0
    %793 = vmatprep.subr.mxu0 0.0
    %794 = vmatpush1.msra.mxu0 0.0
    %795 = vmatprep.subr.mxu0 0.0
    %796 = vmatpush1.msra.mxu0 0.0
    %797 = vmatprep.subr.mxu0 0.0
    %798 = vmatpush1.msra.mxu0 0.0
    %799 = vmatprep.subr.mxu0 0.0
    %800 = vmatpush1.msra.mxu0 0.0
    %801 = vmatprep.subr.mxu0 0.0
    %802 = vmatpush1.msra.mxu0 0.0
    %803 = vmatprep.subr.mxu0 0.0
    %804 = vmatpush1.msra.mxu0 0.0
    %805 = vmatprep.subr.mxu0 0.0
    %806 = vmatpush1.msra.mxu0 0.0
    %807 = vmatprep.subr.mxu0 0.0
    %808 = vmatpush1.msra.mxu0 0.0
    %809 = vmatprep.subr.mxu0 0.0
    %810 = vmatpush1.msra.mxu0 0.0
    %811 = vmatprep.subr.mxu0 0.0
    %812 = vmatpush1.msra.mxu0 0.0
    %813 = vmatprep.subr.mxu0 0.0
    %814 = vmatpush1.msra.mxu0 0.0
    %815 = vmatprep.subr.mxu0 0.0
    %816 = vmatpush1.msra.mxu0 0.0
    %817 = vmatprep.subr.mxu0 0.0
    %818 = vmatpush1.msra.mxu0 0.0
    %819 = vmatprep.subr.mxu0 0.0
    %820 = vmatpush1.msra.mxu0 0.0
    %821 = vmatprep.subr.mxu0 0.0
    %822 = vmatpush1.msra.mxu0 0.0
    %823 = vmatprep.subr.mxu0 0.0
    %824 = vmatpush1.msra.mxu0 0.0
    %825 = vmatprep.subr.mxu0 0.0
    %826 = vmatpush1.msra.mxu0 0.0
    %827 = vmatprep.subr.mxu0 0.0
    %828 = vmatpush1.msra.mxu0 0.0
    %829 = vmatprep.subr.mxu0 0.0
    %830 = vmatpush1.msra.mxu0 0.0
    %831 = vmatprep.subr.mxu0 0.0
    %832 = vmatpush1.msra.mxu0 0.0
    %833 = vmatprep.subr.mxu0 0.0
    %834 = vmatpush1.msra.mxu0 0.0
    %835 = vmatprep.mubr.f32.mxu0 0.0
    %836 = vmatmul.mubr.f32.gmra.mrb[0].mxu0 %v769
    %v837 = vpop.f32.mrb[0].mxu0
    %v838 = vadd.f32 0.0, %v837
    %v839 = vpop.f32.mrb[0].mxu0
    %840 = vdwg.mxu0
    %v841 = vmax.f32 %v304, %v672
    %842 = vrot.lane.b32.xlu0 %v411, 32
    %v843 = vpop.permute.xlu0 %842
    %v844 = vsel %vm53, %v843, 0
    %846 = vmatprep.subr.mxu0 0.0
    %847 = vmatpush1.msra.mxu0 %v214
    %848 = vmatprep.subr.mxu0 0.0
    %849 = vmatpush1.msra.mxu0 %v215
    %850 = vmatprep.subr.mxu0 0.0
    %851 = vmatpush1.msra.mxu0 %v216
    %852 = vmatprep.subr.mxu0 0.0
    %853 = vmatpush1.msra.mxu0 %v217
    %854 = vmatprep.subr.mxu0 0.0
    %855 = vmatpush1.msra.mxu0 0.0
    %856 = vmatprep.subr.mxu0 0.0
    %857 = vmatpush1.msra.mxu0 0.0
    %858 = vmatprep.subr.mxu0 0.0
    %859 = vmatpush1.msra.mxu0 0.0
    %860 = vmatprep.subr.mxu0 0.0
    %861 = vmatpush1.msra.mxu0 0.0
    %862 = vmatprep.subr.mxu0 0.0
    %863 = vmatpush1.msra.mxu0 0.0
    %864 = vmatprep.subr.mxu0 0.0
    %865 = vmatpush1.msra.mxu0 0.0
    %866 = vmatprep.subr.mxu0 0.0
    %867 = vmatpush1.msra.mxu0 0.0
    %868 = vmatprep.subr.mxu0 0.0
    %869 = vmatpush1.msra.mxu0 0.0
    %870 = vmatprep.subr.mxu0 0.0
    %871 = vmatpush1.msra.mxu0 0.0
    %872 = vmatprep.subr.mxu0 0.0
    %873 = vmatpush1.msra.mxu0 0.0
    %874 = vmatprep.subr.mxu0 0.0
    %875 = vmatpush1.msra.mxu0 0.0
    %876 = vmatprep.subr.mxu0 0.0
    %877 = vmatpush1.msra.mxu0 0.0
    %878 = vmatprep.subr.mxu0 0.0
    %879 = vmatpush1.msra.mxu0 0.0
    %880 = vmatprep.subr.mxu0 0.0
    %881 = vmatpush1.msra.mxu0 0.0
    %882 = vmatprep.subr.mxu0 0.0
    %883 = vmatpush1.msra.mxu0 0.0
    %884 = vmatprep.subr.mxu0 0.0
    %885 = vmatpush1.msra.mxu0 0.0
    %886 = vmatprep.subr.mxu0 0.0
    %887 = vmatpush1.msra.mxu0 0.0
    %888 = vmatprep.subr.mxu0 0.0
    %889 = vmatpush1.msra.mxu0 0.0
    %890 = vmatprep.subr.mxu0 0.0
    %891 = vmatpush1.msra.mxu0 0.0
    %892 = vmatprep.subr.mxu0 0.0
    %893 = vmatpush1.msra.mxu0 0.0
    %894 = vmatprep.subr.mxu0 0.0
    %895 = vmatpush1.msra.mxu0 0.0
    %896 = vmatprep.subr.mxu0 0.0
    %897 = vmatpush1.msra.mxu0 0.0
    %898 = vmatprep.subr.mxu0 0.0
    %899 = vmatpush1.msra.mxu0 0.0
    %900 = vmatprep.subr.mxu0 0.0
    %901 = vmatpush1.msra.mxu0 0.0
    %902 = vmatprep.subr.mxu0 0.0
    %903 = vmatpush1.msra.mxu0 0.0
    %904 = vmatprep.subr.mxu0 0.0
    %905 = vmatpush1.msra.mxu0 0.0
    %906 = vmatprep.subr.mxu0 0.0
    %907 = vmatpush1.msra.mxu0 0.0
    %908 = vmatprep.subr.mxu0 0.0
    %909 = vmatpush1.msra.mxu0 0.0
    %910 = vmatprep.mubr.f32.mxu0 0.0
    %911 = vmatmul.mubr.f32.gmra.mrb[0].mxu0 %v844
    %v912 = vpop.f32.mrb[0].mxu0
    %v913 = vadd.f32 0.0, %v912
    %v914 = vpop.f32.mrb[0].mxu0
    %915 = vdwg.mxu0
    %v917 = vrot.slane %v913, 1
    %v920 = vadd.f32 %v766, %v913
    %v921 = vadd.f32 %v838, %v917
    %v922 = vadd.f32 %v920, %v313
    %v923 = vadd.f32 %v921, %v313
    %v924 = vxor.u32 %v922, 2147483648
    %v925 = vxor.u32 %v923, 2147483648
    %v926 = vmul.f32 %v924, 1.442695
    %v927 = vpow.pop %v926
    %v928 = vmul.f32 %v925, 1.442695
    %v929 = vpow.pop %v928
    %v930 = vadd.f32 %v927, 1.0
    %v931 = vadd.f32 %v929, 1.0
    %v932 = vrcp.pop %v930
    %v933 = vmul.f32 1.0, %v932
    %v934 = vrcp.pop %v931
    %v935 = vmul.f32 1.0, %v934
    %v936 = vtanh.pop %v922
    %v937 = vtanh.pop %v923
    %v939 = vrot.slane %v405, 1
    %v942 = vmul.f32 %v933, %v405
    %v943 = vmul.f32 %v935, %v939
    %946 = vrot.lane.b32.xlu0 %v936, 64
    %v947 = vpop.permute.xlu0 %946
    %948 = vrot.lane.b32.xlu0 %v937, 64
    %v949 = vpop.permute.xlu0 %948
    %v952 = vmul.f32 %v933, %v947
    %v953 = vmul.f32 %v935, %v949
    %956 = vrot.lane.b32.xlu0 %v952, 32
    %v957 = vpop.permute.xlu0 %956
    %958 = vrot.lane.b32.xlu0 %v953, 32
    %v959 = vpop.permute.xlu0 %958
    %v962 = vadd.f32 %v942, %v957
    %v963 = vadd.f32 %v943, %v959
    %v964 = vtanh.pop %v962
    %v965 = vtanh.pop %v963
    %968 = vrot.lane.b32.xlu0 %v964, 64
    %v969 = vpop.permute.xlu0 %968
    %970 = vrot.lane.b32.xlu0 %v965, 64
    %v971 = vpop.permute.xlu0 %970
    %v974 = vmul.f32 %v933, %v969
    %v975 = vmul.f32 %v935, %v971
    %977 = vrot.lane.b32.xlu0 %v974, 32
    %v978 = vpop.permute.xlu0 %977
    %v979 = vsel %vm53, %v978, 0
    %981 = vmatprep.subr.mxu0 0.0
    %982 = vmatpush1.xpose.msra.mxu0 %v444
    %983 = vmatprep.subr.mxu0 0.0
    %984 = vmatpush1.xpose.msra.mxu0 0.0
    %985 = vmatprep.subr.mxu0 0.0
    %986 = vmatpush1.xpose.msra.mxu0 0.0
    %987 = vmatprep.subr.mxu0 0.0
    %988 = vmatpush1.xpose.msra.mxu0 0.0
    %989 = vmatprep.subr.mxu0 0.0
    %990 = vmatpush1.xpose.msra.mxu0 0.0
    %991 = vmatprep.subr.mxu0 0.0
    %992 = vmatpush1.xpose.msra.mxu0 0.0
    %993 = vmatprep.subr.mxu0 0.0
    %994 = vmatpush1.xpose.msra.mxu0 0.0
    %995 = vmatprep.subr.mxu0 0.0
    %996 = vmatpush1.xpose.msra.mxu0 0.0
    %997 = vmatprep.subr.mxu0 0.0
    %998 = vmatpush1.xpose.msra.mxu0 0.0
    %999 = vmatprep.subr.mxu0 0.0
    %1000 = vmatpush1.xpose.msra.mxu0 0.0
    %1001 = vmatprep.subr.mxu0 0.0
    %1002 = vmatpush1.xpose.msra.mxu0 0.0
    %1003 = vmatprep.subr.mxu0 0.0
    %1004 = vmatpush1.xpose.msra.mxu0 0.0
    %1005 = vmatprep.subr.mxu0 0.0
    %1006 = vmatpush1.xpose.msra.mxu0 0.0
    %1007 = vmatprep.subr.mxu0 0.0
    %1008 = vmatpush1.xpose.msra.mxu0 0.0
    %1009 = vmatprep.subr.mxu0 0.0
    %1010 = vmatpush1.xpose.msra.mxu0 0.0
    %1011 = vmatprep.subr.mxu0 0.0
    %1012 = vmatpush1.xpose.msra.mxu0 0.0
    %1013 = vmatprep.subr.mxu0 0.0
    %1014 = vmatpush1.xpose.msra.mxu0 0.0
    %1015 = vmatprep.subr.mxu0 0.0
    %1016 = vmatpush1.xpose.msra.mxu0 0.0
    %1017 = vmatprep.subr.mxu0 0.0
    %1018 = vmatpush1.xpose.msra.mxu0 0.0
    %1019 = vmatprep.subr.mxu0 0.0
    %1020 = vmatpush1.xpose.msra.mxu0 0.0
    %1021 = vmatprep.subr.mxu0 0.0
    %1022 = vmatpush1.xpose.msra.mxu0 0.0
    %1023 = vmatprep.subr.mxu0 0.0
    %1024 = vmatpush1.xpose.msra.mxu0 0.0
    %1025 = vmatprep.subr.mxu0 0.0
    %1026 = vmatpush1.xpose.msra.mxu0 0.0
    %1027 = vmatprep.subr.mxu0 0.0
    %1028 = vmatpush1.xpose.msra.mxu0 0.0
    %1029 = vmatprep.subr.mxu0 0.0
    %1030 = vmatpush1.xpose.msra.mxu0 0.0
    %1031 = vmatprep.subr.mxu0 0.0
    %1032 = vmatpush1.xpose.msra.mxu0 0.0
    %1033 = vmatprep.subr.mxu0 0.0
    %1034 = vmatpush1.xpose.msra.mxu0 0.0
    %1035 = vmatprep.subr.mxu0 0.0
    %1036 = vmatpush1.xpose.msra.mxu0 0.0
    %1037 = vmatprep.subr.mxu0 0.0
    %1038 = vmatpush1.xpose.msra.mxu0 0.0
    %1039 = vmatprep.subr.mxu0 0.0
    %1040 = vmatpush1.xpose.msra.mxu0 0.0
    %1041 = vmatprep.subr.mxu0 0.0
    %1042 = vmatpush1.xpose.msra.mxu0 0.0
    %1043 = vmatprep.subr.mxu0 0.0
    %1044 = vmatpush1.xpose.msra.mxu0 0.0
    %1045 = vmatprep.mubr.f32.mxu0 0.0
    %1046 = vmatmul.mubr.f32.gmra.mrb[0].mxu0 %v979
    %v1047 = vpop.f32.mrb[0].mxu0
    %v1048 = vadd.f32 0.0, %v1047
    %v1049 = vpop.f32.mrb[0].mxu0
    %1050 = vdwg.mxu0
    %1052 = vrot.lane.b32.xlu0 %v975, 32
    %v1053 = vpop.permute.xlu0 %1052
    %v1054 = vsel %vm53, %v1053, 0
    %1056 = vmatprep.subr.mxu0 0.0
    %1057 = vmatpush1.xpose.msra.mxu0 %v525
    %1058 = vmatprep.subr.mxu0 0.0
    %1059 = vmatpush1.xpose.msra.mxu0 0.0
    %1060 = vmatprep.subr.mxu0 0.0
    %1061 = vmatpush1.xpose.msra.mxu0 0.0
    %1062 = vmatprep.subr.mxu0 0.0
    %1063 = vmatpush1.xpose.msra.mxu0 0.0
    %1064 = vmatprep.subr.mxu0 0.0
    %1065 = vmatpush1.xpose.msra.mxu0 0.0
    %1066 = vmatprep.subr.mxu0 0.0
    %1067 = vmatpush1.xpose.msra.mxu0 0.0
    %1068 = vmatprep.subr.mxu0 0.0
    %1069 = vmatpush1.xpose.msra.mxu0 0.0
    %1070 = vmatprep.subr.mxu0 0.0
    %1071 = vmatpush1.xpose.msra.mxu0 0.0
    %1072 = vmatprep.subr.mxu0 0.0
    %1073 = vmatpush1.xpose.msra.mxu0 0.0
    %1074 = vmatprep.subr.mxu0 0.0
    %1075 = vmatpush1.xpose.msra.mxu0 0.0
    %1076 = vmatprep.subr.mxu0 0.0
    %1077 = vmatpush1.xpose.msra.mxu0 0.0
    %1078 = vmatprep.subr.mxu0 0.0
    %1079 = vmatpush1.xpose.msra.mxu0 0.0
    %1080 = vmatprep.subr.mxu0 0.0
    %1081 = vmatpush1.xpose.msra.mxu0 0.0
    %1082 = vmatprep.subr.mxu0 0.0
    %1083 = vmatpush1.xpose.msra.mxu0 0.0
    %1084 = vmatprep.subr.mxu0 0.0
    %1085 = vmatpush1.xpose.msra.mxu0 0.0
    %1086 = vmatprep.subr.mxu0 0.0
    %1087 = vmatpush1.xpose.msra.mxu0 0.0
    %1088 = vmatprep.subr.mxu0 0.0
    %1089 = vmatpush1.xpose.msra.mxu0 0.0
    %1090 = vmatprep.subr.mxu0 0.0
    %1091 = vmatpush1.xpose.msra.mxu0 0.0
    %1092 = vmatprep.subr.mxu0 0.0
    %1093 = vmatpush1.xpose.msra.mxu0 0.0
    %1094 = vmatprep.subr.mxu0 0.0
    %1095 = vmatpush1.xpose.msra.mxu0 0.0
    %1096 = vmatprep.subr.mxu0 0.0
    %1097 = vmatpush1.xpose.msra.mxu0 0.0
    %1098 = vmatprep.subr.mxu0 0.0
    %1099 = vmatpush1.xpose.msra.mxu0 0.0
    %1100 = vmatprep.subr.mxu0 0.0
    %1101 = vmatpush1.xpose.msra.mxu0 0.0
    %1102 = vmatprep.subr.mxu0 0.0
    %1103 = vmatpush1.xpose.msra.mxu0 0.0
    %1104 = vmatprep.subr.mxu0 0.0
    %1105 = vmatpush1.xpose.msra.mxu0 0.0
    %1106 = vmatprep.subr.mxu0 0.0
    %1107 = vmatpush1.xpose.msra.mxu0 0.0
    %1108 = vmatprep.subr.mxu0 0.0
    %1109 = vmatpush1.xpose.msra.mxu0 0.0
    %1110 = vmatprep.subr.mxu0 0.0
    %1111 = vmatpush1.xpose.msra.mxu0 0.0
    %1112 = vmatprep.subr.mxu0 0.0
    %1113 = vmatpush1.xpose.msra.mxu0 0.0
    %1114 = vmatprep.subr.mxu0 0.0
    %1115 = vmatpush1.xpose.msra.mxu0 0.0
    %1116 = vmatprep.subr.mxu0 0.0
    %1117 = vmatpush1.xpose.msra.mxu0 0.0
    %1118 = vmatprep.subr.mxu0 0.0
    %1119 = vmatpush1.xpose.msra.mxu0 0.0
    %1120 = vmatprep.mubr.f32.mxu0 0.0
    %1121 = vmatmul.mubr.f32.gmra.mrb[0].mxu0 %v1054
    %v1122 = vpop.f32.mrb[0].mxu0
    %v1123 = vadd.f32 0.0, %v1122
    %v1124 = vpop.f32.mrb[0].mxu0
    %1125 = vdwg.mxu0
    %vm1126 = vcmp.gt.f32.partialorder %v841, 0.5
    %v1129 = vrot.slane %v1123, 7
    %v1130 = vsel %vm601, %v1129, %v1048
    %v1132 = vsel %vm1126, -1e+30, %v1130
    %v1133 = vsel %vm605, %v1132, -inf
    %1134 = vmax.xlane.f32.xlu0 %v1133
    %v1135 = vpop.xlane.xlu0 %1134
    %v1136 = vsub.f32 %v1132, %v1135
    %v1137 = vmul.f32 %v1136, 1.442695
    %v1138 = vpow.pop %v1137
    %v1139 = vsel %vm605, %v1138, 0.0
    %1140 = vadd.xlane.f32.xlu0 %v1139
    %v1141 = vpop.xlane.xlu0 %1140
    %v1142 = vrcp.pop %v1141
    %v1143 = vmul.f32 %v1138, %v1142
    %vm1144 = vcmp.eq.s32.totalorder %v308, 1
    %v1147 = vunpack.c.l.s4 1966171168
    %v1148 = vunpack.c.0.s8 %v1147
    %v1149 = vlaneseq
    %v1150 = vshrl.u32 %v1149, 7
    %v1151 = vsub.s32 %v1148, %v1150
    %v1152 = vrot.slane %v1143, %v1151
    %v1153 = vcombine.high %v1152, %v1152
    %v1155 = vunpack.c.l.s4 1966171168
    %v1156 = vunpack.c.0.s8 %v1155
    %v1157 = vlaneseq
    %v1158 = vshrl.u32 %v1157, 7
    %v1159 = vsub.s32 %v1156, %v1158
    %v1160 = vrot.slane %v1152, %v1159
    %v1162 = vunpack.c.l.s4 1966171168
    %v1163 = vunpack.c.0.s8 %v1162
    %v1164 = vlaneseq
    %v1165 = vshrl.u32 %v1164, 7
    %v1166 = vsub.s32 %v1163, %v1165
    %v1167 = vrot.slane %v1153, %v1166
    %v1168 = vlaneseq
    %v1169 = vshrl.u32 %v1168, 7
    %v1170 = vsub.s32 0, %v1169
    %v1171 = vrot.slane %v1160, %v1170
    %v1172 = vlaneseq
    %v1173 = vshrl.u32 %v1172, 7
    %v1174 = vsub.s32 0, %v1173
    %v1175 = vrot.slane %v1167, %v1174
    %v1178 = vsel %vm1144, %v1171, %v651
    %v1179 = vsel %vm1144, %v1175, %v652
    %vm1180 = vcmp.ge.f32.partialorder %v1132, %v1135
    %v1181 = vsel %vm1180, %v306, 8
    %v1182 = vsel %vm605, %v1181, 2147483647
    %v1183 = vand.u32 %v1182, 65535
    %v1184 = vshra.s32 %v1182, 16
    %v1185 = vcvt.s32.f32 %v1183
    %v1186 = vcvt.s32.f32 %v1184
    %1187 = vmin.xlane.f32.xlu0 %v1186
    %v1188 = vpop.xlane.xlu0 %1187
    %vm1189 = vcmp.eq.f32.partialorder %v1186, %v1188
    %v1190 = vsel %vm1189, %v1185, inf
    %1191 = vmin.xlane.f32.xlu0 %v1190
    %v1192 = vpop.xlane.xlu0 %1191
    %v1193 = vcvt.f32.s32 %v1192
    %v1194 = vcvt.f32.s32 %v1188
    %v1195 = vshll.u32 %v1194, 16
    %v1196 = vadd.s32 %v1195, %v1193
    %vm1197 = vcmp.eq.s32.totalorder %v306, %v1196
    %v1198 = vsel %vm1197, 1, 0
    %v1199 = vcvt.s32.f32 %v1198
    %v1202 = vunpack.c.l.s4 1966171168
    %v1203 = vunpack.c.0.s8 %v1202
    %v1204 = vlaneseq
    %v1205 = vshrl.u32 %v1204, 7
    %v1206 = vsub.s32 %v1203, %v1205
    %v1207 = vrot.slane %v1199, %v1206
    %v1208 = vcombine.high %v1207, %v1207
    %v1210 = vunpack.c.l.s4 1966171168
    %v1211 = vunpack.c.0.s8 %v1210
    %v1212 = vlaneseq
    %v1213 = vshrl.u32 %v1212, 7
    %v1214 = vsub.s32 %v1211, %v1213
    %v1215 = vrot.slane %v1207, %v1214
    %v1217 = vunpack.c.l.s4 1966171168
    %v1218 = vunpack.c.0.s8 %v1217
    %v1219 = vlaneseq
    %v1220 = vshrl.u32 %v1219, 7
    %v1221 = vsub.s32 %v1218, %v1220
    %v1222 = vrot.slane %v1208, %v1221
    %v1223 = vsel %vm696, %v1215, 0
    %1225 = vmatprep.subr.mxu0 0.0
    %1226 = vmatpush1.msra.mxu0 %v206
    %1227 = vmatprep.subr.mxu0 0.0
    %1228 = vmatpush1.msra.mxu0 0.0
    %1229 = vmatprep.subr.mxu0 0.0
    %1230 = vmatpush1.msra.mxu0 0.0
    %1231 = vmatprep.subr.mxu0 0.0
    %1232 = vmatpush1.msra.mxu0 0.0
    %1233 = vmatprep.subr.mxu0 0.0
    %1234 = vmatpush1.msra.mxu0 0.0
    %1235 = vmatprep.subr.mxu0 0.0
    %1236 = vmatpush1.msra.mxu0 0.0
    %1237 = vmatprep.subr.mxu0 0.0
    %1238 = vmatpush1.msra.mxu0 0.0
    %1239 = vmatprep.subr.mxu0 0.0
    %1240 = vmatpush1.msra.mxu0 0.0
    %1241 = vmatprep.subr.mxu0 0.0
    %1242 = vmatpush1.msra.mxu0 0.0
    %1243 = vmatprep.subr.mxu0 0.0
    %1244 = vmatpush1.msra.mxu0 0.0
    %1245 = vmatprep.subr.mxu0 0.0
    %1246 = vmatpush1.msra.mxu0 0.0
    %1247 = vmatprep.subr.mxu0 0.0
    %1248 = vmatpush1.msra.mxu0 0.0
    %1249 = vmatprep.subr.mxu0 0.0
    %1250 = vmatpush1.msra.mxu0 0.0
    %1251 = vmatprep.subr.mxu0 0.0
    %1252 = vmatpush1.msra.mxu0 0.0
    %1253 = vmatprep.subr.mxu0 0.0
    %1254 = vmatpush1.msra.mxu0 0.0
    %1255 = vmatprep.subr.mxu0 0.0
    %1256 = vmatpush1.msra.mxu0 0.0
    %1257 = vmatprep.subr.mxu0 0.0
    %1258 = vmatpush1.msra.mxu0 0.0
    %1259 = vmatprep.subr.mxu0 0.0
    %1260 = vmatpush1.msra.mxu0 0.0
    %1261 = vmatprep.subr.mxu0 0.0
    %1262 = vmatpush1.msra.mxu0 0.0
    %1263 = vmatprep.subr.mxu0 0.0
    %1264 = vmatpush1.msra.mxu0 0.0
    %1265 = vmatprep.subr.mxu0 0.0
    %1266 = vmatpush1.msra.mxu0 0.0
    %1267 = vmatprep.subr.mxu0 0.0
    %1268 = vmatpush1.msra.mxu0 0.0
    %1269 = vmatprep.subr.mxu0 0.0
    %1270 = vmatpush1.msra.mxu0 0.0
    %1271 = vmatprep.subr.mxu0 0.0
    %1272 = vmatpush1.msra.mxu0 0.0
    %1273 = vmatprep.subr.mxu0 0.0
    %1274 = vmatpush1.msra.mxu0 0.0
    %1275 = vmatprep.subr.mxu0 0.0
    %1276 = vmatpush1.msra.mxu0 0.0
    %1277 = vmatprep.subr.mxu0 0.0
    %1278 = vmatpush1.msra.mxu0 0.0
    %1279 = vmatprep.subr.mxu0 0.0
    %1280 = vmatpush1.msra.mxu0 0.0
    %1281 = vmatprep.subr.mxu0 0.0
    %1282 = vmatpush1.msra.mxu0 0.0
    %1283 = vmatprep.subr.mxu0 0.0
    %1284 = vmatpush1.msra.mxu0 0.0
    %1285 = vmatprep.subr.mxu0 0.0
    %1286 = vmatpush1.msra.mxu0 0.0
    %1287 = vmatprep.subr.mxu0 0.0
    %1288 = vmatpush1.msra.mxu0 0.0
    %1289 = vmatprep.mubr.f32.mxu0 0.0
    %1290 = vmatmul.mubr.f32.gmra.mrb[0].mxu0 %v1223
    %v1291 = vpop.f32.mrb[0].mxu0
    %v1292 = vadd.f32 0.0, %v1291
    %v1293 = vpop.f32.mrb[0].mxu0
    %1294 = vdwg.mxu0
    %v1295 = vsel %vm696, %v1222, 0
    %1297 = vmatprep.subr.mxu0 0.0
    %1298 = vmatpush1.msra.mxu0 %v211
    %1299 = vmatprep.subr.mxu0 0.0
    %1300 = vmatpush1.msra.mxu0 0.0
    %1301 = vmatprep.subr.mxu0 0.0
    %1302 = vmatpush1.msra.mxu0 0.0
    %1303 = vmatprep.subr.mxu0 0.0
    %1304 = vmatpush1.msra.mxu0 0.0
    %1305 = vmatprep.subr.mxu0 0.0
    %1306 = vmatpush1.msra.mxu0 0.0
    %1307 = vmatprep.subr.mxu0 0.0
    %1308 = vmatpush1.msra.mxu0 0.0
    %1309 = vmatprep.subr.mxu0 0.0
    %1310 = vmatpush1.msra.mxu0 0.0
    %1311 = vmatprep.subr.mxu0 0.0
    %1312 = vmatpush1.msra.mxu0 0.0
    %1313 = vmatprep.subr.mxu0 0.0
    %1314 = vmatpush1.msra.mxu0 0.0
    %1315 = vmatprep.subr.mxu0 0.0
    %1316 = vmatpush1.msra.mxu0 0.0
    %1317 = vmatprep.subr.mxu0 0.0
    %1318 = vmatpush1.msra.mxu0 0.0
    %1319 = vmatprep.subr.mxu0 0.0
    %1320 = vmatpush1.msra.mxu0 0.0
    %1321 = vmatprep.subr.mxu0 0.0
    %1322 = vmatpush1.msra.mxu0 0.0
    %1323 = vmatprep.subr.mxu0 0.0
    %1324 = vmatpush1.msra.mxu0 0.0
    %1325 = vmatprep.subr.mxu0 0.0
    %1326 = vmatpush1.msra.mxu0 0.0
    %1327 = vmatprep.subr.mxu0 0.0
    %1328 = vmatpush1.msra.mxu0 0.0
    %1329 = vmatprep.subr.mxu0 0.0
    %1330 = vmatpush1.msra.mxu0 0.0
    %1331 = vmatprep.subr.mxu0 0.0
    %1332 = vmatpush1.msra.mxu0 0.0
    %1333 = vmatprep.subr.mxu0 0.0
    %1334 = vmatpush1.msra.mxu0 0.0
    %1335 = vmatprep.subr.mxu0 0.0
    %1336 = vmatpush1.msra.mxu0 0.0
    %1337 = vmatprep.subr.mxu0 0.0
    %1338 = vmatpush1.msra.mxu0 0.0
    %1339 = vmatprep.subr.mxu0 0.0
    %1340 = vmatpush1.msra.mxu0 0.0
    %1341 = vmatprep.subr.mxu0 0.0
    %1342 = vmatpush1.msra.mxu0 0.0
    %1343 = vmatprep.subr.mxu0 0.0
    %1344 = vmatpush1.msra.mxu0 0.0
    %1345 = vmatprep.subr.mxu0 0.0
    %1346 = vmatpush1.msra.mxu0 0.0
    %1347 = vmatprep.subr.mxu0 0.0
    %1348 = vmatpush1.msra.mxu0 0.0
    %1349 = vmatprep.subr.mxu0 0.0
    %1350 = vmatpush1.msra.mxu0 0.0
    %1351 = vmatprep.subr.mxu0 0.0
    %1352 = vmatpush1.msra.mxu0 0.0
    %1353 = vmatprep.subr.mxu0 0.0
    %1354 = vmatpush1.msra.mxu0 0.0
    %1355 = vmatprep.subr.mxu0 0.0
    %1356 = vmatpush1.msra.mxu0 0.0
    %1357 = vmatprep.subr.mxu0 0.0
    %1358 = vmatpush1.msra.mxu0 0.0
    %1359 = vmatprep.subr.mxu0 0.0
    %1360 = vmatpush1.msra.mxu0 0.0
    %1361 = vmatprep.mubr.f32.mxu0 0.0
    %1362 = vmatmul.mubr.f32.gmra.mrb[0].mxu0 %v1295
    %v1363 = vpop.f32.mrb[0].mxu0
    %v1364 = vadd.f32 0.0, %v1363
    %v1365 = vpop.f32.mrb[0].mxu0
    %1366 = vdwg.mxu0
    %v1367 = vmax.f32 %v841, %v1199
    %v1368 = vrot.slane %v975, 7
    %v1369 = vsel %vm601, %v1368, %v974
    %1370 = vrot.lane.b32.xlu0 %v1369, 32
    %v1371 = vpop.permute.xlu0 %1370
    %v1372 = vsel %vm53, %v1371, 0
    %1374 = vmatprep.subr.mxu0 0.0
    %1375 = vmatpush1.msra.mxu0 %v214
    %1376 = vmatprep.subr.mxu0 0.0
    %1377 = vmatpush1.msra.mxu0 %v215
    %1378 = vmatprep.subr.mxu0 0.0
    %1379 = vmatpush1.msra.mxu0 %v216
    %1380 = vmatprep.subr.mxu0 0.0
    %1381 = vmatpush1.msra.mxu0 %v217
    %1382 = vmatprep.subr.mxu0 0.0
    %1383 = vmatpush1.msra.mxu0 0.0
    %1384 = vmatprep.subr.mxu0 0.0
    %1385 = vmatpush1.msra.mxu0 0.0
    %1386 = vmatprep.subr.mxu0 0.0
    %1387 = vmatpush1.msra.mxu0 0.0
    %1388 = vmatprep.subr.mxu0 0.0
    %1389 = vmatpush1.msra.mxu0 0.0
    %1390 = vmatprep.subr.mxu0 0.0
    %1391 = vmatpush1.msra.mxu0 0.0
    %1392 = vmatprep.subr.mxu0 0.0
    %1393 = vmatpush1.msra.mxu0 0.0
    %1394 = vmatprep.subr.mxu0 0.0
    %1395 = vmatpush1.msra.mxu0 0.0
    %1396 = vmatprep.subr.mxu0 0.0
    %1397 = vmatpush1.msra.mxu0 0.0
    %1398 = vmatprep.subr.mxu0 0.0
    %1399 = vmatpush1.msra.mxu0 0.0
    %1400 = vmatprep.subr.mxu0 0.0
    %1401 = vmatpush1.msra.mxu0 0.0
    %1402 = vmatprep.subr.mxu0 0.0
    %1403 = vmatpush1.msra.mxu0 0.0
    %1404 = vmatprep.subr.mxu0 0.0
    %1405 = vmatpush1.msra.mxu0 0.0
    %1406 = vmatprep.subr.mxu0 0.0
    %1407 = vmatpush1.msra.mxu0 0.0
    %1408 = vmatprep.subr.mxu0 0.0
    %1409 = vmatpush1.msra.mxu0 0.0
    %1410 = vmatprep.subr.mxu0 0.0
    %1411 = vmatpush1.msra.mxu0 0.0
    %1412 = vmatprep.subr.mxu0 0.0
    %1413 = vmatpush1.msra.mxu0 0.0
    %1414 = vmatprep.subr.mxu0 0.0
    %1415 = vmatpush1.msra.mxu0 0.0
    %1416 = vmatprep.subr.mxu0 0.0
    %1417 = vmatpush1.msra.mxu0 0.0
    %1418 = vmatprep.subr.mxu0 0.0
    %1419 = vmatpush1.msra.mxu0 0.0
    %1420 = vmatprep.subr.mxu0 0.0
    %1421 = vmatpush1.msra.mxu0 0.0
    %1422 = vmatprep.subr.mxu0 0.0
    %1423 = vmatpush1.msra.mxu0 0.0
    %1424 = vmatprep.subr.mxu0 0.0
    %1425 = vmatpush1.msra.mxu0 0.0
    %1426 = vmatprep.subr.mxu0 0.0
    %1427 = vmatpush1.msra.mxu0 0.0
    %1428 = vmatprep.subr.mxu0 0.0
    %1429 = vmatpush1.msra.mxu0 0.0
    %1430 = vmatprep.subr.mxu0 0.0
    %1431 = vmatpush1.msra.mxu0 0.0
    %1432 = vmatprep.subr.mxu0 0.0
    %1433 = vmatpush1.msra.mxu0 0.0
    %1434 = vmatprep.subr.mxu0 0.0
    %1435 = vmatpush1.msra.mxu0 0.0
    %1436 = vmatprep.subr.mxu0 0.0
    %1437 = vmatpush1.msra.mxu0 0.0
    %1438 = vmatprep.mubr.f32.mxu0 0.0
    %1439 = vmatmul.mubr.f32.gmra.mrb[0].mxu0 %v1372
    %v1440 = vpop.f32.mrb[0].mxu0
    %v1441 = vadd.f32 0.0, %v1440
    %v1442 = vpop.f32.mrb[0].mxu0
    %1443 = vdwg.mxu0
    %v1445 = vrot.slane %v1441, 1
    %v1448 = vadd.f32 %v1292, %v1441
    %v1449 = vadd.f32 %v1364, %v1445
    %v1450 = vadd.f32 %v1448, %v313
    %v1451 = vadd.f32 %v1449, %v313
    %v1452 = vxor.u32 %v1450, 2147483648
    %v1453 = vxor.u32 %v1451, 2147483648
    %v1454 = vmul.f32 %v1452, 1.442695
    %v1455 = vpow.pop %v1454
    %v1456 = vmul.f32 %v1453, 1.442695
    %v1457 = vpow.pop %v1456
    %v1458 = vadd.f32 %v1455, 1.0
    %v1459 = vadd.f32 %v1457, 1.0
    %v1460 = vrcp.pop %v1458
    %v1461 = vmul.f32 1.0, %v1460
    %v1462 = vrcp.pop %v1459
    %v1463 = vmul.f32 1.0, %v1462
    %v1464 = vtanh.pop %v1450
    %v1465 = vtanh.pop %v1451
    %v1466 = vmul.f32 %v1461, %v962
    %v1467 = vmul.f32 %v1463, %v963
    %1470 = vrot.lane.b32.xlu0 %v1464, 64
    %v1471 = vpop.permute.xlu0 %1470
    %1472 = vrot.lane.b32.xlu0 %v1465, 64
    %v1473 = vpop.permute.xlu0 %1472
    %v1476 = vmul.f32 %v1461, %v1471
    %v1477 = vmul.f32 %v1463, %v1473
    %1480 = vrot.lane.b32.xlu0 %v1476, 32
    %v1481 = vpop.permute.xlu0 %1480
    %1482 = vrot.lane.b32.xlu0 %v1477, 32
    %v1483 = vpop.permute.xlu0 %1482
    %v1486 = vadd.f32 %v1466, %v1481
    %v1487 = vadd.f32 %v1467, %v1483
    %v1488 = vtanh.pop %v1486
    %v1489 = vtanh.pop %v1487
    %1492 = vrot.lane.b32.xlu0 %v1488, 64
    %v1493 = vpop.permute.xlu0 %1492
    %1494 = vrot.lane.b32.xlu0 %v1489, 64
    %v1495 = vpop.permute.xlu0 %1494
    %v1498 = vmul.f32 %v1461, %v1493
    %v1499 = vmul.f32 %v1463, %v1495
    %1501 = vrot.lane.b32.xlu0 %v1498, 32
    %v1502 = vpop.permute.xlu0 %1501
    %v1503 = vsel %vm53, %v1502, 0
    %1505 = vmatprep.subr.mxu0 0.0
    %1506 = vmatpush1.xpose.msra.mxu0 %v444
    %1507 = vmatprep.subr.mxu0 0.0
    %1508 = vmatpush1.xpose.msra.mxu0 0.0
    %1509 = vmatprep.subr.mxu0 0.0
    %1510 = vmatpush1.xpose.msra.mxu0 0.0
    %1511 = vmatprep.subr.mxu0 0.0
    %1512 = vmatpush1.xpose.msra.mxu0 0.0
    %1513 = vmatprep.subr.mxu0 0.0
    %1514 = vmatpush1.xpose.msra.mxu0 0.0
    %1515 = vmatprep.subr.mxu0 0.0
    %1516 = vmatpush1.xpose.msra.mxu0 0.0
    %1517 = vmatprep.subr.mxu0 0.0
    %1518 = vmatpush1.xpose.msra.mxu0 0.0
    %1519 = vmatprep.subr.mxu0 0.0
    %1520 = vmatpush1.xpose.msra.mxu0 0.0
    %1521 = vmatprep.subr.mxu0 0.0
    %1522 = vmatpush1.xpose.msra.mxu0 0.0
    %1523 = vmatprep.subr.mxu0 0.0
    %1524 = vmatpush1.xpose.msra.mxu0 0.0
    %1525 = vmatprep.subr.mxu0 0.0
    %1526 = vmatpush1.xpose.msra.mxu0 0.0
    %1527 = vmatprep.subr.mxu0 0.0
    %1528 = vmatpush1.xpose.msra.mxu0 0.0
    %1529 = vmatprep.subr.mxu0 0.0
    %1530 = vmatpush1.xpose.msra.mxu0 0.0
    %1531 = vmatprep.subr.mxu0 0.0
    %1532 = vmatpush1.xpose.msra.mxu0 0.0
    %1533 = vmatprep.subr.mxu0 0.0
    %1534 = vmatpush1.xpose.msra.mxu0 0.0
    %1535 = vmatprep.subr.mxu0 0.0
    %1536 = vmatpush1.xpose.msra.mxu0 0.0
    %1537 = vmatprep.subr.mxu0 0.0
    %1538 = vmatpush1.xpose.msra.mxu0 0.0
    %1539 = vmatprep.subr.mxu0 0.0
    %1540 = vmatpush1.xpose.msra.mxu0 0.0
    %1541 = vmatprep.subr.mxu0 0.0
    %1542 = vmatpush1.xpose.msra.mxu0 0.0
    %1543 = vmatprep.subr.mxu0 0.0
    %1544 = vmatpush1.xpose.msra.mxu0 0.0
    %1545 = vmatprep.subr.mxu0 0.0
    %1546 = vmatpush1.xpose.msra.mxu0 0.0
    %1547 = vmatprep.subr.mxu0 0.0
    %1548 = vmatpush1.xpose.msra.mxu0 0.0
    %1549 = vmatprep.subr.mxu0 0.0
    %1550 = vmatpush1.xpose.msra.mxu0 0.0
    %1551 = vmatprep.subr.mxu0 0.0
    %1552 = vmatpush1.xpose.msra.mxu0 0.0
    %1553 = vmatprep.subr.mxu0 0.0
    %1554 = vmatpush1.xpose.msra.mxu0 0.0
    %1555 = vmatprep.subr.mxu0 0.0
    %1556 = vmatpush1.xpose.msra.mxu0 0.0
    %1557 = vmatprep.subr.mxu0 0.0
    %1558 = vmatpush1.xpose.msra.mxu0 0.0
    %1559 = vmatprep.subr.mxu0 0.0
    %1560 = vmatpush1.xpose.msra.mxu0 0.0
    %1561 = vmatprep.subr.mxu0 0.0
    %1562 = vmatpush1.xpose.msra.mxu0 0.0
    %1563 = vmatprep.subr.mxu0 0.0
    %1564 = vmatpush1.xpose.msra.mxu0 0.0
    %1565 = vmatprep.subr.mxu0 0.0
    %1566 = vmatpush1.xpose.msra.mxu0 0.0
    %1567 = vmatprep.subr.mxu0 0.0
    %1568 = vmatpush1.xpose.msra.mxu0 0.0
    %1569 = vmatprep.mubr.f32.mxu0 0.0
    %1570 = vmatmul.mubr.f32.gmra.mrb[0].mxu0 %v1503
    %v1571 = vpop.f32.mrb[0].mxu0
    %v1572 = vadd.f32 0.0, %v1571
    %v1573 = vpop.f32.mrb[0].mxu0
    %1574 = vdwg.mxu0
    %1576 = vrot.lane.b32.xlu0 %v1499, 32
    %v1577 = vpop.permute.xlu0 %1576
    %v1578 = vsel %vm53, %v1577, 0
    %1580 = vmatprep.subr.mxu0 0.0
    %1581 = vmatpush1.xpose.msra.mxu0 %v525
    %1582 = vmatprep.subr.mxu0 0.0
    %1583 = vmatpush1.xpose.msra.mxu0 0.0
    %1584 = vmatprep.subr.mxu0 0.0
    %1585 = vmatpush1.xpose.msra.mxu0 0.0
    %1586 = vmatprep.subr.mxu0 0.0
    %1587 = vmatpush1.xpose.msra.mxu0 0.0
    %1588 = vmatprep.subr.mxu0 0.0
    %1589 = vmatpush1.xpose.msra.mxu0 0.0
    %1590 = vmatprep.subr.mxu0 0.0
    %1591 = vmatpush1.xpose.msra.mxu0 0.0
    %1592 = vmatprep.subr.mxu0 0.0
    %1593 = vmatpush1.xpose.msra.mxu0 0.0
    %1594 = vmatprep.subr.mxu0 0.0
    %1595 = vmatpush1.xpose.msra.mxu0 0.0
    %1596 = vmatprep.subr.mxu0 0.0
    %1597 = vmatpush1.xpose.msra.mxu0 0.0
    %1598 = vmatprep.subr.mxu0 0.0
    %1599 = vmatpush1.xpose.msra.mxu0 0.0
    %1600 = vmatprep.subr.mxu0 0.0
    %1601 = vmatpush1.xpose.msra.mxu0 0.0
    %1602 = vmatprep.subr.mxu0 0.0
    %1603 = vmatpush1.xpose.msra.mxu0 0.0
    %1604 = vmatprep.subr.mxu0 0.0
    %1605 = vmatpush1.xpose.msra.mxu0 0.0
    %1606 = vmatprep.subr.mxu0 0.0
    %1607 = vmatpush1.xpose.msra.mxu0 0.0
    %1608 = vmatprep.subr.mxu0 0.0
    %1609 = vmatpush1.xpose.msra.mxu0 0.0
    %1610 = vmatprep.subr.mxu0 0.0
    %1611 = vmatpush1.xpose.msra.mxu0 0.0
    %1612 = vmatprep.subr.mxu0 0.0
    %1613 = vmatpush1.xpose.msra.mxu0 0.0
    %1614 = vmatprep.subr.mxu0 0.0
    %1615 = vmatpush1.xpose.msra.mxu0 0.0
    %1616 = vmatprep.subr.mxu0 0.0
    %1617 = vmatpush1.xpose.msra.mxu0 0.0
    %1618 = vmatprep.subr.mxu0 0.0
    %1619 = vmatpush1.xpose.msra.mxu0 0.0
    %1620 = vmatprep.subr.mxu0 0.0
    %1621 = vmatpush1.xpose.msra.mxu0 0.0
    %1622 = vmatprep.subr.mxu0 0.0
    %1623 = vmatpush1.xpose.msra.mxu0 0.0
    %1624 = vmatprep.subr.mxu0 0.0
    %1625 = vmatpush1.xpose.msra.mxu0 0.0
    %1626 = vmatprep.subr.mxu0 0.0
    %1627 = vmatpush1.xpose.msra.mxu0 0.0
    %1628 = vmatprep.subr.mxu0 0.0
    %1629 = vmatpush1.xpose.msra.mxu0 0.0
    %1630 = vmatprep.subr.mxu0 0.0
    %1631 = vmatpush1.xpose.msra.mxu0 0.0
    %1632 = vmatprep.subr.mxu0 0.0
    %1633 = vmatpush1.xpose.msra.mxu0 0.0
    %1634 = vmatprep.subr.mxu0 0.0
    %1635 = vmatpush1.xpose.msra.mxu0 0.0
    %1636 = vmatprep.subr.mxu0 0.0
    %1637 = vmatpush1.xpose.msra.mxu0 0.0
    %1638 = vmatprep.subr.mxu0 0.0
    %1639 = vmatpush1.xpose.msra.mxu0 0.0
    %1640 = vmatprep.subr.mxu0 0.0
    %1641 = vmatpush1.xpose.msra.mxu0 0.0
    %1642 = vmatprep.subr.mxu0 0.0
    %1643 = vmatpush1.xpose.msra.mxu0 0.0
    %1644 = vmatprep.mubr.f32.mxu0 0.0
    %1645 = vmatmul.mubr.f32.gmra.mrb[0].mxu0 %v1578
    %v1646 = vpop.f32.mrb[0].mxu0
    %v1647 = vadd.f32 0.0, %v1646
    %v1648 = vpop.f32.mrb[0].mxu0
    %1649 = vdwg.mxu0
    %vm1650 = vcmp.gt.f32.partialorder %v1367, 0.5
    %v1653 = vrot.slane %v1647, 7
    %v1654 = vsel %vm601, %v1653, %v1572
    %v1656 = vsel %vm1650, -1e+30, %v1654
    %v1657 = vsel %vm605, %v1656, -inf
    %1658 = vmax.xlane.f32.xlu0 %v1657
    %v1659 = vpop.xlane.xlu0 %1658
    %v1660 = vsub.f32 %v1656, %v1659
    %v1661 = vmul.f32 %v1660, 1.442695
    %v1662 = vpow.pop %v1661
    %v1663 = vsel %vm605, %v1662, 0.0
    %1664 = vadd.xlane.f32.xlu0 %v1663
    %v1665 = vpop.xlane.xlu0 %1664
    %v1666 = vrcp.pop %v1665
    %v1667 = vmul.f32 %v1662, %v1666
    %vm1668 = vcmp.eq.s32.totalorder %v308, 2
    %v1671 = vunpack.c.l.s4 1966171168
    %v1672 = vunpack.c.0.s8 %v1671
    %v1673 = vlaneseq
    %v1674 = vshrl.u32 %v1673, 7
    %v1675 = vsub.s32 %v1672, %v1674
    %v1676 = vrot.slane %v1667, %v1675
    %v1677 = vcombine.high %v1676, %v1676
    %v1679 = vunpack.c.l.s4 1966171168
    %v1680 = vunpack.c.0.s8 %v1679
    %v1681 = vlaneseq
    %v1682 = vshrl.u32 %v1681, 7
    %v1683 = vsub.s32 %v1680, %v1682
    %v1684 = vrot.slane %v1676, %v1683
    %v1686 = vunpack.c.l.s4 1966171168
    %v1687 = vunpack.c.0.s8 %v1686
    %v1688 = vlaneseq
    %v1689 = vshrl.u32 %v1688, 7
    %v1690 = vsub.s32 %v1687, %v1689
    %v1691 = vrot.slane %v1677, %v1690
    %v1692 = vlaneseq
    %v1693 = vshrl.u32 %v1692, 7
    %v1694 = vsub.s32 0, %v1693
    %v1695 = vrot.slane %v1684, %v1694
    %v1696 = vlaneseq
    %v1697 = vshrl.u32 %v1696, 7
    %v1698 = vsub.s32 0, %v1697
    %v1699 = vrot.slane %v1691, %v1698
    %v1702 = vsel %vm1668, %v1695, %v1178
    %v1703 = vsel %vm1668, %v1699, %v1179
    %vm1704 = vcmp.ge.f32.partialorder %v1656, %v1659
    %v1705 = vsel %vm1704, %v306, 8
    %v1706 = vsel %vm605, %v1705, 2147483647
    %v1707 = vand.u32 %v1706, 65535
    %v1708 = vshra.s32 %v1706, 16
    %v1709 = vcvt.s32.f32 %v1707
    %v1710 = vcvt.s32.f32 %v1708
    %1711 = vmin.xlane.f32.xlu0 %v1710
    %v1712 = vpop.xlane.xlu0 %1711
    %vm1713 = vcmp.eq.f32.partialorder %v1710, %v1712
    %v1714 = vsel %vm1713, %v1709, inf
    %1715 = vmin.xlane.f32.xlu0 %v1714
    %v1716 = vpop.xlane.xlu0 %1715
    %v1717 = vcvt.f32.s32 %v1716
    %v1718 = vcvt.f32.s32 %v1712
    %v1719 = vshll.u32 %v1718, 16
    %v1720 = vadd.s32 %v1719, %v1717
    %vm1721 = vcmp.eq.s32.totalorder %v306, %v1720
    %v1722 = vsel %vm1721, 1, 0
    %v1723 = vcvt.s32.f32 %v1722
    %v1726 = vunpack.c.l.s4 1966171168
    %v1727 = vunpack.c.0.s8 %v1726
    %v1728 = vlaneseq
    %v1729 = vshrl.u32 %v1728, 7
    %v1730 = vsub.s32 %v1727, %v1729
    %v1731 = vrot.slane %v1723, %v1730
    %v1732 = vcombine.high %v1731, %v1731
    %v1734 = vunpack.c.l.s4 1966171168
    %v1735 = vunpack.c.0.s8 %v1734
    %v1736 = vlaneseq
    %v1737 = vshrl.u32 %v1736, 7
    %v1738 = vsub.s32 %v1735, %v1737
    %v1739 = vrot.slane %v1731, %v1738
    %v1741 = vunpack.c.l.s4 1966171168
    %v1742 = vunpack.c.0.s8 %v1741
    %v1743 = vlaneseq
    %v1744 = vshrl.u32 %v1743, 7
    %v1745 = vsub.s32 %v1742, %v1744
    %v1746 = vrot.slane %v1732, %v1745
    %v1747 = vsel %vm696, %v1739, 0
    %1749 = vmatprep.subr.mxu0 0.0
    %1750 = vmatpush1.msra.mxu0 %v206
    %1751 = vmatprep.subr.mxu0 0.0
    %1752 = vmatpush1.msra.mxu0 0.0
    %1753 = vmatprep.subr.mxu0 0.0
    %1754 = vmatpush1.msra.mxu0 0.0
    %1755 = vmatprep.subr.mxu0 0.0
    %1756 = vmatpush1.msra.mxu0 0.0
    %1757 = vmatprep.subr.mxu0 0.0
    %1758 = vmatpush1.msra.mxu0 0.0
    %1759 = vmatprep.subr.mxu0 0.0
    %1760 = vmatpush1.msra.mxu0 0.0
    %1761 = vmatprep.subr.mxu0 0.0
    %1762 = vmatpush1.msra.mxu0 0.0
    %1763 = vmatprep.subr.mxu0 0.0
    %1764 = vmatpush1.msra.mxu0 0.0
    %1765 = vmatprep.subr.mxu0 0.0
    %1766 = vmatpush1.msra.mxu0 0.0
    %1767 = vmatprep.subr.mxu0 0.0
    %1768 = vmatpush1.msra.mxu0 0.0
    %1769 = vmatprep.subr.mxu0 0.0
    %1770 = vmatpush1.msra.mxu0 0.0
    %1771 = vmatprep.subr.mxu0 0.0
    %1772 = vmatpush1.msra.mxu0 0.0
    %1773 = vmatprep.subr.mxu0 0.0
    %1774 = vmatpush1.msra.mxu0 0.0
    %1775 = vmatprep.subr.mxu0 0.0
    %1776 = vmatpush1.msra.mxu0 0.0
    %1777 = vmatprep.subr.mxu0 0.0
    %1778 = vmatpush1.msra.mxu0 0.0
    %1779 = vmatprep.subr.mxu0 0.0
    %1780 = vmatpush1.msra.mxu0 0.0
    %1781 = vmatprep.subr.mxu0 0.0
    %1782 = vmatpush1.msra.mxu0 0.0
    %1783 = vmatprep.subr.mxu0 0.0
    %1784 = vmatpush1.msra.mxu0 0.0
    %1785 = vmatprep.subr.mxu0 0.0
    %1786 = vmatpush1.msra.mxu0 0.0
    %1787 = vmatprep.subr.mxu0 0.0
    %1788 = vmatpush1.msra.mxu0 0.0
    %1789 = vmatprep.subr.mxu0 0.0
    %1790 = vmatpush1.msra.mxu0 0.0
    %1791 = vmatprep.subr.mxu0 0.0
    %1792 = vmatpush1.msra.mxu0 0.0
    %1793 = vmatprep.subr.mxu0 0.0
    %1794 = vmatpush1.msra.mxu0 0.0
    %1795 = vmatprep.subr.mxu0 0.0
    %1796 = vmatpush1.msra.mxu0 0.0
    %1797 = vmatprep.subr.mxu0 0.0
    %1798 = vmatpush1.msra.mxu0 0.0
    %1799 = vmatprep.subr.mxu0 0.0
    %1800 = vmatpush1.msra.mxu0 0.0
    %1801 = vmatprep.subr.mxu0 0.0
    %1802 = vmatpush1.msra.mxu0 0.0
    %1803 = vmatprep.subr.mxu0 0.0
    %1804 = vmatpush1.msra.mxu0 0.0
    %1805 = vmatprep.subr.mxu0 0.0
    %1806 = vmatpush1.msra.mxu0 0.0
    %1807 = vmatprep.subr.mxu0 0.0
    %1808 = vmatpush1.msra.mxu0 0.0
    %1809 = vmatprep.subr.mxu0 0.0
    %1810 = vmatpush1.msra.mxu0 0.0
    %1811 = vmatprep.subr.mxu0 0.0
    %1812 = vmatpush1.msra.mxu0 0.0
    %1813 = vmatprep.mubr.f32.mxu0 0.0
    %1814 = vmatmul.mubr.f32.gmra.mrb[0].mxu0 %v1747
    %v1815 = vpop.f32.mrb[0].mxu0
    %v1816 = vadd.f32 0.0, %v1815
    %v1817 = vpop.f32.mrb[0].mxu0
    %1818 = vdwg.mxu0
    %v1819 = vsel %vm696, %v1746, 0
    %1821 = vmatprep.subr.mxu0 0.0
    %1822 = vmatpush1.msra.mxu0 %v211
    %1823 = vmatprep.subr.mxu0 0.0
    %1824 = vmatpush1.msra.mxu0 0.0
    %1825 = vmatprep.subr.mxu0 0.0
    %1826 = vmatpush1.msra.mxu0 0.0
    %1827 = vmatprep.subr.mxu0 0.0
    %1828 = vmatpush1.msra.mxu0 0.0
    %1829 = vmatprep.subr.mxu0 0.0
    %1830 = vmatpush1.msra.mxu0 0.0
    %1831 = vmatprep.subr.mxu0 0.0
    %1832 = vmatpush1.msra.mxu0 0.0
    %1833 = vmatprep.subr.mxu0 0.0
    %1834 = vmatpush1.msra.mxu0 0.0
    %1835 = vmatprep.subr.mxu0 0.0
    %1836 = vmatpush1.msra.mxu0 0.0
    %1837 = vmatprep.subr.mxu0 0.0
    %1838 = vmatpush1.msra.mxu0 0.0
    %1839 = vmatprep.subr.mxu0 0.0
    %1840 = vmatpush1.msra.mxu0 0.0
    %1841 = vmatprep.subr.mxu0 0.0
    %1842 = vmatpush1.msra.mxu0 0.0
    %1843 = vmatprep.subr.mxu0 0.0
    %1844 = vmatpush1.msra.mxu0 0.0
    %1845 = vmatprep.subr.mxu0 0.0
    %1846 = vmatpush1.msra.mxu0 0.0
    %1847 = vmatprep.subr.mxu0 0.0
    %1848 = vmatpush1.msra.mxu0 0.0
    %1849 = vmatprep.subr.mxu0 0.0
    %1850 = vmatpush1.msra.mxu0 0.0
    %1851 = vmatprep.subr.mxu0 0.0
    %1852 = vmatpush1.msra.mxu0 0.0
    %1853 = vmatprep.subr.mxu0 0.0
    %1854 = vmatpush1.msra.mxu0 0.0
    %1855 = vmatprep.subr.mxu0 0.0
    %1856 = vmatpush1.msra.mxu0 0.0
    %1857 = vmatprep.subr.mxu0 0.0
    %1858 = vmatpush1.msra.mxu0 0.0
    %1859 = vmatprep.subr.mxu0 0.0
    %1860 = vmatpush1.msra.mxu0 0.0
    %1861 = vmatprep.subr.mxu0 0.0
    %1862 = vmatpush1.msra.mxu0 0.0
    %1863 = vmatprep.subr.mxu0 0.0
    %1864 = vmatpush1.msra.mxu0 0.0
    %1865 = vmatprep.subr.mxu0 0.0
    %1866 = vmatpush1.msra.mxu0 0.0
    %1867 = vmatprep.subr.mxu0 0.0
    %1868 = vmatpush1.msra.mxu0 0.0
    %1869 = vmatprep.subr.mxu0 0.0
    %1870 = vmatpush1.msra.mxu0 0.0
    %1871 = vmatprep.subr.mxu0 0.0
    %1872 = vmatpush1.msra.mxu0 0.0
    %1873 = vmatprep.subr.mxu0 0.0
    %1874 = vmatpush1.msra.mxu0 0.0
    %1875 = vmatprep.subr.mxu0 0.0
    %1876 = vmatpush1.msra.mxu0 0.0
    %1877 = vmatprep.subr.mxu0 0.0
    %1878 = vmatpush1.msra.mxu0 0.0
    %1879 = vmatprep.subr.mxu0 0.0
    %1880 = vmatpush1.msra.mxu0 0.0
    %1881 = vmatprep.subr.mxu0 0.0
    %1882 = vmatpush1.msra.mxu0 0.0
    %1883 = vmatprep.subr.mxu0 0.0
    %1884 = vmatpush1.msra.mxu0 0.0
    %1885 = vmatprep.mubr.f32.mxu0 0.0
    %1886 = vmatmul.mubr.f32.gmra.mrb[0].mxu0 %v1819
    %v1887 = vpop.f32.mrb[0].mxu0
    %v1888 = vadd.f32 0.0, %v1887
    %v1889 = vpop.f32.mrb[0].mxu0
    %1890 = vdwg.mxu0
    %v1891 = vmax.f32 %v1367, %v1723
    %v1892 = vrot.slane %v1499, 7
    %v1893 = vsel %vm601, %v1892, %v1498
    %1894 = vrot.lane.b32.xlu0 %v1893, 32
    %v1895 = vpop.permute.xlu0 %1894
    %v1896 = vsel %vm53, %v1895, 0
    %1898 = vmatprep.subr.mxu0 0.0
    %1899 = vmatpush1.msra.mxu0 %v214
    %1900 = vmatprep.subr.mxu0 0.0
    %1901 = vmatpush1.msra.mxu0 %v215
    %1902 = vmatprep.subr.mxu0 0.0
    %1903 = vmatpush1.msra.mxu0 %v216
    %1904 = vmatprep.subr.mxu0 0.0
    %1905 = vmatpush1.msra.mxu0 %v217
    %1906 = vmatprep.subr.mxu0 0.0
    %1907 = vmatpush1.msra.mxu0 0.0
    %1908 = vmatprep.subr.mxu0 0.0
    %1909 = vmatpush1.msra.mxu0 0.0
    %1910 = vmatprep.subr.mxu0 0.0
    %1911 = vmatpush1.msra.mxu0 0.0
    %1912 = vmatprep.subr.mxu0 0.0
    %1913 = vmatpush1.msra.mxu0 0.0
    %1914 = vmatprep.subr.mxu0 0.0
    %1915 = vmatpush1.msra.mxu0 0.0
    %1916 = vmatprep.subr.mxu0 0.0
    %1917 = vmatpush1.msra.mxu0 0.0
    %1918 = vmatprep.subr.mxu0 0.0
    %1919 = vmatpush1.msra.mxu0 0.0
    %1920 = vmatprep.subr.mxu0 0.0
    %1921 = vmatpush1.msra.mxu0 0.0
    %1922 = vmatprep.subr.mxu0 0.0
    %1923 = vmatpush1.msra.mxu0 0.0
    %1924 = vmatprep.subr.mxu0 0.0
    %1925 = vmatpush1.msra.mxu0 0.0
    %1926 = vmatprep.subr.mxu0 0.0
    %1927 = vmatpush1.msra.mxu0 0.0
    %1928 = vmatprep.subr.mxu0 0.0
    %1929 = vmatpush1.msra.mxu0 0.0
    %1930 = vmatprep.subr.mxu0 0.0
    %1931 = vmatpush1.msra.mxu0 0.0
    %1932 = vmatprep.subr.mxu0 0.0
    %1933 = vmatpush1.msra.mxu0 0.0
    %1934 = vmatprep.subr.mxu0 0.0
    %1935 = vmatpush1.msra.mxu0 0.0
    %1936 = vmatprep.subr.mxu0 0.0
    %1937 = vmatpush1.msra.mxu0 0.0
    %1938 = vmatprep.subr.mxu0 0.0
    %1939 = vmatpush1.msra.mxu0 0.0
    %1940 = vmatprep.subr.mxu0 0.0
    %1941 = vmatpush1.msra.mxu0 0.0
    %1942 = vmatprep.subr.mxu0 0.0
    %1943 = vmatpush1.msra.mxu0 0.0
    %1944 = vmatprep.subr.mxu0 0.0
    %1945 = vmatpush1.msra.mxu0 0.0
    %1946 = vmatprep.subr.mxu0 0.0
    %1947 = vmatpush1.msra.mxu0 0.0
    %1948 = vmatprep.subr.mxu0 0.0
    %1949 = vmatpush1.msra.mxu0 0.0
    %1950 = vmatprep.subr.mxu0 0.0
    %1951 = vmatpush1.msra.mxu0 0.0
    %1952 = vmatprep.subr.mxu0 0.0
    %1953 = vmatpush1.msra.mxu0 0.0
    %1954 = vmatprep.subr.mxu0 0.0
    %1955 = vmatpush1.msra.mxu0 0.0
    %1956 = vmatprep.subr.mxu0 0.0
    %1957 = vmatpush1.msra.mxu0 0.0
    %1958 = vmatprep.subr.mxu0 0.0
    %1959 = vmatpush1.msra.mxu0 0.0
    %1960 = vmatprep.subr.mxu0 0.0
    %1961 = vmatpush1.msra.mxu0 0.0
    %1962 = vmatprep.mubr.f32.mxu0 0.0
    %1963 = vmatmul.mubr.f32.gmra.mrb[0].mxu0 %v1896
    %v1964 = vpop.f32.mrb[0].mxu0
    %v1965 = vadd.f32 0.0, %v1964
    %v1966 = vpop.f32.mrb[0].mxu0
    %1967 = vdwg.mxu0
    %v1969 = vrot.slane %v1965, 1
    %v1972 = vadd.f32 %v1816, %v1965
    %v1973 = vadd.f32 %v1888, %v1969
    %v1974 = vadd.f32 %v1972, %v313
    %v1975 = vadd.f32 %v1973, %v313
    %v1976 = vxor.u32 %v1974, 2147483648
    %v1977 = vxor.u32 %v1975, 2147483648
    %v1978 = vmul.f32 %v1976, 1.442695
    %v1979 = vpow.pop %v1978
    %v1980 = vmul.f32 %v1977, 1.442695
    %v1981 = vpow.pop %v1980
    %v1982 = vadd.f32 %v1979, 1.0
    %v1983 = vadd.f32 %v1981, 1.0
    %v1984 = vrcp.pop %v1982
    %v1985 = vmul.f32 1.0, %v1984
    %v1986 = vrcp.pop %v1983
    %v1987 = vmul.f32 1.0, %v1986
    %v1988 = vtanh.pop %v1974
    %v1989 = vtanh.pop %v1975
    %v1990 = vmul.f32 %v1985, %v1486
    %v1991 = vmul.f32 %v1987, %v1487
    %1994 = vrot.lane.b32.xlu0 %v1988, 64
    %v1995 = vpop.permute.xlu0 %1994
    %1996 = vrot.lane.b32.xlu0 %v1989, 64
    %v1997 = vpop.permute.xlu0 %1996
    %v2000 = vmul.f32 %v1985, %v1995
    %v2001 = vmul.f32 %v1987, %v1997
    %2004 = vrot.lane.b32.xlu0 %v2000, 32
    %v2005 = vpop.permute.xlu0 %2004
    %2006 = vrot.lane.b32.xlu0 %v2001, 32
    %v2007 = vpop.permute.xlu0 %2006
    %v2010 = vadd.f32 %v1990, %v2005
    %v2011 = vadd.f32 %v1991, %v2007
    %v2012 = vtanh.pop %v2010
    %v2013 = vtanh.pop %v2011
    %2016 = vrot.lane.b32.xlu0 %v2012, 64
    %v2017 = vpop.permute.xlu0 %2016
    %2018 = vrot.lane.b32.xlu0 %v2013, 64
    %v2019 = vpop.permute.xlu0 %2018
    %v2022 = vmul.f32 %v1985, %v2017
    %v2023 = vmul.f32 %v1987, %v2019
    %2025 = vrot.lane.b32.xlu0 %v2022, 32
    %v2026 = vpop.permute.xlu0 %2025
    %v2027 = vsel %vm53, %v2026, 0
    %2029 = vmatprep.subr.mxu0 0.0
    %2030 = vmatpush1.xpose.msra.mxu0 %v444
    %2031 = vmatprep.subr.mxu0 0.0
    %2032 = vmatpush1.xpose.msra.mxu0 0.0
    %2033 = vmatprep.subr.mxu0 0.0
    %2034 = vmatpush1.xpose.msra.mxu0 0.0
    %2035 = vmatprep.subr.mxu0 0.0
    %2036 = vmatpush1.xpose.msra.mxu0 0.0
    %2037 = vmatprep.subr.mxu0 0.0
    %2038 = vmatpush1.xpose.msra.mxu0 0.0
    %2039 = vmatprep.subr.mxu0 0.0
    %2040 = vmatpush1.xpose.msra.mxu0 0.0
    %2041 = vmatprep.subr.mxu0 0.0
    %2042 = vmatpush1.xpose.msra.mxu0 0.0
    %2043 = vmatprep.subr.mxu0 0.0
    %2044 = vmatpush1.xpose.msra.mxu0 0.0
    %2045 = vmatprep.subr.mxu0 0.0
    %2046 = vmatpush1.xpose.msra.mxu0 0.0
    %2047 = vmatprep.subr.mxu0 0.0
    %2048 = vmatpush1.xpose.msra.mxu0 0.0
    %2049 = vmatprep.subr.mxu0 0.0
    %2050 = vmatpush1.xpose.msra.mxu0 0.0
    %2051 = vmatprep.subr.mxu0 0.0
    %2052 = vmatpush1.xpose.msra.mxu0 0.0
    %2053 = vmatprep.subr.mxu0 0.0
    %2054 = vmatpush1.xpose.msra.mxu0 0.0
    %2055 = vmatprep.subr.mxu0 0.0
    %2056 = vmatpush1.xpose.msra.mxu0 0.0
    %2057 = vmatprep.subr.mxu0 0.0
    %2058 = vmatpush1.xpose.msra.mxu0 0.0
    %2059 = vmatprep.subr.mxu0 0.0
    %2060 = vmatpush1.xpose.msra.mxu0 0.0
    %2061 = vmatprep.subr.mxu0 0.0
    %2062 = vmatpush1.xpose.msra.mxu0 0.0
    %2063 = vmatprep.subr.mxu0 0.0
    %2064 = vmatpush1.xpose.msra.mxu0 0.0
    %2065 = vmatprep.subr.mxu0 0.0
    %2066 = vmatpush1.xpose.msra.mxu0 0.0
    %2067 = vmatprep.subr.mxu0 0.0
    %2068 = vmatpush1.xpose.msra.mxu0 0.0
    %2069 = vmatprep.subr.mxu0 0.0
    %2070 = vmatpush1.xpose.msra.mxu0 0.0
    %2071 = vmatprep.subr.mxu0 0.0
    %2072 = vmatpush1.xpose.msra.mxu0 0.0
    %2073 = vmatprep.subr.mxu0 0.0
    %2074 = vmatpush1.xpose.msra.mxu0 0.0
    %2075 = vmatprep.subr.mxu0 0.0
    %2076 = vmatpush1.xpose.msra.mxu0 0.0
    %2077 = vmatprep.subr.mxu0 0.0
    %2078 = vmatpush1.xpose.msra.mxu0 0.0
    %2079 = vmatprep.subr.mxu0 0.0
    %2080 = vmatpush1.xpose.msra.mxu0 0.0
    %2081 = vmatprep.subr.mxu0 0.0
    %2082 = vmatpush1.xpose.msra.mxu0 0.0
    %2083 = vmatprep.subr.mxu0 0.0
    %2084 = vmatpush1.xpose.msra.mxu0 0.0
    %2085 = vmatprep.subr.mxu0 0.0
    %2086 = vmatpush1.xpose.msra.mxu0 0.0
    %2087 = vmatprep.subr.mxu0 0.0
    %2088 = vmatpush1.xpose.msra.mxu0 0.0
    %2089 = vmatprep.subr.mxu0 0.0
    %2090 = vmatpush1.xpose.msra.mxu0 0.0
    %2091 = vmatprep.subr.mxu0 0.0
    %2092 = vmatpush1.xpose.msra.mxu0 0.0
    %2093 = vmatprep.mubr.f32.mxu0 0.0
    %2094 = vmatmul.mubr.f32.gmra.mrb[0].mxu0 %v2027
    %v2095 = vpop.f32.mrb[0].mxu0
    %v2096 = vadd.f32 0.0, %v2095
    %v2097 = vpop.f32.mrb[0].mxu0
    %2098 = vdwg.mxu0
    %2100 = vrot.lane.b32.xlu0 %v2023, 32
    %v2101 = vpop.permute.xlu0 %2100
    %v2102 = vsel %vm53, %v2101, 0
    %2104 = vmatprep.subr.mxu0 0.0
    %2105 = vmatpush1.xpose.msra.mxu0 %v525
    %2106 = vmatprep.subr.mxu0 0.0
    %2107 = vmatpush1.xpose.msra.mxu0 0.0
    %2108 = vmatprep.subr.mxu0 0.0
    %2109 = vmatpush1.xpose.msra.mxu0 0.0
    %2110 = vmatprep.subr.mxu0 0.0
    %2111 = vmatpush1.xpose.msra.mxu0 0.0
    %2112 = vmatprep.subr.mxu0 0.0
    %2113 = vmatpush1.xpose.msra.mxu0 0.0
    %2114 = vmatprep.subr.mxu0 0.0
    %2115 = vmatpush1.xpose.msra.mxu0 0.0
    %2116 = vmatprep.subr.mxu0 0.0
    %2117 = vmatpush1.xpose.msra.mxu0 0.0
    %2118 = vmatprep.subr.mxu0 0.0
    %2119 = vmatpush1.xpose.msra.mxu0 0.0
    %2120 = vmatprep.subr.mxu0 0.0
    %2121 = vmatpush1.xpose.msra.mxu0 0.0
    %2122 = vmatprep.subr.mxu0 0.0
    %2123 = vmatpush1.xpose.msra.mxu0 0.0
    %2124 = vmatprep.subr.mxu0 0.0
    %2125 = vmatpush1.xpose.msra.mxu0 0.0
    %2126 = vmatprep.subr.mxu0 0.0
    %2127 = vmatpush1.xpose.msra.mxu0 0.0
    %2128 = vmatprep.subr.mxu0 0.0
    %2129 = vmatpush1.xpose.msra.mxu0 0.0
    %2130 = vmatprep.subr.mxu0 0.0
    %2131 = vmatpush1.xpose.msra.mxu0 0.0
    %2132 = vmatprep.subr.mxu0 0.0
    %2133 = vmatpush1.xpose.msra.mxu0 0.0
    %2134 = vmatprep.subr.mxu0 0.0
    %2135 = vmatpush1.xpose.msra.mxu0 0.0
    %2136 = vmatprep.subr.mxu0 0.0
    %2137 = vmatpush1.xpose.msra.mxu0 0.0
    %2138 = vmatprep.subr.mxu0 0.0
    %2139 = vmatpush1.xpose.msra.mxu0 0.0
    %2140 = vmatprep.subr.mxu0 0.0
    %2141 = vmatpush1.xpose.msra.mxu0 0.0
    %2142 = vmatprep.subr.mxu0 0.0
    %2143 = vmatpush1.xpose.msra.mxu0 0.0
    %2144 = vmatprep.subr.mxu0 0.0
    %2145 = vmatpush1.xpose.msra.mxu0 0.0
    %2146 = vmatprep.subr.mxu0 0.0
    %2147 = vmatpush1.xpose.msra.mxu0 0.0
    %2148 = vmatprep.subr.mxu0 0.0
    %2149 = vmatpush1.xpose.msra.mxu0 0.0
    %2150 = vmatprep.subr.mxu0 0.0
    %2151 = vmatpush1.xpose.msra.mxu0 0.0
    %2152 = vmatprep.subr.mxu0 0.0
    %2153 = vmatpush1.xpose.msra.mxu0 0.0
    %2154 = vmatprep.subr.mxu0 0.0
    %2155 = vmatpush1.xpose.msra.mxu0 0.0
    %2156 = vmatprep.subr.mxu0 0.0
    %2157 = vmatpush1.xpose.msra.mxu0 0.0
    %2158 = vmatprep.subr.mxu0 0.0
    %2159 = vmatpush1.xpose.msra.mxu0 0.0
    %2160 = vmatprep.subr.mxu0 0.0
    %2161 = vmatpush1.xpose.msra.mxu0 0.0
    %2162 = vmatprep.subr.mxu0 0.0
    %2163 = vmatpush1.xpose.msra.mxu0 0.0
    %2164 = vmatprep.subr.mxu0 0.0
    %2165 = vmatpush1.xpose.msra.mxu0 0.0
    %2166 = vmatprep.subr.mxu0 0.0
    %2167 = vmatpush1.xpose.msra.mxu0 0.0
    %2168 = vmatprep.mubr.f32.mxu0 0.0
    %2169 = vmatmul.mubr.f32.gmra.mrb[0].mxu0 %v2102
    %v2170 = vpop.f32.mrb[0].mxu0
    %v2171 = vadd.f32 0.0, %v2170
    %v2172 = vpop.f32.mrb[0].mxu0
    %2173 = vdwg.mxu0
    %vm2174 = vcmp.gt.f32.partialorder %v1891, 0.5
    %v2177 = vrot.slane %v2171, 7
    %v2178 = vsel %vm601, %v2177, %v2096
    %v2180 = vsel %vm2174, -1e+30, %v2178
    %v2181 = vsel %vm605, %v2180, -inf
    %2182 = vmax.xlane.f32.xlu0 %v2181
    %v2183 = vpop.xlane.xlu0 %2182
    %v2184 = vsub.f32 %v2180, %v2183
    %v2185 = vmul.f32 %v2184, 1.442695
    %v2186 = vpow.pop %v2185
    %v2187 = vsel %vm605, %v2186, 0.0
    %2188 = vadd.xlane.f32.xlu0 %v2187
    %v2189 = vpop.xlane.xlu0 %2188
    %v2190 = vrcp.pop %v2189
    %v2191 = vmul.f32 %v2186, %v2190
    %vm2192 = vcmp.eq.s32.totalorder %v308, 3
    %v2195 = vunpack.c.l.s4 1966171168
    %v2196 = vunpack.c.0.s8 %v2195
    %v2197 = vlaneseq
    %v2198 = vshrl.u32 %v2197, 7
    %v2199 = vsub.s32 %v2196, %v2198
    %v2200 = vrot.slane %v2191, %v2199
    %v2201 = vcombine.high %v2200, %v2200
    %v2203 = vunpack.c.l.s4 1966171168
    %v2204 = vunpack.c.0.s8 %v2203
    %v2205 = vlaneseq
    %v2206 = vshrl.u32 %v2205, 7
    %v2207 = vsub.s32 %v2204, %v2206
    %v2208 = vrot.slane %v2200, %v2207
    %v2210 = vunpack.c.l.s4 1966171168
    %v2211 = vunpack.c.0.s8 %v2210
    %v2212 = vlaneseq
    %v2213 = vshrl.u32 %v2212, 7
    %v2214 = vsub.s32 %v2211, %v2213
    %v2215 = vrot.slane %v2201, %v2214
    %v2216 = vlaneseq
    %v2217 = vshrl.u32 %v2216, 7
    %v2218 = vsub.s32 0, %v2217
    %v2219 = vrot.slane %v2208, %v2218
    %v2220 = vlaneseq
    %v2221 = vshrl.u32 %v2220, 7
    %v2222 = vsub.s32 0, %v2221
    %v2223 = vrot.slane %v2215, %v2222
    %v2226 = vsel %vm2192, %v2219, %v1702
    %v2227 = vsel %vm2192, %v2223, %v1703
    %vm2228 = vcmp.ge.f32.partialorder %v2180, %v2183
    %v2229 = vsel %vm2228, %v306, 8
    %v2230 = vsel %vm605, %v2229, 2147483647
    %v2231 = vand.u32 %v2230, 65535
    %v2232 = vshra.s32 %v2230, 16
    %v2233 = vcvt.s32.f32 %v2231
    %v2234 = vcvt.s32.f32 %v2232
    %2235 = vmin.xlane.f32.xlu0 %v2234
    %v2236 = vpop.xlane.xlu0 %2235
    %vm2237 = vcmp.eq.f32.partialorder %v2234, %v2236
    %v2238 = vsel %vm2237, %v2233, inf
    %2239 = vmin.xlane.f32.xlu0 %v2238
    %v2240 = vpop.xlane.xlu0 %2239
    %v2241 = vcvt.f32.s32 %v2240
    %v2242 = vcvt.f32.s32 %v2236
    %v2243 = vshll.u32 %v2242, 16
    %v2244 = vadd.s32 %v2243, %v2241
    %vm2245 = vcmp.eq.s32.totalorder %v306, %v2244
    %v2246 = vsel %vm2245, 1, 0
    %v2247 = vcvt.s32.f32 %v2246
    %v2250 = vunpack.c.l.s4 1966171168
    %v2251 = vunpack.c.0.s8 %v2250
    %v2252 = vlaneseq
    %v2253 = vshrl.u32 %v2252, 7
    %v2254 = vsub.s32 %v2251, %v2253
    %v2255 = vrot.slane %v2247, %v2254
    %v2256 = vcombine.high %v2255, %v2255
    %v2258 = vunpack.c.l.s4 1966171168
    %v2259 = vunpack.c.0.s8 %v2258
    %v2260 = vlaneseq
    %v2261 = vshrl.u32 %v2260, 7
    %v2262 = vsub.s32 %v2259, %v2261
    %v2263 = vrot.slane %v2255, %v2262
    %v2265 = vunpack.c.l.s4 1966171168
    %v2266 = vunpack.c.0.s8 %v2265
    %v2267 = vlaneseq
    %v2268 = vshrl.u32 %v2267, 7
    %v2269 = vsub.s32 %v2266, %v2268
    %v2270 = vrot.slane %v2256, %v2269
    %v2271 = vsel %vm696, %v2263, 0
    %2273 = vmatprep.subr.mxu0 0.0
    %2274 = vmatpush1.msra.mxu0 %v206
    %2275 = vmatprep.subr.mxu0 0.0
    %2276 = vmatpush1.msra.mxu0 0.0
    %2277 = vmatprep.subr.mxu0 0.0
    %2278 = vmatpush1.msra.mxu0 0.0
    %2279 = vmatprep.subr.mxu0 0.0
    %2280 = vmatpush1.msra.mxu0 0.0
    %2281 = vmatprep.subr.mxu0 0.0
    %2282 = vmatpush1.msra.mxu0 0.0
    %2283 = vmatprep.subr.mxu0 0.0
    %2284 = vmatpush1.msra.mxu0 0.0
    %2285 = vmatprep.subr.mxu0 0.0
    %2286 = vmatpush1.msra.mxu0 0.0
    %2287 = vmatprep.subr.mxu0 0.0
    %2288 = vmatpush1.msra.mxu0 0.0
    %2289 = vmatprep.subr.mxu0 0.0
    %2290 = vmatpush1.msra.mxu0 0.0
    %2291 = vmatprep.subr.mxu0 0.0
    %2292 = vmatpush1.msra.mxu0 0.0
    %2293 = vmatprep.subr.mxu0 0.0
    %2294 = vmatpush1.msra.mxu0 0.0
    %2295 = vmatprep.subr.mxu0 0.0
    %2296 = vmatpush1.msra.mxu0 0.0
    %2297 = vmatprep.subr.mxu0 0.0
    %2298 = vmatpush1.msra.mxu0 0.0
    %2299 = vmatprep.subr.mxu0 0.0
    %2300 = vmatpush1.msra.mxu0 0.0
    %2301 = vmatprep.subr.mxu0 0.0
    %2302 = vmatpush1.msra.mxu0 0.0
    %2303 = vmatprep.subr.mxu0 0.0
    %2304 = vmatpush1.msra.mxu0 0.0
    %2305 = vmatprep.subr.mxu0 0.0
    %2306 = vmatpush1.msra.mxu0 0.0
    %2307 = vmatprep.subr.mxu0 0.0
    %2308 = vmatpush1.msra.mxu0 0.0
    %2309 = vmatprep.subr.mxu0 0.0
    %2310 = vmatpush1.msra.mxu0 0.0
    %2311 = vmatprep.subr.mxu0 0.0
    %2312 = vmatpush1.msra.mxu0 0.0
    %2313 = vmatprep.subr.mxu0 0.0
    %2314 = vmatpush1.msra.mxu0 0.0
    %2315 = vmatprep.subr.mxu0 0.0
    %2316 = vmatpush1.msra.mxu0 0.0
    %2317 = vmatprep.subr.mxu0 0.0
    %2318 = vmatpush1.msra.mxu0 0.0
    %2319 = vmatprep.subr.mxu0 0.0
    %2320 = vmatpush1.msra.mxu0 0.0
    %2321 = vmatprep.subr.mxu0 0.0
    %2322 = vmatpush1.msra.mxu0 0.0
    %2323 = vmatprep.subr.mxu0 0.0
    %2324 = vmatpush1.msra.mxu0 0.0
    %2325 = vmatprep.subr.mxu0 0.0
    %2326 = vmatpush1.msra.mxu0 0.0
    %2327 = vmatprep.subr.mxu0 0.0
    %2328 = vmatpush1.msra.mxu0 0.0
    %2329 = vmatprep.subr.mxu0 0.0
    %2330 = vmatpush1.msra.mxu0 0.0
    %2331 = vmatprep.subr.mxu0 0.0
    %2332 = vmatpush1.msra.mxu0 0.0
    %2333 = vmatprep.subr.mxu0 0.0
    %2334 = vmatpush1.msra.mxu0 0.0
    %2335 = vmatprep.subr.mxu0 0.0
    %2336 = vmatpush1.msra.mxu0 0.0
    %2337 = vmatprep.mubr.f32.mxu0 0.0
    %2338 = vmatmul.mubr.f32.gmra.mrb[0].mxu0 %v2271
    %v2339 = vpop.f32.mrb[0].mxu0
    %v2340 = vadd.f32 0.0, %v2339
    %v2341 = vpop.f32.mrb[0].mxu0
    %2342 = vdwg.mxu0
    %v2343 = vsel %vm696, %v2270, 0
    %2345 = vmatprep.subr.mxu0 0.0
    %2346 = vmatpush1.msra.mxu0 %v211
    %2347 = vmatprep.subr.mxu0 0.0
    %2348 = vmatpush1.msra.mxu0 0.0
    %2349 = vmatprep.subr.mxu0 0.0
    %2350 = vmatpush1.msra.mxu0 0.0
    %2351 = vmatprep.subr.mxu0 0.0
    %2352 = vmatpush1.msra.mxu0 0.0
    %2353 = vmatprep.subr.mxu0 0.0
    %2354 = vmatpush1.msra.mxu0 0.0
    %2355 = vmatprep.subr.mxu0 0.0
    %2356 = vmatpush1.msra.mxu0 0.0
    %2357 = vmatprep.subr.mxu0 0.0
    %2358 = vmatpush1.msra.mxu0 0.0
    %2359 = vmatprep.subr.mxu0 0.0
    %2360 = vmatpush1.msra.mxu0 0.0
    %2361 = vmatprep.subr.mxu0 0.0
    %2362 = vmatpush1.msra.mxu0 0.0
    %2363 = vmatprep.subr.mxu0 0.0
    %2364 = vmatpush1.msra.mxu0 0.0
    %2365 = vmatprep.subr.mxu0 0.0
    %2366 = vmatpush1.msra.mxu0 0.0
    %2367 = vmatprep.subr.mxu0 0.0
    %2368 = vmatpush1.msra.mxu0 0.0
    %2369 = vmatprep.subr.mxu0 0.0
    %2370 = vmatpush1.msra.mxu0 0.0
    %2371 = vmatprep.subr.mxu0 0.0
    %2372 = vmatpush1.msra.mxu0 0.0
    %2373 = vmatprep.subr.mxu0 0.0
    %2374 = vmatpush1.msra.mxu0 0.0
    %2375 = vmatprep.subr.mxu0 0.0
    %2376 = vmatpush1.msra.mxu0 0.0
    %2377 = vmatprep.subr.mxu0 0.0
    %2378 = vmatpush1.msra.mxu0 0.0
    %2379 = vmatprep.subr.mxu0 0.0
    %2380 = vmatpush1.msra.mxu0 0.0
    %2381 = vmatprep.subr.mxu0 0.0
    %2382 = vmatpush1.msra.mxu0 0.0
    %2383 = vmatprep.subr.mxu0 0.0
    %2384 = vmatpush1.msra.mxu0 0.0
    %2385 = vmatprep.subr.mxu0 0.0
    %2386 = vmatpush1.msra.mxu0 0.0
    %2387 = vmatprep.subr.mxu0 0.0
    %2388 = vmatpush1.msra.mxu0 0.0
    %2389 = vmatprep.subr.mxu0 0.0
    %2390 = vmatpush1.msra.mxu0 0.0
    %2391 = vmatprep.subr.mxu0 0.0
    %2392 = vmatpush1.msra.mxu0 0.0
    %2393 = vmatprep.subr.mxu0 0.0
    %2394 = vmatpush1.msra.mxu0 0.0
    %2395 = vmatprep.subr.mxu0 0.0
    %2396 = vmatpush1.msra.mxu0 0.0
    %2397 = vmatprep.subr.mxu0 0.0
    %2398 = vmatpush1.msra.mxu0 0.0
    %2399 = vmatprep.subr.mxu0 0.0
    %2400 = vmatpush1.msra.mxu0 0.0
    %2401 = vmatprep.subr.mxu0 0.0
    %2402 = vmatpush1.msra.mxu0 0.0
    %2403 = vmatprep.subr.mxu0 0.0
    %2404 = vmatpush1.msra.mxu0 0.0
    %2405 = vmatprep.subr.mxu0 0.0
    %2406 = vmatpush1.msra.mxu0 0.0
    %2407 = vmatprep.subr.mxu0 0.0
    %2408 = vmatpush1.msra.mxu0 0.0
    %2409 = vmatprep.mubr.f32.mxu0 0.0
    %2410 = vmatmul.mubr.f32.gmra.mrb[0].mxu0 %v2343
    %v2411 = vpop.f32.mrb[0].mxu0
    %v2412 = vadd.f32 0.0, %v2411
    %v2413 = vpop.f32.mrb[0].mxu0
    %2414 = vdwg.mxu0
    %v2415 = vmax.f32 %v1891, %v2247
    %v2416 = vrot.slane %v2023, 7
    %v2417 = vsel %vm601, %v2416, %v2022
    %2418 = vrot.lane.b32.xlu0 %v2417, 32
    %v2419 = vpop.permute.xlu0 %2418
    %v2420 = vsel %vm53, %v2419, 0
    %2422 = vmatprep.subr.mxu0 0.0
    %2423 = vmatpush1.msra.mxu0 %v214
    %2424 = vmatprep.subr.mxu0 0.0
    %2425 = vmatpush1.msra.mxu0 %v215
    %2426 = vmatprep.subr.mxu0 0.0
    %2427 = vmatpush1.msra.mxu0 %v216
    %2428 = vmatprep.subr.mxu0 0.0
    %2429 = vmatpush1.msra.mxu0 %v217
    %2430 = vmatprep.subr.mxu0 0.0
    %2431 = vmatpush1.msra.mxu0 0.0
    %2432 = vmatprep.subr.mxu0 0.0
    %2433 = vmatpush1.msra.mxu0 0.0
    %2434 = vmatprep.subr.mxu0 0.0
    %2435 = vmatpush1.msra.mxu0 0.0
    %2436 = vmatprep.subr.mxu0 0.0
    %2437 = vmatpush1.msra.mxu0 0.0
    %2438 = vmatprep.subr.mxu0 0.0
    %2439 = vmatpush1.msra.mxu0 0.0
    %2440 = vmatprep.subr.mxu0 0.0
    %2441 = vmatpush1.msra.mxu0 0.0
    %2442 = vmatprep.subr.mxu0 0.0
    %2443 = vmatpush1.msra.mxu0 0.0
    %2444 = vmatprep.subr.mxu0 0.0
    %2445 = vmatpush1.msra.mxu0 0.0
    %2446 = vmatprep.subr.mxu0 0.0
    %2447 = vmatpush1.msra.mxu0 0.0
    %2448 = vmatprep.subr.mxu0 0.0
    %2449 = vmatpush1.msra.mxu0 0.0
    %2450 = vmatprep.subr.mxu0 0.0
    %2451 = vmatpush1.msra.mxu0 0.0
    %2452 = vmatprep.subr.mxu0 0.0
    %2453 = vmatpush1.msra.mxu0 0.0
    %2454 = vmatprep.subr.mxu0 0.0
    %2455 = vmatpush1.msra.mxu0 0.0
    %2456 = vmatprep.subr.mxu0 0.0
    %2457 = vmatpush1.msra.mxu0 0.0
    %2458 = vmatprep.subr.mxu0 0.0
    %2459 = vmatpush1.msra.mxu0 0.0
    %2460 = vmatprep.subr.mxu0 0.0
    %2461 = vmatpush1.msra.mxu0 0.0
    %2462 = vmatprep.subr.mxu0 0.0
    %2463 = vmatpush1.msra.mxu0 0.0
    %2464 = vmatprep.subr.mxu0 0.0
    %2465 = vmatpush1.msra.mxu0 0.0
    %2466 = vmatprep.subr.mxu0 0.0
    %2467 = vmatpush1.msra.mxu0 0.0
    %2468 = vmatprep.subr.mxu0 0.0
    %2469 = vmatpush1.msra.mxu0 0.0
    %2470 = vmatprep.subr.mxu0 0.0
    %2471 = vmatpush1.msra.mxu0 0.0
    %2472 = vmatprep.subr.mxu0 0.0
    %2473 = vmatpush1.msra.mxu0 0.0
    %2474 = vmatprep.subr.mxu0 0.0
    %2475 = vmatpush1.msra.mxu0 0.0
    %2476 = vmatprep.subr.mxu0 0.0
    %2477 = vmatpush1.msra.mxu0 0.0
    %2478 = vmatprep.subr.mxu0 0.0
    %2479 = vmatpush1.msra.mxu0 0.0
    %2480 = vmatprep.subr.mxu0 0.0
    %2481 = vmatpush1.msra.mxu0 0.0
    %2482 = vmatprep.subr.mxu0 0.0
    %2483 = vmatpush1.msra.mxu0 0.0
    %2484 = vmatprep.subr.mxu0 0.0
    %2485 = vmatpush1.msra.mxu0 0.0
    %2486 = vmatprep.mubr.f32.mxu0 0.0
    %2487 = vmatmul.mubr.f32.gmra.mrb[0].mxu0 %v2420
    %v2488 = vpop.f32.mrb[0].mxu0
    %v2489 = vadd.f32 0.0, %v2488
    %v2490 = vpop.f32.mrb[0].mxu0
    %2491 = vdwg.mxu0
    %v2493 = vrot.slane %v2489, 1
    %v2496 = vadd.f32 %v2340, %v2489
    %v2497 = vadd.f32 %v2412, %v2493
    %v2498 = vadd.f32 %v2496, %v313
    %v2499 = vadd.f32 %v2497, %v313
    %v2500 = vxor.u32 %v2498, 2147483648
    %v2501 = vxor.u32 %v2499, 2147483648
    %v2502 = vmul.f32 %v2500, 1.442695
    %v2503 = vpow.pop %v2502
    %v2504 = vmul.f32 %v2501, 1.442695
    %v2505 = vpow.pop %v2504
    %v2506 = vadd.f32 %v2503, 1.0
    %v2507 = vadd.f32 %v2505, 1.0
    %v2508 = vrcp.pop %v2506
    %v2509 = vmul.f32 1.0, %v2508
    %v2510 = vrcp.pop %v2507
    %v2511 = vmul.f32 1.0, %v2510
    %v2512 = vtanh.pop %v2498
    %v2513 = vtanh.pop %v2499
    %v2514 = vmul.f32 %v2509, %v2010
    %v2515 = vmul.f32 %v2511, %v2011
    %2518 = vrot.lane.b32.xlu0 %v2512, 64
    %v2519 = vpop.permute.xlu0 %2518
    %2520 = vrot.lane.b32.xlu0 %v2513, 64
    %v2521 = vpop.permute.xlu0 %2520
    %v2524 = vmul.f32 %v2509, %v2519
    %v2525 = vmul.f32 %v2511, %v2521
    %2528 = vrot.lane.b32.xlu0 %v2524, 32
    %v2529 = vpop.permute.xlu0 %2528
    %2530 = vrot.lane.b32.xlu0 %v2525, 32
    %v2531 = vpop.permute.xlu0 %2530
    %v2534 = vadd.f32 %v2514, %v2529
    %v2535 = vadd.f32 %v2515, %v2531
    %v2536 = vtanh.pop %v2534
    %v2537 = vtanh.pop %v2535
    %2540 = vrot.lane.b32.xlu0 %v2536, 64
    %v2541 = vpop.permute.xlu0 %2540
    %2542 = vrot.lane.b32.xlu0 %v2537, 64
    %v2543 = vpop.permute.xlu0 %2542
    %v2546 = vmul.f32 %v2509, %v2541
    %v2547 = vmul.f32 %v2511, %v2543
    %2549 = vrot.lane.b32.xlu0 %v2546, 32
    %v2550 = vpop.permute.xlu0 %2549
    %v2551 = vsel %vm53, %v2550, 0
    %2553 = vmatprep.subr.mxu0 0.0
    %2554 = vmatpush1.xpose.msra.mxu0 %v444
    %2555 = vmatprep.subr.mxu0 0.0
    %2556 = vmatpush1.xpose.msra.mxu0 0.0
    %2557 = vmatprep.subr.mxu0 0.0
    %2558 = vmatpush1.xpose.msra.mxu0 0.0
    %2559 = vmatprep.subr.mxu0 0.0
    %2560 = vmatpush1.xpose.msra.mxu0 0.0
    %2561 = vmatprep.subr.mxu0 0.0
    %2562 = vmatpush1.xpose.msra.mxu0 0.0
    %2563 = vmatprep.subr.mxu0 0.0
    %2564 = vmatpush1.xpose.msra.mxu0 0.0
    %2565 = vmatprep.subr.mxu0 0.0
    %2566 = vmatpush1.xpose.msra.mxu0 0.0
    %2567 = vmatprep.subr.mxu0 0.0
    %2568 = vmatpush1.xpose.msra.mxu0 0.0
    %2569 = vmatprep.subr.mxu0 0.0
    %2570 = vmatpush1.xpose.msra.mxu0 0.0
    %2571 = vmatprep.subr.mxu0 0.0
    %2572 = vmatpush1.xpose.msra.mxu0 0.0
    %2573 = vmatprep.subr.mxu0 0.0
    %2574 = vmatpush1.xpose.msra.mxu0 0.0
    %2575 = vmatprep.subr.mxu0 0.0
    %2576 = vmatpush1.xpose.msra.mxu0 0.0
    %2577 = vmatprep.subr.mxu0 0.0
    %2578 = vmatpush1.xpose.msra.mxu0 0.0
    %2579 = vmatprep.subr.mxu0 0.0
    %2580 = vmatpush1.xpose.msra.mxu0 0.0
    %2581 = vmatprep.subr.mxu0 0.0
    %2582 = vmatpush1.xpose.msra.mxu0 0.0
    %2583 = vmatprep.subr.mxu0 0.0
    %2584 = vmatpush1.xpose.msra.mxu0 0.0
    %2585 = vmatprep.subr.mxu0 0.0
    %2586 = vmatpush1.xpose.msra.mxu0 0.0
    %2587 = vmatprep.subr.mxu0 0.0
    %2588 = vmatpush1.xpose.msra.mxu0 0.0
    %2589 = vmatprep.subr.mxu0 0.0
    %2590 = vmatpush1.xpose.msra.mxu0 0.0
    %2591 = vmatprep.subr.mxu0 0.0
    %2592 = vmatpush1.xpose.msra.mxu0 0.0
    %2593 = vmatprep.subr.mxu0 0.0
    %2594 = vmatpush1.xpose.msra.mxu0 0.0
    %2595 = vmatprep.subr.mxu0 0.0
    %2596 = vmatpush1.xpose.msra.mxu0 0.0
    %2597 = vmatprep.subr.mxu0 0.0
    %2598 = vmatpush1.xpose.msra.mxu0 0.0
    %2599 = vmatprep.subr.mxu0 0.0
    %2600 = vmatpush1.xpose.msra.mxu0 0.0
    %2601 = vmatprep.subr.mxu0 0.0
    %2602 = vmatpush1.xpose.msra.mxu0 0.0
    %2603 = vmatprep.subr.mxu0 0.0
    %2604 = vmatpush1.xpose.msra.mxu0 0.0
    %2605 = vmatprep.subr.mxu0 0.0
    %2606 = vmatpush1.xpose.msra.mxu0 0.0
    %2607 = vmatprep.subr.mxu0 0.0
    %2608 = vmatpush1.xpose.msra.mxu0 0.0
    %2609 = vmatprep.subr.mxu0 0.0
    %2610 = vmatpush1.xpose.msra.mxu0 0.0
    %2611 = vmatprep.subr.mxu0 0.0
    %2612 = vmatpush1.xpose.msra.mxu0 0.0
    %2613 = vmatprep.subr.mxu0 0.0
    %2614 = vmatpush1.xpose.msra.mxu0 0.0
    %2615 = vmatprep.subr.mxu0 0.0
    %2616 = vmatpush1.xpose.msra.mxu0 0.0
    %2617 = vmatprep.mubr.f32.mxu0 0.0
    %2618 = vmatmul.mubr.f32.gmra.mrb[0].mxu0 %v2551
    %v2619 = vpop.f32.mrb[0].mxu0
    %v2620 = vadd.f32 0.0, %v2619
    %v2621 = vpop.f32.mrb[0].mxu0
    %2622 = vdwg.mxu0
    %2624 = vrot.lane.b32.xlu0 %v2547, 32
    %v2625 = vpop.permute.xlu0 %2624
    %v2626 = vsel %vm53, %v2625, 0
    %2628 = vmatprep.subr.mxu0 0.0
    %2629 = vmatpush1.xpose.msra.mxu0 %v525
    %2630 = vmatprep.subr.mxu0 0.0
    %2631 = vmatpush1.xpose.msra.mxu0 0.0
    %2632 = vmatprep.subr.mxu0 0.0
    %2633 = vmatpush1.xpose.msra.mxu0 0.0
    %2634 = vmatprep.subr.mxu0 0.0
    %2635 = vmatpush1.xpose.msra.mxu0 0.0
    %2636 = vmatprep.subr.mxu0 0.0
    %2637 = vmatpush1.xpose.msra.mxu0 0.0
    %2638 = vmatprep.subr.mxu0 0.0
    %2639 = vmatpush1.xpose.msra.mxu0 0.0
    %2640 = vmatprep.subr.mxu0 0.0
    %2641 = vmatpush1.xpose.msra.mxu0 0.0
    %2642 = vmatprep.subr.mxu0 0.0
    %2643 = vmatpush1.xpose.msra.mxu0 0.0
    %2644 = vmatprep.subr.mxu0 0.0
    %2645 = vmatpush1.xpose.msra.mxu0 0.0
    %2646 = vmatprep.subr.mxu0 0.0
    %2647 = vmatpush1.xpose.msra.mxu0 0.0
    %2648 = vmatprep.subr.mxu0 0.0
    %2649 = vmatpush1.xpose.msra.mxu0 0.0
    %2650 = vmatprep.subr.mxu0 0.0
    %2651 = vmatpush1.xpose.msra.mxu0 0.0
    %2652 = vmatprep.subr.mxu0 0.0
    %2653 = vmatpush1.xpose.msra.mxu0 0.0
    %2654 = vmatprep.subr.mxu0 0.0
    %2655 = vmatpush1.xpose.msra.mxu0 0.0
    %2656 = vmatprep.subr.mxu0 0.0
    %2657 = vmatpush1.xpose.msra.mxu0 0.0
    %2658 = vmatprep.subr.mxu0 0.0
    %2659 = vmatpush1.xpose.msra.mxu0 0.0
    %2660 = vmatprep.subr.mxu0 0.0
    %2661 = vmatpush1.xpose.msra.mxu0 0.0
    %2662 = vmatprep.subr.mxu0 0.0
    %2663 = vmatpush1.xpose.msra.mxu0 0.0
    %2664 = vmatprep.subr.mxu0 0.0
    %2665 = vmatpush1.xpose.msra.mxu0 0.0
    %2666 = vmatprep.subr.mxu0 0.0
    %2667 = vmatpush1.xpose.msra.mxu0 0.0
    %2668 = vmatprep.subr.mxu0 0.0
    %2669 = vmatpush1.xpose.msra.mxu0 0.0
    %2670 = vmatprep.subr.mxu0 0.0
    %2671 = vmatpush1.xpose.msra.mxu0 0.0
    %2672 = vmatprep.subr.mxu0 0.0
    %2673 = vmatpush1.xpose.msra.mxu0 0.0
    %2674 = vmatprep.subr.mxu0 0.0
    %2675 = vmatpush1.xpose.msra.mxu0 0.0
    %2676 = vmatprep.subr.mxu0 0.0
    %2677 = vmatpush1.xpose.msra.mxu0 0.0
    %2678 = vmatprep.subr.mxu0 0.0
    %2679 = vmatpush1.xpose.msra.mxu0 0.0
    %2680 = vmatprep.subr.mxu0 0.0
    %2681 = vmatpush1.xpose.msra.mxu0 0.0
    %2682 = vmatprep.subr.mxu0 0.0
    %2683 = vmatpush1.xpose.msra.mxu0 0.0
    %2684 = vmatprep.subr.mxu0 0.0
    %2685 = vmatpush1.xpose.msra.mxu0 0.0
    %2686 = vmatprep.subr.mxu0 0.0
    %2687 = vmatpush1.xpose.msra.mxu0 0.0
    %2688 = vmatprep.subr.mxu0 0.0
    %2689 = vmatpush1.xpose.msra.mxu0 0.0
    %2690 = vmatprep.subr.mxu0 0.0
    %2691 = vmatpush1.xpose.msra.mxu0 0.0
    %2692 = vmatprep.mubr.f32.mxu0 0.0
    %2693 = vmatmul.mubr.f32.gmra.mrb[0].mxu0 %v2626
    %v2694 = vpop.f32.mrb[0].mxu0
    %v2695 = vadd.f32 0.0, %v2694
    %v2696 = vpop.f32.mrb[0].mxu0
    %2697 = vdwg.mxu0
    %vm2698 = vcmp.gt.f32.partialorder %v2415, 0.5
    %v2701 = vrot.slane %v2695, 7
    %v2702 = vsel %vm601, %v2701, %v2620
    %v2704 = vsel %vm2698, -1e+30, %v2702
    %v2705 = vsel %vm605, %v2704, -inf
    %2706 = vmax.xlane.f32.xlu0 %v2705
    %v2707 = vpop.xlane.xlu0 %2706
    %v2708 = vsub.f32 %v2704, %v2707
    %v2709 = vmul.f32 %v2708, 1.442695
    %v2710 = vpow.pop %v2709
    %v2711 = vsel %vm605, %v2710, 0.0
    %2712 = vadd.xlane.f32.xlu0 %v2711
    %v2713 = vpop.xlane.xlu0 %2712
    %v2714 = vrcp.pop %v2713
    %v2715 = vmul.f32 %v2710, %v2714
    %vm2716 = vcmp.eq.s32.totalorder %v308, 4
    %v2719 = vunpack.c.l.s4 1966171168
    %v2720 = vunpack.c.0.s8 %v2719
    %v2721 = vlaneseq
    %v2722 = vshrl.u32 %v2721, 7
    %v2723 = vsub.s32 %v2720, %v2722
    %v2724 = vrot.slane %v2715, %v2723
    %v2725 = vcombine.high %v2724, %v2724
    %v2727 = vunpack.c.l.s4 1966171168
    %v2728 = vunpack.c.0.s8 %v2727
    %v2729 = vlaneseq
    %v2730 = vshrl.u32 %v2729, 7
    %v2731 = vsub.s32 %v2728, %v2730
    %v2732 = vrot.slane %v2724, %v2731
    %v2734 = vunpack.c.l.s4 1966171168
    %v2735 = vunpack.c.0.s8 %v2734
    %v2736 = vlaneseq
    %v2737 = vshrl.u32 %v2736, 7
    %v2738 = vsub.s32 %v2735, %v2737
    %v2739 = vrot.slane %v2725, %v2738
    %v2740 = vlaneseq
    %v2741 = vshrl.u32 %v2740, 7
    %v2742 = vsub.s32 0, %v2741
    %v2743 = vrot.slane %v2732, %v2742
    %v2744 = vlaneseq
    %v2745 = vshrl.u32 %v2744, 7
    %v2746 = vsub.s32 0, %v2745
    %v2747 = vrot.slane %v2739, %v2746
    %v2750 = vsel %vm2716, %v2743, %v2226
    %v2751 = vsel %vm2716, %v2747, %v2227
    %vm2752 = vcmp.ge.f32.partialorder %v2704, %v2707
    %v2753 = vsel %vm2752, %v306, 8
    %v2754 = vsel %vm605, %v2753, 2147483647
    %v2755 = vand.u32 %v2754, 65535
    %v2756 = vshra.s32 %v2754, 16
    %v2757 = vcvt.s32.f32 %v2755
    %v2758 = vcvt.s32.f32 %v2756
    %2759 = vmin.xlane.f32.xlu0 %v2758
    %v2760 = vpop.xlane.xlu0 %2759
    %vm2761 = vcmp.eq.f32.partialorder %v2758, %v2760
    %v2762 = vsel %vm2761, %v2757, inf
    %2763 = vmin.xlane.f32.xlu0 %v2762
    %v2764 = vpop.xlane.xlu0 %2763
    %v2765 = vcvt.f32.s32 %v2764
    %v2766 = vcvt.f32.s32 %v2760
    %v2767 = vshll.u32 %v2766, 16
    %v2768 = vadd.s32 %v2767, %v2765
    %vm2769 = vcmp.eq.s32.totalorder %v306, %v2768
    %v2770 = vsel %vm2769, 1, 0
    %v2771 = vcvt.s32.f32 %v2770
    %v2774 = vunpack.c.l.s4 1966171168
    %v2775 = vunpack.c.0.s8 %v2774
    %v2776 = vlaneseq
    %v2777 = vshrl.u32 %v2776, 7
    %v2778 = vsub.s32 %v2775, %v2777
    %v2779 = vrot.slane %v2771, %v2778
    %v2780 = vcombine.high %v2779, %v2779
    %v2782 = vunpack.c.l.s4 1966171168
    %v2783 = vunpack.c.0.s8 %v2782
    %v2784 = vlaneseq
    %v2785 = vshrl.u32 %v2784, 7
    %v2786 = vsub.s32 %v2783, %v2785
    %v2787 = vrot.slane %v2779, %v2786
    %v2789 = vunpack.c.l.s4 1966171168
    %v2790 = vunpack.c.0.s8 %v2789
    %v2791 = vlaneseq
    %v2792 = vshrl.u32 %v2791, 7
    %v2793 = vsub.s32 %v2790, %v2792
    %v2794 = vrot.slane %v2780, %v2793
    %v2795 = vsel %vm696, %v2787, 0
    %2797 = vmatprep.subr.mxu0 0.0
    %2798 = vmatpush1.msra.mxu0 %v206
    %2799 = vmatprep.subr.mxu0 0.0
    %2800 = vmatpush1.msra.mxu0 0.0
    %2801 = vmatprep.subr.mxu0 0.0
    %2802 = vmatpush1.msra.mxu0 0.0
    %2803 = vmatprep.subr.mxu0 0.0
    %2804 = vmatpush1.msra.mxu0 0.0
    %2805 = vmatprep.subr.mxu0 0.0
    %2806 = vmatpush1.msra.mxu0 0.0
    %2807 = vmatprep.subr.mxu0 0.0
    %2808 = vmatpush1.msra.mxu0 0.0
    %2809 = vmatprep.subr.mxu0 0.0
    %2810 = vmatpush1.msra.mxu0 0.0
    %2811 = vmatprep.subr.mxu0 0.0
    %2812 = vmatpush1.msra.mxu0 0.0
    %2813 = vmatprep.subr.mxu0 0.0
    %2814 = vmatpush1.msra.mxu0 0.0
    %2815 = vmatprep.subr.mxu0 0.0
    %2816 = vmatpush1.msra.mxu0 0.0
    %2817 = vmatprep.subr.mxu0 0.0
    %2818 = vmatpush1.msra.mxu0 0.0
    %2819 = vmatprep.subr.mxu0 0.0
    %2820 = vmatpush1.msra.mxu0 0.0
    %2821 = vmatprep.subr.mxu0 0.0
    %2822 = vmatpush1.msra.mxu0 0.0
    %2823 = vmatprep.subr.mxu0 0.0
    %2824 = vmatpush1.msra.mxu0 0.0
    %2825 = vmatprep.subr.mxu0 0.0
    %2826 = vmatpush1.msra.mxu0 0.0
    %2827 = vmatprep.subr.mxu0 0.0
    %2828 = vmatpush1.msra.mxu0 0.0
    %2829 = vmatprep.subr.mxu0 0.0
    %2830 = vmatpush1.msra.mxu0 0.0
    %2831 = vmatprep.subr.mxu0 0.0
    %2832 = vmatpush1.msra.mxu0 0.0
    %2833 = vmatprep.subr.mxu0 0.0
    %2834 = vmatpush1.msra.mxu0 0.0
    %2835 = vmatprep.subr.mxu0 0.0
    %2836 = vmatpush1.msra.mxu0 0.0
    %2837 = vmatprep.subr.mxu0 0.0
    %2838 = vmatpush1.msra.mxu0 0.0
    %2839 = vmatprep.subr.mxu0 0.0
    %2840 = vmatpush1.msra.mxu0 0.0
    %2841 = vmatprep.subr.mxu0 0.0
    %2842 = vmatpush1.msra.mxu0 0.0
    %2843 = vmatprep.subr.mxu0 0.0
    %2844 = vmatpush1.msra.mxu0 0.0
    %2845 = vmatprep.subr.mxu0 0.0
    %2846 = vmatpush1.msra.mxu0 0.0
    %2847 = vmatprep.subr.mxu0 0.0
    %2848 = vmatpush1.msra.mxu0 0.0
    %2849 = vmatprep.subr.mxu0 0.0
    %2850 = vmatpush1.msra.mxu0 0.0
    %2851 = vmatprep.subr.mxu0 0.0
    %2852 = vmatpush1.msra.mxu0 0.0
    %2853 = vmatprep.subr.mxu0 0.0
    %2854 = vmatpush1.msra.mxu0 0.0
    %2855 = vmatprep.subr.mxu0 0.0
    %2856 = vmatpush1.msra.mxu0 0.0
    %2857 = vmatprep.subr.mxu0 0.0
    %2858 = vmatpush1.msra.mxu0 0.0
    %2859 = vmatprep.subr.mxu0 0.0
    %2860 = vmatpush1.msra.mxu0 0.0
    %2861 = vmatprep.mubr.f32.mxu0 0.0
    %2862 = vmatmul.mubr.f32.gmra.mrb[0].mxu0 %v2795
    %v2863 = vpop.f32.mrb[0].mxu0
    %v2864 = vadd.f32 0.0, %v2863
    %v2865 = vpop.f32.mrb[0].mxu0
    %2866 = vdwg.mxu0
    %v2867 = vsel %vm696, %v2794, 0
    %2869 = vmatprep.subr.mxu0 0.0
    %2870 = vmatpush1.msra.mxu0 %v211
    %2871 = vmatprep.subr.mxu0 0.0
    %2872 = vmatpush1.msra.mxu0 0.0
    %2873 = vmatprep.subr.mxu0 0.0
    %2874 = vmatpush1.msra.mxu0 0.0
    %2875 = vmatprep.subr.mxu0 0.0
    %2876 = vmatpush1.msra.mxu0 0.0
    %2877 = vmatprep.subr.mxu0 0.0
    %2878 = vmatpush1.msra.mxu0 0.0
    %2879 = vmatprep.subr.mxu0 0.0
    %2880 = vmatpush1.msra.mxu0 0.0
    %2881 = vmatprep.subr.mxu0 0.0
    %2882 = vmatpush1.msra.mxu0 0.0
    %2883 = vmatprep.subr.mxu0 0.0
    %2884 = vmatpush1.msra.mxu0 0.0
    %2885 = vmatprep.subr.mxu0 0.0
    %2886 = vmatpush1.msra.mxu0 0.0
    %2887 = vmatprep.subr.mxu0 0.0
    %2888 = vmatpush1.msra.mxu0 0.0
    %2889 = vmatprep.subr.mxu0 0.0
    %2890 = vmatpush1.msra.mxu0 0.0
    %2891 = vmatprep.subr.mxu0 0.0
    %2892 = vmatpush1.msra.mxu0 0.0
    %2893 = vmatprep.subr.mxu0 0.0
    %2894 = vmatpush1.msra.mxu0 0.0
    %2895 = vmatprep.subr.mxu0 0.0
    %2896 = vmatpush1.msra.mxu0 0.0
    %2897 = vmatprep.subr.mxu0 0.0
    %2898 = vmatpush1.msra.mxu0 0.0
    %2899 = vmatprep.subr.mxu0 0.0
    %2900 = vmatpush1.msra.mxu0 0.0
    %2901 = vmatprep.subr.mxu0 0.0
    %2902 = vmatpush1.msra.mxu0 0.0
    %2903 = vmatprep.subr.mxu0 0.0
    %2904 = vmatpush1.msra.mxu0 0.0
    %2905 = vmatprep.subr.mxu0 0.0
    %2906 = vmatpush1.msra.mxu0 0.0
    %2907 = vmatprep.subr.mxu0 0.0
    %2908 = vmatpush1.msra.mxu0 0.0
    %2909 = vmatprep.subr.mxu0 0.0
    %2910 = vmatpush1.msra.mxu0 0.0
    %2911 = vmatprep.subr.mxu0 0.0
    %2912 = vmatpush1.msra.mxu0 0.0
    %2913 = vmatprep.subr.mxu0 0.0
    %2914 = vmatpush1.msra.mxu0 0.0
    %2915 = vmatprep.subr.mxu0 0.0
    %2916 = vmatpush1.msra.mxu0 0.0
    %2917 = vmatprep.subr.mxu0 0.0
    %2918 = vmatpush1.msra.mxu0 0.0
    %2919 = vmatprep.subr.mxu0 0.0
    %2920 = vmatpush1.msra.mxu0 0.0
    %2921 = vmatprep.subr.mxu0 0.0
    %2922 = vmatpush1.msra.mxu0 0.0
    %2923 = vmatprep.subr.mxu0 0.0
    %2924 = vmatpush1.msra.mxu0 0.0
    %2925 = vmatprep.subr.mxu0 0.0
    %2926 = vmatpush1.msra.mxu0 0.0
    %2927 = vmatprep.subr.mxu0 0.0
    %2928 = vmatpush1.msra.mxu0 0.0
    %2929 = vmatprep.subr.mxu0 0.0
    %2930 = vmatpush1.msra.mxu0 0.0
    %2931 = vmatprep.subr.mxu0 0.0
    %2932 = vmatpush1.msra.mxu0 0.0
    %2933 = vmatprep.mubr.f32.mxu0 0.0
    %2934 = vmatmul.mubr.f32.gmra.mrb[0].mxu0 %v2867
    %v2935 = vpop.f32.mrb[0].mxu0
    %v2936 = vadd.f32 0.0, %v2935
    %v2937 = vpop.f32.mrb[0].mxu0
    %2938 = vdwg.mxu0
    %v2939 = vmax.f32 %v2415, %v2771
    %v2940 = vrot.slane %v2547, 7
    %v2941 = vsel %vm601, %v2940, %v2546
    %2942 = vrot.lane.b32.xlu0 %v2941, 32
    %v2943 = vpop.permute.xlu0 %2942
    %v2944 = vsel %vm53, %v2943, 0
    %2946 = vmatprep.subr.mxu0 0.0
    %2947 = vmatpush1.msra.mxu0 %v214
    %2948 = vmatprep.subr.mxu0 0.0
    %2949 = vmatpush1.msra.mxu0 %v215
    %2950 = vmatprep.subr.mxu0 0.0
    %2951 = vmatpush1.msra.mxu0 %v216
    %2952 = vmatprep.subr.mxu0 0.0
    %2953 = vmatpush1.msra.mxu0 %v217
    %2954 = vmatprep.subr.mxu0 0.0
    %2955 = vmatpush1.msra.mxu0 0.0
    %2956 = vmatprep.subr.mxu0 0.0
    %2957 = vmatpush1.msra.mxu0 0.0
    %2958 = vmatprep.subr.mxu0 0.0
    %2959 = vmatpush1.msra.mxu0 0.0
    %2960 = vmatprep.subr.mxu0 0.0
    %2961 = vmatpush1.msra.mxu0 0.0
    %2962 = vmatprep.subr.mxu0 0.0
    %2963 = vmatpush1.msra.mxu0 0.0
    %2964 = vmatprep.subr.mxu0 0.0
    %2965 = vmatpush1.msra.mxu0 0.0
    %2966 = vmatprep.subr.mxu0 0.0
    %2967 = vmatpush1.msra.mxu0 0.0
    %2968 = vmatprep.subr.mxu0 0.0
    %2969 = vmatpush1.msra.mxu0 0.0
    %2970 = vmatprep.subr.mxu0 0.0
    %2971 = vmatpush1.msra.mxu0 0.0
    %2972 = vmatprep.subr.mxu0 0.0
    %2973 = vmatpush1.msra.mxu0 0.0
    %2974 = vmatprep.subr.mxu0 0.0
    %2975 = vmatpush1.msra.mxu0 0.0
    %2976 = vmatprep.subr.mxu0 0.0
    %2977 = vmatpush1.msra.mxu0 0.0
    %2978 = vmatprep.subr.mxu0 0.0
    %2979 = vmatpush1.msra.mxu0 0.0
    %2980 = vmatprep.subr.mxu0 0.0
    %2981 = vmatpush1.msra.mxu0 0.0
    %2982 = vmatprep.subr.mxu0 0.0
    %2983 = vmatpush1.msra.mxu0 0.0
    %2984 = vmatprep.subr.mxu0 0.0
    %2985 = vmatpush1.msra.mxu0 0.0
    %2986 = vmatprep.subr.mxu0 0.0
    %2987 = vmatpush1.msra.mxu0 0.0
    %2988 = vmatprep.subr.mxu0 0.0
    %2989 = vmatpush1.msra.mxu0 0.0
    %2990 = vmatprep.subr.mxu0 0.0
    %2991 = vmatpush1.msra.mxu0 0.0
    %2992 = vmatprep.subr.mxu0 0.0
    %2993 = vmatpush1.msra.mxu0 0.0
    %2994 = vmatprep.subr.mxu0 0.0
    %2995 = vmatpush1.msra.mxu0 0.0
    %2996 = vmatprep.subr.mxu0 0.0
    %2997 = vmatpush1.msra.mxu0 0.0
    %2998 = vmatprep.subr.mxu0 0.0
    %2999 = vmatpush1.msra.mxu0 0.0
    %3000 = vmatprep.subr.mxu0 0.0
    %3001 = vmatpush1.msra.mxu0 0.0
    %3002 = vmatprep.subr.mxu0 0.0
    %3003 = vmatpush1.msra.mxu0 0.0
    %3004 = vmatprep.subr.mxu0 0.0
    %3005 = vmatpush1.msra.mxu0 0.0
    %3006 = vmatprep.subr.mxu0 0.0
    %3007 = vmatpush1.msra.mxu0 0.0
    %3008 = vmatprep.subr.mxu0 0.0
    %3009 = vmatpush1.msra.mxu0 0.0
    %3010 = vmatprep.mubr.f32.mxu0 0.0
    %3011 = vmatmul.mubr.f32.gmra.mrb[0].mxu0 %v2944
    %v3012 = vpop.f32.mrb[0].mxu0
    %v3013 = vadd.f32 0.0, %v3012
    %v3014 = vpop.f32.mrb[0].mxu0
    %3015 = vdwg.mxu0
    %v3017 = vrot.slane %v3013, 1
    %v3020 = vadd.f32 %v2864, %v3013
    %v3021 = vadd.f32 %v2936, %v3017
    %v3022 = vadd.f32 %v3020, %v313
    %v3023 = vadd.f32 %v3021, %v313
    %v3024 = vxor.u32 %v3022, 2147483648
    %v3025 = vxor.u32 %v3023, 2147483648
    %v3026 = vmul.f32 %v3024, 1.442695
    %v3027 = vpow.pop %v3026
    %v3028 = vmul.f32 %v3025, 1.442695
    %v3029 = vpow.pop %v3028
    %v3030 = vadd.f32 %v3027, 1.0
    %v3031 = vadd.f32 %v3029, 1.0
    %v3032 = vrcp.pop %v3030
    %v3033 = vmul.f32 1.0, %v3032
    %v3034 = vrcp.pop %v3031
    %v3035 = vmul.f32 1.0, %v3034
    %v3036 = vtanh.pop %v3022
    %v3037 = vtanh.pop %v3023
    %v3038 = vmul.f32 %v3033, %v2534
    %v3039 = vmul.f32 %v3035, %v2535
    %3042 = vrot.lane.b32.xlu0 %v3036, 64
    %v3043 = vpop.permute.xlu0 %3042
    %3044 = vrot.lane.b32.xlu0 %v3037, 64
    %v3045 = vpop.permute.xlu0 %3044
    %v3048 = vmul.f32 %v3033, %v3043
    %v3049 = vmul.f32 %v3035, %v3045
    %3052 = vrot.lane.b32.xlu0 %v3048, 32
    %v3053 = vpop.permute.xlu0 %3052
    %3054 = vrot.lane.b32.xlu0 %v3049, 32
    %v3055 = vpop.permute.xlu0 %3054
    %v3058 = vadd.f32 %v3038, %v3053
    %v3059 = vadd.f32 %v3039, %v3055
    %v3060 = vtanh.pop %v3058
    %v3061 = vtanh.pop %v3059
    %3064 = vrot.lane.b32.xlu0 %v3060, 64
    %v3065 = vpop.permute.xlu0 %3064
    %3066 = vrot.lane.b32.xlu0 %v3061, 64
    %v3067 = vpop.permute.xlu0 %3066
    %v3070 = vmul.f32 %v3033, %v3065
    %v3071 = vmul.f32 %v3035, %v3067
    %3073 = vrot.lane.b32.xlu0 %v3070, 32
    %v3074 = vpop.permute.xlu0 %3073
    %v3075 = vsel %vm53, %v3074, 0
    %3077 = vmatprep.subr.mxu0 0.0
    %3078 = vmatpush1.xpose.msra.mxu0 %v444
    %3079 = vmatprep.subr.mxu0 0.0
    %3080 = vmatpush1.xpose.msra.mxu0 0.0
    %3081 = vmatprep.subr.mxu0 0.0
    %3082 = vmatpush1.xpose.msra.mxu0 0.0
    %3083 = vmatprep.subr.mxu0 0.0
    %3084 = vmatpush1.xpose.msra.mxu0 0.0
    %3085 = vmatprep.subr.mxu0 0.0
    %3086 = vmatpush1.xpose.msra.mxu0 0.0
    %3087 = vmatprep.subr.mxu0 0.0
    %3088 = vmatpush1.xpose.msra.mxu0 0.0
    %3089 = vmatprep.subr.mxu0 0.0
    %3090 = vmatpush1.xpose.msra.mxu0 0.0
    %3091 = vmatprep.subr.mxu0 0.0
    %3092 = vmatpush1.xpose.msra.mxu0 0.0
    %3093 = vmatprep.subr.mxu0 0.0
    %3094 = vmatpush1.xpose.msra.mxu0 0.0
    %3095 = vmatprep.subr.mxu0 0.0
    %3096 = vmatpush1.xpose.msra.mxu0 0.0
    %3097 = vmatprep.subr.mxu0 0.0
    %3098 = vmatpush1.xpose.msra.mxu0 0.0
    %3099 = vmatprep.subr.mxu0 0.0
    %3100 = vmatpush1.xpose.msra.mxu0 0.0
    %3101 = vmatprep.subr.mxu0 0.0
    %3102 = vmatpush1.xpose.msra.mxu0 0.0
    %3103 = vmatprep.subr.mxu0 0.0
    %3104 = vmatpush1.xpose.msra.mxu0 0.0
    %3105 = vmatprep.subr.mxu0 0.0
    %3106 = vmatpush1.xpose.msra.mxu0 0.0
    %3107 = vmatprep.subr.mxu0 0.0
    %3108 = vmatpush1.xpose.msra.mxu0 0.0
    %3109 = vmatprep.subr.mxu0 0.0
    %3110 = vmatpush1.xpose.msra.mxu0 0.0
    %3111 = vmatprep.subr.mxu0 0.0
    %3112 = vmatpush1.xpose.msra.mxu0 0.0
    %3113 = vmatprep.subr.mxu0 0.0
    %3114 = vmatpush1.xpose.msra.mxu0 0.0
    %3115 = vmatprep.subr.mxu0 0.0
    %3116 = vmatpush1.xpose.msra.mxu0 0.0
    %3117 = vmatprep.subr.mxu0 0.0
    %3118 = vmatpush1.xpose.msra.mxu0 0.0
    %3119 = vmatprep.subr.mxu0 0.0
    %3120 = vmatpush1.xpose.msra.mxu0 0.0
    %3121 = vmatprep.subr.mxu0 0.0
    %3122 = vmatpush1.xpose.msra.mxu0 0.0
    %3123 = vmatprep.subr.mxu0 0.0
    %3124 = vmatpush1.xpose.msra.mxu0 0.0
    %3125 = vmatprep.subr.mxu0 0.0
    %3126 = vmatpush1.xpose.msra.mxu0 0.0
    %3127 = vmatprep.subr.mxu0 0.0
    %3128 = vmatpush1.xpose.msra.mxu0 0.0
    %3129 = vmatprep.subr.mxu0 0.0
    %3130 = vmatpush1.xpose.msra.mxu0 0.0
    %3131 = vmatprep.subr.mxu0 0.0
    %3132 = vmatpush1.xpose.msra.mxu0 0.0
    %3133 = vmatprep.subr.mxu0 0.0
    %3134 = vmatpush1.xpose.msra.mxu0 0.0
    %3135 = vmatprep.subr.mxu0 0.0
    %3136 = vmatpush1.xpose.msra.mxu0 0.0
    %3137 = vmatprep.subr.mxu0 0.0
    %3138 = vmatpush1.xpose.msra.mxu0 0.0
    %3139 = vmatprep.subr.mxu0 0.0
    %3140 = vmatpush1.xpose.msra.mxu0 0.0
    %3141 = vmatprep.mubr.f32.mxu0 0.0
    %3142 = vmatmul.mubr.f32.gmra.mrb[0].mxu0 %v3075
    %v3143 = vpop.f32.mrb[0].mxu0
    %v3144 = vadd.f32 0.0, %v3143
    %v3145 = vpop.f32.mrb[0].mxu0
    %3146 = vdwg.mxu0
    %3148 = vrot.lane.b32.xlu0 %v3071, 32
    %v3149 = vpop.permute.xlu0 %3148
    %v3150 = vsel %vm53, %v3149, 0
    %3152 = vmatprep.subr.mxu0 0.0
    %3153 = vmatpush1.xpose.msra.mxu0 %v525
    %3154 = vmatprep.subr.mxu0 0.0
    %3155 = vmatpush1.xpose.msra.mxu0 0.0
    %3156 = vmatprep.subr.mxu0 0.0
    %3157 = vmatpush1.xpose.msra.mxu0 0.0
    %3158 = vmatprep.subr.mxu0 0.0
    %3159 = vmatpush1.xpose.msra.mxu0 0.0
    %3160 = vmatprep.subr.mxu0 0.0
    %3161 = vmatpush1.xpose.msra.mxu0 0.0
    %3162 = vmatprep.subr.mxu0 0.0
    %3163 = vmatpush1.xpose.msra.mxu0 0.0
    %3164 = vmatprep.subr.mxu0 0.0
    %3165 = vmatpush1.xpose.msra.mxu0 0.0
    %3166 = vmatprep.subr.mxu0 0.0
    %3167 = vmatpush1.xpose.msra.mxu0 0.0
    %3168 = vmatprep.subr.mxu0 0.0
    %3169 = vmatpush1.xpose.msra.mxu0 0.0
    %3170 = vmatprep.subr.mxu0 0.0
    %3171 = vmatpush1.xpose.msra.mxu0 0.0
    %3172 = vmatprep.subr.mxu0 0.0
    %3173 = vmatpush1.xpose.msra.mxu0 0.0
    %3174 = vmatprep.subr.mxu0 0.0
    %3175 = vmatpush1.xpose.msra.mxu0 0.0
    %3176 = vmatprep.subr.mxu0 0.0
    %3177 = vmatpush1.xpose.msra.mxu0 0.0
    %3178 = vmatprep.subr.mxu0 0.0
    %3179 = vmatpush1.xpose.msra.mxu0 0.0
    %3180 = vmatprep.subr.mxu0 0.0
    %3181 = vmatpush1.xpose.msra.mxu0 0.0
    %3182 = vmatprep.subr.mxu0 0.0
    %3183 = vmatpush1.xpose.msra.mxu0 0.0
    %3184 = vmatprep.subr.mxu0 0.0
    %3185 = vmatpush1.xpose.msra.mxu0 0.0
    %3186 = vmatprep.subr.mxu0 0.0
    %3187 = vmatpush1.xpose.msra.mxu0 0.0
    %3188 = vmatprep.subr.mxu0 0.0
    %3189 = vmatpush1.xpose.msra.mxu0 0.0
    %3190 = vmatprep.subr.mxu0 0.0
    %3191 = vmatpush1.xpose.msra.mxu0 0.0
    %3192 = vmatprep.subr.mxu0 0.0
    %3193 = vmatpush1.xpose.msra.mxu0 0.0
    %3194 = vmatprep.subr.mxu0 0.0
    %3195 = vmatpush1.xpose.msra.mxu0 0.0
    %3196 = vmatprep.subr.mxu0 0.0
    %3197 = vmatpush1.xpose.msra.mxu0 0.0
    %3198 = vmatprep.subr.mxu0 0.0
    %3199 = vmatpush1.xpose.msra.mxu0 0.0
    %3200 = vmatprep.subr.mxu0 0.0
    %3201 = vmatpush1.xpose.msra.mxu0 0.0
    %3202 = vmatprep.subr.mxu0 0.0
    %3203 = vmatpush1.xpose.msra.mxu0 0.0
    %3204 = vmatprep.subr.mxu0 0.0
    %3205 = vmatpush1.xpose.msra.mxu0 0.0
    %3206 = vmatprep.subr.mxu0 0.0
    %3207 = vmatpush1.xpose.msra.mxu0 0.0
    %3208 = vmatprep.subr.mxu0 0.0
    %3209 = vmatpush1.xpose.msra.mxu0 0.0
    %3210 = vmatprep.subr.mxu0 0.0
    %3211 = vmatpush1.xpose.msra.mxu0 0.0
    %3212 = vmatprep.subr.mxu0 0.0
    %3213 = vmatpush1.xpose.msra.mxu0 0.0
    %3214 = vmatprep.subr.mxu0 0.0
    %3215 = vmatpush1.xpose.msra.mxu0 0.0
    %3216 = vmatprep.mubr.f32.mxu0 0.0
    %3217 = vmatmul.mubr.f32.gmra.mrb[0].mxu0 %v3150
    %v3218 = vpop.f32.mrb[0].mxu0
    %v3219 = vadd.f32 0.0, %v3218
    %v3220 = vpop.f32.mrb[0].mxu0
    %3221 = vdwg.mxu0
    %vm3222 = vcmp.gt.f32.partialorder %v2939, 0.5
    %v3225 = vrot.slane %v3219, 7
    %v3226 = vsel %vm601, %v3225, %v3144
    %v3228 = vsel %vm3222, -1e+30, %v3226
    %v3229 = vsel %vm605, %v3228, -inf
    %3230 = vmax.xlane.f32.xlu0 %v3229
    %v3231 = vpop.xlane.xlu0 %3230
    %v3232 = vsub.f32 %v3228, %v3231
    %v3233 = vmul.f32 %v3232, 1.442695
    %v3234 = vpow.pop %v3233
    %v3235 = vsel %vm605, %v3234, 0.0
    %3236 = vadd.xlane.f32.xlu0 %v3235
    %v3237 = vpop.xlane.xlu0 %3236
    %v3238 = vrcp.pop %v3237
    %v3239 = vmul.f32 %v3234, %v3238
    %vm3240 = vcmp.eq.s32.totalorder %v308, 5
    %v3243 = vunpack.c.l.s4 1966171168
    %v3244 = vunpack.c.0.s8 %v3243
    %v3245 = vlaneseq
    %v3246 = vshrl.u32 %v3245, 7
    %v3247 = vsub.s32 %v3244, %v3246
    %v3248 = vrot.slane %v3239, %v3247
    %v3249 = vcombine.high %v3248, %v3248
    %v3251 = vunpack.c.l.s4 1966171168
    %v3252 = vunpack.c.0.s8 %v3251
    %v3253 = vlaneseq
    %v3254 = vshrl.u32 %v3253, 7
    %v3255 = vsub.s32 %v3252, %v3254
    %v3256 = vrot.slane %v3248, %v3255
    %v3258 = vunpack.c.l.s4 1966171168
    %v3259 = vunpack.c.0.s8 %v3258
    %v3260 = vlaneseq
    %v3261 = vshrl.u32 %v3260, 7
    %v3262 = vsub.s32 %v3259, %v3261
    %v3263 = vrot.slane %v3249, %v3262
    %v3264 = vlaneseq
    %v3265 = vshrl.u32 %v3264, 7
    %v3266 = vsub.s32 0, %v3265
    %v3267 = vrot.slane %v3256, %v3266
    %v3268 = vlaneseq
    %v3269 = vshrl.u32 %v3268, 7
    %v3270 = vsub.s32 0, %v3269
    %v3271 = vrot.slane %v3263, %v3270
    %v3274 = vsel %vm3240, %v3267, %v2750
    %v3275 = vsel %vm3240, %v3271, %v2751
    %vm3276 = vcmp.ge.f32.partialorder %v3228, %v3231
    %v3277 = vsel %vm3276, %v306, 8
    %v3278 = vsel %vm605, %v3277, 2147483647
    %v3279 = vand.u32 %v3278, 65535
    %v3280 = vshra.s32 %v3278, 16
    %v3281 = vcvt.s32.f32 %v3279
    %v3282 = vcvt.s32.f32 %v3280
    %3283 = vmin.xlane.f32.xlu0 %v3282
    %v3284 = vpop.xlane.xlu0 %3283
    %vm3285 = vcmp.eq.f32.partialorder %v3282, %v3284
    %v3286 = vsel %vm3285, %v3281, inf
    %3287 = vmin.xlane.f32.xlu0 %v3286
    %v3288 = vpop.xlane.xlu0 %3287
    %v3289 = vcvt.f32.s32 %v3288
    %v3290 = vcvt.f32.s32 %v3284
    %v3291 = vshll.u32 %v3290, 16
    %v3292 = vadd.s32 %v3291, %v3289
    %vm3293 = vcmp.eq.s32.totalorder %v306, %v3292
    %v3294 = vsel %vm3293, 1, 0
    %v3295 = vcvt.s32.f32 %v3294
    %v3298 = vunpack.c.l.s4 1966171168
    %v3299 = vunpack.c.0.s8 %v3298
    %v3300 = vlaneseq
    %v3301 = vshrl.u32 %v3300, 7
    %v3302 = vsub.s32 %v3299, %v3301
    %v3303 = vrot.slane %v3295, %v3302
    %v3304 = vcombine.high %v3303, %v3303
    %v3306 = vunpack.c.l.s4 1966171168
    %v3307 = vunpack.c.0.s8 %v3306
    %v3308 = vlaneseq
    %v3309 = vshrl.u32 %v3308, 7
    %v3310 = vsub.s32 %v3307, %v3309
    %v3311 = vrot.slane %v3303, %v3310
    %v3313 = vunpack.c.l.s4 1966171168
    %v3314 = vunpack.c.0.s8 %v3313
    %v3315 = vlaneseq
    %v3316 = vshrl.u32 %v3315, 7
    %v3317 = vsub.s32 %v3314, %v3316
    %v3318 = vrot.slane %v3304, %v3317
    %v3319 = vsel %vm696, %v3311, 0
    %3321 = vmatprep.subr.mxu0 0.0
    %3322 = vmatpush1.msra.mxu0 %v206
    %3323 = vmatprep.subr.mxu0 0.0
    %3324 = vmatpush1.msra.mxu0 0.0
    %3325 = vmatprep.subr.mxu0 0.0
    %3326 = vmatpush1.msra.mxu0 0.0
    %3327 = vmatprep.subr.mxu0 0.0
    %3328 = vmatpush1.msra.mxu0 0.0
    %3329 = vmatprep.subr.mxu0 0.0
    %3330 = vmatpush1.msra.mxu0 0.0
    %3331 = vmatprep.subr.mxu0 0.0
    %3332 = vmatpush1.msra.mxu0 0.0
    %3333 = vmatprep.subr.mxu0 0.0
    %3334 = vmatpush1.msra.mxu0 0.0
    %3335 = vmatprep.subr.mxu0 0.0
    %3336 = vmatpush1.msra.mxu0 0.0
    %3337 = vmatprep.subr.mxu0 0.0
    %3338 = vmatpush1.msra.mxu0 0.0
    %3339 = vmatprep.subr.mxu0 0.0
    %3340 = vmatpush1.msra.mxu0 0.0
    %3341 = vmatprep.subr.mxu0 0.0
    %3342 = vmatpush1.msra.mxu0 0.0
    %3343 = vmatprep.subr.mxu0 0.0
    %3344 = vmatpush1.msra.mxu0 0.0
    %3345 = vmatprep.subr.mxu0 0.0
    %3346 = vmatpush1.msra.mxu0 0.0
    %3347 = vmatprep.subr.mxu0 0.0
    %3348 = vmatpush1.msra.mxu0 0.0
    %3349 = vmatprep.subr.mxu0 0.0
    %3350 = vmatpush1.msra.mxu0 0.0
    %3351 = vmatprep.subr.mxu0 0.0
    %3352 = vmatpush1.msra.mxu0 0.0
    %3353 = vmatprep.subr.mxu0 0.0
    %3354 = vmatpush1.msra.mxu0 0.0
    %3355 = vmatprep.subr.mxu0 0.0
    %3356 = vmatpush1.msra.mxu0 0.0
    %3357 = vmatprep.subr.mxu0 0.0
    %3358 = vmatpush1.msra.mxu0 0.0
    %3359 = vmatprep.subr.mxu0 0.0
    %3360 = vmatpush1.msra.mxu0 0.0
    %3361 = vmatprep.subr.mxu0 0.0
    %3362 = vmatpush1.msra.mxu0 0.0
    %3363 = vmatprep.subr.mxu0 0.0
    %3364 = vmatpush1.msra.mxu0 0.0
    %3365 = vmatprep.subr.mxu0 0.0
    %3366 = vmatpush1.msra.mxu0 0.0
    %3367 = vmatprep.subr.mxu0 0.0
    %3368 = vmatpush1.msra.mxu0 0.0
    %3369 = vmatprep.subr.mxu0 0.0
    %3370 = vmatpush1.msra.mxu0 0.0
    %3371 = vmatprep.subr.mxu0 0.0
    %3372 = vmatpush1.msra.mxu0 0.0
    %3373 = vmatprep.subr.mxu0 0.0
    %3374 = vmatpush1.msra.mxu0 0.0
    %3375 = vmatprep.subr.mxu0 0.0
    %3376 = vmatpush1.msra.mxu0 0.0
    %3377 = vmatprep.subr.mxu0 0.0
    %3378 = vmatpush1.msra.mxu0 0.0
    %3379 = vmatprep.subr.mxu0 0.0
    %3380 = vmatpush1.msra.mxu0 0.0
    %3381 = vmatprep.subr.mxu0 0.0
    %3382 = vmatpush1.msra.mxu0 0.0
    %3383 = vmatprep.subr.mxu0 0.0
    %3384 = vmatpush1.msra.mxu0 0.0
    %3385 = vmatprep.mubr.f32.mxu0 0.0
    %3386 = vmatmul.mubr.f32.gmra.mrb[0].mxu0 %v3319
    %v3387 = vpop.f32.mrb[0].mxu0
    %v3388 = vadd.f32 0.0, %v3387
    %v3389 = vpop.f32.mrb[0].mxu0
    %3390 = vdwg.mxu0
    %v3391 = vsel %vm696, %v3318, 0
    %3393 = vmatprep.subr.mxu0 0.0
    %3394 = vmatpush1.msra.mxu0 %v211
    %3395 = vmatprep.subr.mxu0 0.0
    %3396 = vmatpush1.msra.mxu0 0.0
    %3397 = vmatprep.subr.mxu0 0.0
    %3398 = vmatpush1.msra.mxu0 0.0
    %3399 = vmatprep.subr.mxu0 0.0
    %3400 = vmatpush1.msra.mxu0 0.0
    %3401 = vmatprep.subr.mxu0 0.0
    %3402 = vmatpush1.msra.mxu0 0.0
    %3403 = vmatprep.subr.mxu0 0.0
    %3404 = vmatpush1.msra.mxu0 0.0
    %3405 = vmatprep.subr.mxu0 0.0
    %3406 = vmatpush1.msra.mxu0 0.0
    %3407 = vmatprep.subr.mxu0 0.0
    %3408 = vmatpush1.msra.mxu0 0.0
    %3409 = vmatprep.subr.mxu0 0.0
    %3410 = vmatpush1.msra.mxu0 0.0
    %3411 = vmatprep.subr.mxu0 0.0
    %3412 = vmatpush1.msra.mxu0 0.0
    %3413 = vmatprep.subr.mxu0 0.0
    %3414 = vmatpush1.msra.mxu0 0.0
    %3415 = vmatprep.subr.mxu0 0.0
    %3416 = vmatpush1.msra.mxu0 0.0
    %3417 = vmatprep.subr.mxu0 0.0
    %3418 = vmatpush1.msra.mxu0 0.0
    %3419 = vmatprep.subr.mxu0 0.0
    %3420 = vmatpush1.msra.mxu0 0.0
    %3421 = vmatprep.subr.mxu0 0.0
    %3422 = vmatpush1.msra.mxu0 0.0
    %3423 = vmatprep.subr.mxu0 0.0
    %3424 = vmatpush1.msra.mxu0 0.0
    %3425 = vmatprep.subr.mxu0 0.0
    %3426 = vmatpush1.msra.mxu0 0.0
    %3427 = vmatprep.subr.mxu0 0.0
    %3428 = vmatpush1.msra.mxu0 0.0
    %3429 = vmatprep.subr.mxu0 0.0
    %3430 = vmatpush1.msra.mxu0 0.0
    %3431 = vmatprep.subr.mxu0 0.0
    %3432 = vmatpush1.msra.mxu0 0.0
    %3433 = vmatprep.subr.mxu0 0.0
    %3434 = vmatpush1.msra.mxu0 0.0
    %3435 = vmatprep.subr.mxu0 0.0
    %3436 = vmatpush1.msra.mxu0 0.0
    %3437 = vmatprep.subr.mxu0 0.0
    %3438 = vmatpush1.msra.mxu0 0.0
    %3439 = vmatprep.subr.mxu0 0.0
    %3440 = vmatpush1.msra.mxu0 0.0
    %3441 = vmatprep.subr.mxu0 0.0
    %3442 = vmatpush1.msra.mxu0 0.0
    %3443 = vmatprep.subr.mxu0 0.0
    %3444 = vmatpush1.msra.mxu0 0.0
    %3445 = vmatprep.subr.mxu0 0.0
    %3446 = vmatpush1.msra.mxu0 0.0
    %3447 = vmatprep.subr.mxu0 0.0
    %3448 = vmatpush1.msra.mxu0 0.0
    %3449 = vmatprep.subr.mxu0 0.0
    %3450 = vmatpush1.msra.mxu0 0.0
    %3451 = vmatprep.subr.mxu0 0.0
    %3452 = vmatpush1.msra.mxu0 0.0
    %3453 = vmatprep.subr.mxu0 0.0
    %3454 = vmatpush1.msra.mxu0 0.0
    %3455 = vmatprep.subr.mxu0 0.0
    %3456 = vmatpush1.msra.mxu0 0.0
    %3457 = vmatprep.mubr.f32.mxu0 0.0
    %3458 = vmatmul.mubr.f32.gmra.mrb[0].mxu0 %v3391
    %v3459 = vpop.f32.mrb[0].mxu0
    %v3460 = vadd.f32 0.0, %v3459
    %v3461 = vpop.f32.mrb[0].mxu0
    %3462 = vdwg.mxu0
    %v3463 = vmax.f32 %v2939, %v3295
    %v3464 = vrot.slane %v3071, 7
    %v3465 = vsel %vm601, %v3464, %v3070
    %3466 = vrot.lane.b32.xlu0 %v3465, 32
    %v3467 = vpop.permute.xlu0 %3466
    %v3468 = vsel %vm53, %v3467, 0
    %3470 = vmatprep.subr.mxu0 0.0
    %3471 = vmatpush1.msra.mxu0 %v214
    %3472 = vmatprep.subr.mxu0 0.0
    %3473 = vmatpush1.msra.mxu0 %v215
    %3474 = vmatprep.subr.mxu0 0.0
    %3475 = vmatpush1.msra.mxu0 %v216
    %3476 = vmatprep.subr.mxu0 0.0
    %3477 = vmatpush1.msra.mxu0 %v217
    %3478 = vmatprep.subr.mxu0 0.0
    %3479 = vmatpush1.msra.mxu0 0.0
    %3480 = vmatprep.subr.mxu0 0.0
    %3481 = vmatpush1.msra.mxu0 0.0
    %3482 = vmatprep.subr.mxu0 0.0
    %3483 = vmatpush1.msra.mxu0 0.0
    %3484 = vmatprep.subr.mxu0 0.0
    %3485 = vmatpush1.msra.mxu0 0.0
    %3486 = vmatprep.subr.mxu0 0.0
    %3487 = vmatpush1.msra.mxu0 0.0
    %3488 = vmatprep.subr.mxu0 0.0
    %3489 = vmatpush1.msra.mxu0 0.0
    %3490 = vmatprep.subr.mxu0 0.0
    %3491 = vmatpush1.msra.mxu0 0.0
    %3492 = vmatprep.subr.mxu0 0.0
    %3493 = vmatpush1.msra.mxu0 0.0
    %3494 = vmatprep.subr.mxu0 0.0
    %3495 = vmatpush1.msra.mxu0 0.0
    %3496 = vmatprep.subr.mxu0 0.0
    %3497 = vmatpush1.msra.mxu0 0.0
    %3498 = vmatprep.subr.mxu0 0.0
    %3499 = vmatpush1.msra.mxu0 0.0
    %3500 = vmatprep.subr.mxu0 0.0
    %3501 = vmatpush1.msra.mxu0 0.0
    %3502 = vmatprep.subr.mxu0 0.0
    %3503 = vmatpush1.msra.mxu0 0.0
    %3504 = vmatprep.subr.mxu0 0.0
    %3505 = vmatpush1.msra.mxu0 0.0
    %3506 = vmatprep.subr.mxu0 0.0
    %3507 = vmatpush1.msra.mxu0 0.0
    %3508 = vmatprep.subr.mxu0 0.0
    %3509 = vmatpush1.msra.mxu0 0.0
    %3510 = vmatprep.subr.mxu0 0.0
    %3511 = vmatpush1.msra.mxu0 0.0
    %3512 = vmatprep.subr.mxu0 0.0
    %3513 = vmatpush1.msra.mxu0 0.0
    %3514 = vmatprep.subr.mxu0 0.0
    %3515 = vmatpush1.msra.mxu0 0.0
    %3516 = vmatprep.subr.mxu0 0.0
    %3517 = vmatpush1.msra.mxu0 0.0
    %3518 = vmatprep.subr.mxu0 0.0
    %3519 = vmatpush1.msra.mxu0 0.0
    %3520 = vmatprep.subr.mxu0 0.0
    %3521 = vmatpush1.msra.mxu0 0.0
    %3522 = vmatprep.subr.mxu0 0.0
    %3523 = vmatpush1.msra.mxu0 0.0
    %3524 = vmatprep.subr.mxu0 0.0
    %3525 = vmatpush1.msra.mxu0 0.0
    %3526 = vmatprep.subr.mxu0 0.0
    %3527 = vmatpush1.msra.mxu0 0.0
    %3528 = vmatprep.subr.mxu0 0.0
    %3529 = vmatpush1.msra.mxu0 0.0
    %3530 = vmatprep.subr.mxu0 0.0
    %3531 = vmatpush1.msra.mxu0 0.0
    %3532 = vmatprep.subr.mxu0 0.0
    %3533 = vmatpush1.msra.mxu0 0.0
    %3534 = vmatprep.mubr.f32.mxu0 0.0
    %3535 = vmatmul.mubr.f32.gmra.mrb[0].mxu0 %v3468
    %v3536 = vpop.f32.mrb[0].mxu0
    %v3537 = vadd.f32 0.0, %v3536
    %v3538 = vpop.f32.mrb[0].mxu0
    %3539 = vdwg.mxu0
    %v3541 = vrot.slane %v3537, 1
    %v3544 = vadd.f32 %v3388, %v3537
    %v3545 = vadd.f32 %v3460, %v3541
    %v3546 = vadd.f32 %v3544, %v313
    %v3547 = vadd.f32 %v3545, %v313
    %v3548 = vxor.u32 %v3546, 2147483648
    %v3549 = vxor.u32 %v3547, 2147483648
    %v3550 = vmul.f32 %v3548, 1.442695
    %v3551 = vpow.pop %v3550
    %v3552 = vmul.f32 %v3549, 1.442695
    %v3553 = vpow.pop %v3552
    %v3554 = vadd.f32 %v3551, 1.0
    %v3555 = vadd.f32 %v3553, 1.0
    %v3556 = vrcp.pop %v3554
    %v3557 = vmul.f32 1.0, %v3556
    %v3558 = vrcp.pop %v3555
    %v3559 = vmul.f32 1.0, %v3558
    %v3560 = vtanh.pop %v3546
    %v3561 = vtanh.pop %v3547
    %v3562 = vmul.f32 %v3557, %v3058
    %v3563 = vmul.f32 %v3559, %v3059
    %3566 = vrot.lane.b32.xlu0 %v3560, 64
    %v3567 = vpop.permute.xlu0 %3566
    %3568 = vrot.lane.b32.xlu0 %v3561, 64
    %v3569 = vpop.permute.xlu0 %3568
    %v3572 = vmul.f32 %v3557, %v3567
    %v3573 = vmul.f32 %v3559, %v3569
    %3576 = vrot.lane.b32.xlu0 %v3572, 32
    %v3577 = vpop.permute.xlu0 %3576
    %3578 = vrot.lane.b32.xlu0 %v3573, 32
    %v3579 = vpop.permute.xlu0 %3578
    %v3582 = vadd.f32 %v3562, %v3577
    %v3583 = vadd.f32 %v3563, %v3579
    %v3584 = vtanh.pop %v3582
    %v3585 = vtanh.pop %v3583
    %3588 = vrot.lane.b32.xlu0 %v3584, 64
    %v3589 = vpop.permute.xlu0 %3588
    %3590 = vrot.lane.b32.xlu0 %v3585, 64
    %v3591 = vpop.permute.xlu0 %3590
    %v3594 = vmul.f32 %v3557, %v3589
    %v3595 = vmul.f32 %v3559, %v3591
    %3597 = vrot.lane.b32.xlu0 %v3594, 32
    %v3598 = vpop.permute.xlu0 %3597
    %v3599 = vsel %vm53, %v3598, 0
    %3601 = vmatprep.subr.mxu0 0.0
    %3602 = vmatpush1.xpose.msra.mxu0 %v444
    %3603 = vmatprep.subr.mxu0 0.0
    %3604 = vmatpush1.xpose.msra.mxu0 0.0
    %3605 = vmatprep.subr.mxu0 0.0
    %3606 = vmatpush1.xpose.msra.mxu0 0.0
    %3607 = vmatprep.subr.mxu0 0.0
    %3608 = vmatpush1.xpose.msra.mxu0 0.0
    %3609 = vmatprep.subr.mxu0 0.0
    %3610 = vmatpush1.xpose.msra.mxu0 0.0
    %3611 = vmatprep.subr.mxu0 0.0
    %3612 = vmatpush1.xpose.msra.mxu0 0.0
    %3613 = vmatprep.subr.mxu0 0.0
    %3614 = vmatpush1.xpose.msra.mxu0 0.0
    %3615 = vmatprep.subr.mxu0 0.0
    %3616 = vmatpush1.xpose.msra.mxu0 0.0
    %3617 = vmatprep.subr.mxu0 0.0
    %3618 = vmatpush1.xpose.msra.mxu0 0.0
    %3619 = vmatprep.subr.mxu0 0.0
    %3620 = vmatpush1.xpose.msra.mxu0 0.0
    %3621 = vmatprep.subr.mxu0 0.0
    %3622 = vmatpush1.xpose.msra.mxu0 0.0
    %3623 = vmatprep.subr.mxu0 0.0
    %3624 = vmatpush1.xpose.msra.mxu0 0.0
    %3625 = vmatprep.subr.mxu0 0.0
    %3626 = vmatpush1.xpose.msra.mxu0 0.0
    %3627 = vmatprep.subr.mxu0 0.0
    %3628 = vmatpush1.xpose.msra.mxu0 0.0
    %3629 = vmatprep.subr.mxu0 0.0
    %3630 = vmatpush1.xpose.msra.mxu0 0.0
    %3631 = vmatprep.subr.mxu0 0.0
    %3632 = vmatpush1.xpose.msra.mxu0 0.0
    %3633 = vmatprep.subr.mxu0 0.0
    %3634 = vmatpush1.xpose.msra.mxu0 0.0
    %3635 = vmatprep.subr.mxu0 0.0
    %3636 = vmatpush1.xpose.msra.mxu0 0.0
    %3637 = vmatprep.subr.mxu0 0.0
    %3638 = vmatpush1.xpose.msra.mxu0 0.0
    %3639 = vmatprep.subr.mxu0 0.0
    %3640 = vmatpush1.xpose.msra.mxu0 0.0
    %3641 = vmatprep.subr.mxu0 0.0
    %3642 = vmatpush1.xpose.msra.mxu0 0.0
    %3643 = vmatprep.subr.mxu0 0.0
    %3644 = vmatpush1.xpose.msra.mxu0 0.0
    %3645 = vmatprep.subr.mxu0 0.0
    %3646 = vmatpush1.xpose.msra.mxu0 0.0
    %3647 = vmatprep.subr.mxu0 0.0
    %3648 = vmatpush1.xpose.msra.mxu0 0.0
    %3649 = vmatprep.subr.mxu0 0.0
    %3650 = vmatpush1.xpose.msra.mxu0 0.0
    %3651 = vmatprep.subr.mxu0 0.0
    %3652 = vmatpush1.xpose.msra.mxu0 0.0
    %3653 = vmatprep.subr.mxu0 0.0
    %3654 = vmatpush1.xpose.msra.mxu0 0.0
    %3655 = vmatprep.subr.mxu0 0.0
    %3656 = vmatpush1.xpose.msra.mxu0 0.0
    %3657 = vmatprep.subr.mxu0 0.0
    %3658 = vmatpush1.xpose.msra.mxu0 0.0
    %3659 = vmatprep.subr.mxu0 0.0
    %3660 = vmatpush1.xpose.msra.mxu0 0.0
    %3661 = vmatprep.subr.mxu0 0.0
    %3662 = vmatpush1.xpose.msra.mxu0 0.0
    %3663 = vmatprep.subr.mxu0 0.0
    %3664 = vmatpush1.xpose.msra.mxu0 0.0
    %3665 = vmatprep.mubr.f32.mxu0 0.0
    %3666 = vmatmul.mubr.f32.gmra.mrb[0].mxu0 %v3599
    %v3667 = vpop.f32.mrb[0].mxu0
    %v3668 = vadd.f32 0.0, %v3667
    %v3669 = vpop.f32.mrb[0].mxu0
    %3670 = vdwg.mxu0
    %3672 = vrot.lane.b32.xlu0 %v3595, 32
    %v3673 = vpop.permute.xlu0 %3672
    %v3674 = vsel %vm53, %v3673, 0
    %3676 = vmatprep.subr.mxu0 0.0
    %3677 = vmatpush1.xpose.msra.mxu0 %v525
    %3678 = vmatprep.subr.mxu0 0.0
    %3679 = vmatpush1.xpose.msra.mxu0 0.0
    %3680 = vmatprep.subr.mxu0 0.0
    %3681 = vmatpush1.xpose.msra.mxu0 0.0
    %3682 = vmatprep.subr.mxu0 0.0
    %3683 = vmatpush1.xpose.msra.mxu0 0.0
    %3684 = vmatprep.subr.mxu0 0.0
    %3685 = vmatpush1.xpose.msra.mxu0 0.0
    %3686 = vmatprep.subr.mxu0 0.0
    %3687 = vmatpush1.xpose.msra.mxu0 0.0
    %3688 = vmatprep.subr.mxu0 0.0
    %3689 = vmatpush1.xpose.msra.mxu0 0.0
    %3690 = vmatprep.subr.mxu0 0.0
    %3691 = vmatpush1.xpose.msra.mxu0 0.0
    %3692 = vmatprep.subr.mxu0 0.0
    %3693 = vmatpush1.xpose.msra.mxu0 0.0
    %3694 = vmatprep.subr.mxu0 0.0
    %3695 = vmatpush1.xpose.msra.mxu0 0.0
    %3696 = vmatprep.subr.mxu0 0.0
    %3697 = vmatpush1.xpose.msra.mxu0 0.0
    %3698 = vmatprep.subr.mxu0 0.0
    %3699 = vmatpush1.xpose.msra.mxu0 0.0
    %3700 = vmatprep.subr.mxu0 0.0
    %3701 = vmatpush1.xpose.msra.mxu0 0.0
    %3702 = vmatprep.subr.mxu0 0.0
    %3703 = vmatpush1.xpose.msra.mxu0 0.0
    %3704 = vmatprep.subr.mxu0 0.0
    %3705 = vmatpush1.xpose.msra.mxu0 0.0
    %3706 = vmatprep.subr.mxu0 0.0
    %3707 = vmatpush1.xpose.msra.mxu0 0.0
    %3708 = vmatprep.subr.mxu0 0.0
    %3709 = vmatpush1.xpose.msra.mxu0 0.0
    %3710 = vmatprep.subr.mxu0 0.0
    %3711 = vmatpush1.xpose.msra.mxu0 0.0
    %3712 = vmatprep.subr.mxu0 0.0
    %3713 = vmatpush1.xpose.msra.mxu0 0.0
    %3714 = vmatprep.subr.mxu0 0.0
    %3715 = vmatpush1.xpose.msra.mxu0 0.0
    %3716 = vmatprep.subr.mxu0 0.0
    %3717 = vmatpush1.xpose.msra.mxu0 0.0
    %3718 = vmatprep.subr.mxu0 0.0
    %3719 = vmatpush1.xpose.msra.mxu0 0.0
    %3720 = vmatprep.subr.mxu0 0.0
    %3721 = vmatpush1.xpose.msra.mxu0 0.0
    %3722 = vmatprep.subr.mxu0 0.0
    %3723 = vmatpush1.xpose.msra.mxu0 0.0
    %3724 = vmatprep.subr.mxu0 0.0
    %3725 = vmatpush1.xpose.msra.mxu0 0.0
    %3726 = vmatprep.subr.mxu0 0.0
    %3727 = vmatpush1.xpose.msra.mxu0 0.0
    %3728 = vmatprep.subr.mxu0 0.0
    %3729 = vmatpush1.xpose.msra.mxu0 0.0
    %3730 = vmatprep.subr.mxu0 0.0
    %3731 = vmatpush1.xpose.msra.mxu0 0.0
    %3732 = vmatprep.subr.mxu0 0.0
    %3733 = vmatpush1.xpose.msra.mxu0 0.0
    %3734 = vmatprep.subr.mxu0 0.0
    %3735 = vmatpush1.xpose.msra.mxu0 0.0
    %3736 = vmatprep.subr.mxu0 0.0
    %3737 = vmatpush1.xpose.msra.mxu0 0.0
    %3738 = vmatprep.subr.mxu0 0.0
    %3739 = vmatpush1.xpose.msra.mxu0 0.0
    %3740 = vmatprep.mubr.f32.mxu0 0.0
    %3741 = vmatmul.mubr.f32.gmra.mrb[0].mxu0 %v3674
    %v3742 = vpop.f32.mrb[0].mxu0
    %v3743 = vadd.f32 0.0, %v3742
    %v3744 = vpop.f32.mrb[0].mxu0
    %3745 = vdwg.mxu0
    %vm3746 = vcmp.gt.f32.partialorder %v3463, 0.5
    %v3749 = vrot.slane %v3743, 7
    %v3750 = vsel %vm601, %v3749, %v3668
    %v3752 = vsel %vm3746, -1e+30, %v3750
    %v3753 = vsel %vm605, %v3752, -inf
    %3754 = vmax.xlane.f32.xlu0 %v3753
    %v3755 = vpop.xlane.xlu0 %3754
    %v3756 = vsub.f32 %v3752, %v3755
    %v3757 = vmul.f32 %v3756, 1.442695
    %v3758 = vpow.pop %v3757
    %v3759 = vsel %vm605, %v3758, 0.0
    %3760 = vadd.xlane.f32.xlu0 %v3759
    %v3761 = vpop.xlane.xlu0 %3760
    %v3762 = vrcp.pop %v3761
    %v3763 = vmul.f32 %v3758, %v3762
    %vm3764 = vcmp.eq.s32.totalorder %v308, 6
    %v3767 = vunpack.c.l.s4 1966171168
    %v3768 = vunpack.c.0.s8 %v3767
    %v3769 = vlaneseq
    %v3770 = vshrl.u32 %v3769, 7
    %v3771 = vsub.s32 %v3768, %v3770
    %v3772 = vrot.slane %v3763, %v3771
    %v3773 = vcombine.high %v3772, %v3772
    %v3775 = vunpack.c.l.s4 1966171168
    %v3776 = vunpack.c.0.s8 %v3775
    %v3777 = vlaneseq
    %v3778 = vshrl.u32 %v3777, 7
    %v3779 = vsub.s32 %v3776, %v3778
    %v3780 = vrot.slane %v3772, %v3779
    %v3782 = vunpack.c.l.s4 1966171168
    %v3783 = vunpack.c.0.s8 %v3782
    %v3784 = vlaneseq
    %v3785 = vshrl.u32 %v3784, 7
    %v3786 = vsub.s32 %v3783, %v3785
    %v3787 = vrot.slane %v3773, %v3786
    %v3788 = vlaneseq
    %v3789 = vshrl.u32 %v3788, 7
    %v3790 = vsub.s32 0, %v3789
    %v3791 = vrot.slane %v3780, %v3790
    %v3792 = vlaneseq
    %v3793 = vshrl.u32 %v3792, 7
    %v3794 = vsub.s32 0, %v3793
    %v3795 = vrot.slane %v3787, %v3794
    %v3798 = vsel %vm3764, %v3791, %v3274
    %v3799 = vsel %vm3764, %v3795, %v3275
    %vm3800 = vcmp.ge.f32.partialorder %v3752, %v3755
    %v3801 = vsel %vm3800, %v306, 8
    %v3802 = vsel %vm605, %v3801, 2147483647
    %v3803 = vand.u32 %v3802, 65535
    %v3804 = vshra.s32 %v3802, 16
    %v3805 = vcvt.s32.f32 %v3803
    %v3806 = vcvt.s32.f32 %v3804
    %3807 = vmin.xlane.f32.xlu0 %v3806
    %v3808 = vpop.xlane.xlu0 %3807
    %vm3809 = vcmp.eq.f32.partialorder %v3806, %v3808
    %v3810 = vsel %vm3809, %v3805, inf
    %3811 = vmin.xlane.f32.xlu0 %v3810
    %v3812 = vpop.xlane.xlu0 %3811
    %v3813 = vcvt.f32.s32 %v3812
    %v3814 = vcvt.f32.s32 %v3808
    %v3815 = vshll.u32 %v3814, 16
    %v3816 = vadd.s32 %v3815, %v3813
    %vm3817 = vcmp.eq.s32.totalorder %v306, %v3816
    %v3818 = vsel %vm3817, 1, 0
    %v3819 = vcvt.s32.f32 %v3818
    %v3822 = vunpack.c.l.s4 1966171168
    %v3823 = vunpack.c.0.s8 %v3822
    %v3824 = vlaneseq
    %v3825 = vshrl.u32 %v3824, 7
    %v3826 = vsub.s32 %v3823, %v3825
    %v3827 = vrot.slane %v3819, %v3826
    %v3828 = vcombine.high %v3827, %v3827
    %v3830 = vunpack.c.l.s4 1966171168
    %v3831 = vunpack.c.0.s8 %v3830
    %v3832 = vlaneseq
    %v3833 = vshrl.u32 %v3832, 7
    %v3834 = vsub.s32 %v3831, %v3833
    %v3835 = vrot.slane %v3827, %v3834
    %v3837 = vunpack.c.l.s4 1966171168
    %v3838 = vunpack.c.0.s8 %v3837
    %v3839 = vlaneseq
    %v3840 = vshrl.u32 %v3839, 7
    %v3841 = vsub.s32 %v3838, %v3840
    %v3842 = vrot.slane %v3828, %v3841
    %v3843 = vsel %vm696, %v3835, 0
    %3845 = vmatprep.subr.mxu0 0.0
    %3846 = vmatpush1.msra.mxu0 %v206
    %3847 = vmatprep.subr.mxu0 0.0
    %3848 = vmatpush1.msra.mxu0 0.0
    %3849 = vmatprep.subr.mxu0 0.0
    %3850 = vmatpush1.msra.mxu0 0.0
    %3851 = vmatprep.subr.mxu0 0.0
    %3852 = vmatpush1.msra.mxu0 0.0
    %3853 = vmatprep.subr.mxu0 0.0
    %3854 = vmatpush1.msra.mxu0 0.0
    %3855 = vmatprep.subr.mxu0 0.0
    %3856 = vmatpush1.msra.mxu0 0.0
    %3857 = vmatprep.subr.mxu0 0.0
    %3858 = vmatpush1.msra.mxu0 0.0
    %3859 = vmatprep.subr.mxu0 0.0
    %3860 = vmatpush1.msra.mxu0 0.0
    %3861 = vmatprep.subr.mxu0 0.0
    %3862 = vmatpush1.msra.mxu0 0.0
    %3863 = vmatprep.subr.mxu0 0.0
    %3864 = vmatpush1.msra.mxu0 0.0
    %3865 = vmatprep.subr.mxu0 0.0
    %3866 = vmatpush1.msra.mxu0 0.0
    %3867 = vmatprep.subr.mxu0 0.0
    %3868 = vmatpush1.msra.mxu0 0.0
    %3869 = vmatprep.subr.mxu0 0.0
    %3870 = vmatpush1.msra.mxu0 0.0
    %3871 = vmatprep.subr.mxu0 0.0
    %3872 = vmatpush1.msra.mxu0 0.0
    %3873 = vmatprep.subr.mxu0 0.0
    %3874 = vmatpush1.msra.mxu0 0.0
    %3875 = vmatprep.subr.mxu0 0.0
    %3876 = vmatpush1.msra.mxu0 0.0
    %3877 = vmatprep.subr.mxu0 0.0
    %3878 = vmatpush1.msra.mxu0 0.0
    %3879 = vmatprep.subr.mxu0 0.0
    %3880 = vmatpush1.msra.mxu0 0.0
    %3881 = vmatprep.subr.mxu0 0.0
    %3882 = vmatpush1.msra.mxu0 0.0
    %3883 = vmatprep.subr.mxu0 0.0
    %3884 = vmatpush1.msra.mxu0 0.0
    %3885 = vmatprep.subr.mxu0 0.0
    %3886 = vmatpush1.msra.mxu0 0.0
    %3887 = vmatprep.subr.mxu0 0.0
    %3888 = vmatpush1.msra.mxu0 0.0
    %3889 = vmatprep.subr.mxu0 0.0
    %3890 = vmatpush1.msra.mxu0 0.0
    %3891 = vmatprep.subr.mxu0 0.0
    %3892 = vmatpush1.msra.mxu0 0.0
    %3893 = vmatprep.subr.mxu0 0.0
    %3894 = vmatpush1.msra.mxu0 0.0
    %3895 = vmatprep.subr.mxu0 0.0
    %3896 = vmatpush1.msra.mxu0 0.0
    %3897 = vmatprep.subr.mxu0 0.0
    %3898 = vmatpush1.msra.mxu0 0.0
    %3899 = vmatprep.subr.mxu0 0.0
    %3900 = vmatpush1.msra.mxu0 0.0
    %3901 = vmatprep.subr.mxu0 0.0
    %3902 = vmatpush1.msra.mxu0 0.0
    %3903 = vmatprep.subr.mxu0 0.0
    %3904 = vmatpush1.msra.mxu0 0.0
    %3905 = vmatprep.subr.mxu0 0.0
    %3906 = vmatpush1.msra.mxu0 0.0
    %3907 = vmatprep.subr.mxu0 0.0
    %3908 = vmatpush1.msra.mxu0 0.0
    %3909 = vmatprep.mubr.f32.mxu0 0.0
    %3910 = vmatmul.mubr.f32.gmra.mrb[0].mxu0 %v3843
    %v3911 = vpop.f32.mrb[0].mxu0
    %v3912 = vadd.f32 0.0, %v3911
    %v3913 = vpop.f32.mrb[0].mxu0
    %3914 = vdwg.mxu0
    %v3915 = vsel %vm696, %v3842, 0
    %3917 = vmatprep.subr.mxu0 0.0
    %3918 = vmatpush1.msra.mxu0 %v211
    %3919 = vmatprep.subr.mxu0 0.0
    %3920 = vmatpush1.msra.mxu0 0.0
    %3921 = vmatprep.subr.mxu0 0.0
    %3922 = vmatpush1.msra.mxu0 0.0
    %3923 = vmatprep.subr.mxu0 0.0
    %3924 = vmatpush1.msra.mxu0 0.0
    %3925 = vmatprep.subr.mxu0 0.0
    %3926 = vmatpush1.msra.mxu0 0.0
    %3927 = vmatprep.subr.mxu0 0.0
    %3928 = vmatpush1.msra.mxu0 0.0
    %3929 = vmatprep.subr.mxu0 0.0
    %3930 = vmatpush1.msra.mxu0 0.0
    %3931 = vmatprep.subr.mxu0 0.0
    %3932 = vmatpush1.msra.mxu0 0.0
    %3933 = vmatprep.subr.mxu0 0.0
    %3934 = vmatpush1.msra.mxu0 0.0
    %3935 = vmatprep.subr.mxu0 0.0
    %3936 = vmatpush1.msra.mxu0 0.0
    %3937 = vmatprep.subr.mxu0 0.0
    %3938 = vmatpush1.msra.mxu0 0.0
    %3939 = vmatprep.subr.mxu0 0.0
    %3940 = vmatpush1.msra.mxu0 0.0
    %3941 = vmatprep.subr.mxu0 0.0
    %3942 = vmatpush1.msra.mxu0 0.0
    %3943 = vmatprep.subr.mxu0 0.0
    %3944 = vmatpush1.msra.mxu0 0.0
    %3945 = vmatprep.subr.mxu0 0.0
    %3946 = vmatpush1.msra.mxu0 0.0
    %3947 = vmatprep.subr.mxu0 0.0
    %3948 = vmatpush1.msra.mxu0 0.0
    %3949 = vmatprep.subr.mxu0 0.0
    %3950 = vmatpush1.msra.mxu0 0.0
    %3951 = vmatprep.subr.mxu0 0.0
    %3952 = vmatpush1.msra.mxu0 0.0
    %3953 = vmatprep.subr.mxu0 0.0
    %3954 = vmatpush1.msra.mxu0 0.0
    %3955 = vmatprep.subr.mxu0 0.0
    %3956 = vmatpush1.msra.mxu0 0.0
    %3957 = vmatprep.subr.mxu0 0.0
    %3958 = vmatpush1.msra.mxu0 0.0
    %3959 = vmatprep.subr.mxu0 0.0
    %3960 = vmatpush1.msra.mxu0 0.0
    %3961 = vmatprep.subr.mxu0 0.0
    %3962 = vmatpush1.msra.mxu0 0.0
    %3963 = vmatprep.subr.mxu0 0.0
    %3964 = vmatpush1.msra.mxu0 0.0
    %3965 = vmatprep.subr.mxu0 0.0
    %3966 = vmatpush1.msra.mxu0 0.0
    %3967 = vmatprep.subr.mxu0 0.0
    %3968 = vmatpush1.msra.mxu0 0.0
    %3969 = vmatprep.subr.mxu0 0.0
    %3970 = vmatpush1.msra.mxu0 0.0
    %3971 = vmatprep.subr.mxu0 0.0
    %3972 = vmatpush1.msra.mxu0 0.0
    %3973 = vmatprep.subr.mxu0 0.0
    %3974 = vmatpush1.msra.mxu0 0.0
    %3975 = vmatprep.subr.mxu0 0.0
    %3976 = vmatpush1.msra.mxu0 0.0
    %3977 = vmatprep.subr.mxu0 0.0
    %3978 = vmatpush1.msra.mxu0 0.0
    %3979 = vmatprep.subr.mxu0 0.0
    %3980 = vmatpush1.msra.mxu0 0.0
    %3981 = vmatprep.mubr.f32.mxu0 0.0
    %3982 = vmatmul.mubr.f32.gmra.mrb[0].mxu0 %v3915
    %v3983 = vpop.f32.mrb[0].mxu0
    %v3984 = vadd.f32 0.0, %v3983
    %v3985 = vpop.f32.mrb[0].mxu0
    %3986 = vdwg.mxu0
    %v3987 = vmax.f32 %v3463, %v3819
    %v3988 = vrot.slane %v3595, 7
    %v3989 = vsel %vm601, %v3988, %v3594
    %3990 = vrot.lane.b32.xlu0 %v3989, 32
    %v3991 = vpop.permute.xlu0 %3990
    %v3992 = vsel %vm53, %v3991, 0
    %3994 = vmatprep.subr.mxu0 0.0
    %3995 = vmatpush1.msra.mxu0 %v214
    %3996 = vmatprep.subr.mxu0 0.0
    %3997 = vmatpush1.msra.mxu0 %v215
    %3998 = vmatprep.subr.mxu0 0.0
    %3999 = vmatpush1.msra.mxu0 %v216
    %4000 = vmatprep.subr.mxu0 0.0
    %4001 = vmatpush1.msra.mxu0 %v217
    %4002 = vmatprep.subr.mxu0 0.0
    %4003 = vmatpush1.msra.mxu0 0.0
    %4004 = vmatprep.subr.mxu0 0.0
    %4005 = vmatpush1.msra.mxu0 0.0
    %4006 = vmatprep.subr.mxu0 0.0
    %4007 = vmatpush1.msra.mxu0 0.0
    %4008 = vmatprep.subr.mxu0 0.0
    %4009 = vmatpush1.msra.mxu0 0.0
    %4010 = vmatprep.subr.mxu0 0.0
    %4011 = vmatpush1.msra.mxu0 0.0
    %4012 = vmatprep.subr.mxu0 0.0
    %4013 = vmatpush1.msra.mxu0 0.0
    %4014 = vmatprep.subr.mxu0 0.0
    %4015 = vmatpush1.msra.mxu0 0.0
    %4016 = vmatprep.subr.mxu0 0.0
    %4017 = vmatpush1.msra.mxu0 0.0
    %4018 = vmatprep.subr.mxu0 0.0
    %4019 = vmatpush1.msra.mxu0 0.0
    %4020 = vmatprep.subr.mxu0 0.0
    %4021 = vmatpush1.msra.mxu0 0.0
    %4022 = vmatprep.subr.mxu0 0.0
    %4023 = vmatpush1.msra.mxu0 0.0
    %4024 = vmatprep.subr.mxu0 0.0
    %4025 = vmatpush1.msra.mxu0 0.0
    %4026 = vmatprep.subr.mxu0 0.0
    %4027 = vmatpush1.msra.mxu0 0.0
    %4028 = vmatprep.subr.mxu0 0.0
    %4029 = vmatpush1.msra.mxu0 0.0
    %4030 = vmatprep.subr.mxu0 0.0
    %4031 = vmatpush1.msra.mxu0 0.0
    %4032 = vmatprep.subr.mxu0 0.0
    %4033 = vmatpush1.msra.mxu0 0.0
    %4034 = vmatprep.subr.mxu0 0.0
    %4035 = vmatpush1.msra.mxu0 0.0
    %4036 = vmatprep.subr.mxu0 0.0
    %4037 = vmatpush1.msra.mxu0 0.0
    %4038 = vmatprep.subr.mxu0 0.0
    %4039 = vmatpush1.msra.mxu0 0.0
    %4040 = vmatprep.subr.mxu0 0.0
    %4041 = vmatpush1.msra.mxu0 0.0
    %4042 = vmatprep.subr.mxu0 0.0
    %4043 = vmatpush1.msra.mxu0 0.0
    %4044 = vmatprep.subr.mxu0 0.0
    %4045 = vmatpush1.msra.mxu0 0.0
    %4046 = vmatprep.subr.mxu0 0.0
    %4047 = vmatpush1.msra.mxu0 0.0
    %4048 = vmatprep.subr.mxu0 0.0
    %4049 = vmatpush1.msra.mxu0 0.0
    %4050 = vmatprep.subr.mxu0 0.0
    %4051 = vmatpush1.msra.mxu0 0.0
    %4052 = vmatprep.subr.mxu0 0.0
    %4053 = vmatpush1.msra.mxu0 0.0
    %4054 = vmatprep.subr.mxu0 0.0
    %4055 = vmatpush1.msra.mxu0 0.0
    %4056 = vmatprep.subr.mxu0 0.0
    %4057 = vmatpush1.msra.mxu0 0.0
    %4058 = vmatprep.mubr.f32.mxu0 0.0
    %4059 = vmatmul.mubr.f32.gmra.mrb[0].mxu0 %v3992
    %v4060 = vpop.f32.mrb[0].mxu0
    %v4061 = vadd.f32 0.0, %v4060
    %v4062 = vpop.f32.mrb[0].mxu0
    %4063 = vdwg.mxu0
    %v4065 = vrot.slane %v4061, 1
    %v4068 = vadd.f32 %v3912, %v4061
    %v4069 = vadd.f32 %v3984, %v4065
    %v4070 = vadd.f32 %v4068, %v313
    %v4071 = vadd.f32 %v4069, %v313
    %v4072 = vxor.u32 %v4070, 2147483648
    %v4073 = vxor.u32 %v4071, 2147483648
    %v4074 = vmul.f32 %v4072, 1.442695
    %v4075 = vpow.pop %v4074
    %v4076 = vmul.f32 %v4073, 1.442695
    %v4077 = vpow.pop %v4076
    %v4078 = vadd.f32 %v4075, 1.0
    %v4079 = vadd.f32 %v4077, 1.0
    %v4080 = vrcp.pop %v4078
    %v4081 = vmul.f32 1.0, %v4080
    %v4082 = vrcp.pop %v4079
    %v4083 = vmul.f32 1.0, %v4082
    %v4084 = vtanh.pop %v4070
    %v4085 = vtanh.pop %v4071
    %v4086 = vmul.f32 %v4081, %v3582
    %v4087 = vmul.f32 %v4083, %v3583
    %4090 = vrot.lane.b32.xlu0 %v4084, 64
    %v4091 = vpop.permute.xlu0 %4090
    %4092 = vrot.lane.b32.xlu0 %v4085, 64
    %v4093 = vpop.permute.xlu0 %4092
    %v4096 = vmul.f32 %v4081, %v4091
    %v4097 = vmul.f32 %v4083, %v4093
    %4100 = vrot.lane.b32.xlu0 %v4096, 32
    %v4101 = vpop.permute.xlu0 %4100
    %4102 = vrot.lane.b32.xlu0 %v4097, 32
    %v4103 = vpop.permute.xlu0 %4102
    %v4106 = vadd.f32 %v4086, %v4101
    %v4107 = vadd.f32 %v4087, %v4103
    %v4108 = vtanh.pop %v4106
    %v4109 = vtanh.pop %v4107
    %4112 = vrot.lane.b32.xlu0 %v4108, 64
    %v4113 = vpop.permute.xlu0 %4112
    %4114 = vrot.lane.b32.xlu0 %v4109, 64
    %v4115 = vpop.permute.xlu0 %4114
    %v4118 = vmul.f32 %v4081, %v4113
    %v4119 = vmul.f32 %v4083, %v4115
    %4121 = vrot.lane.b32.xlu0 %v4118, 32
    %v4122 = vpop.permute.xlu0 %4121
    %v4123 = vsel %vm53, %v4122, 0
    %4125 = vmatprep.subr.mxu0 0.0
    %4126 = vmatpush1.xpose.msra.mxu0 %v444
    %4127 = vmatprep.subr.mxu0 0.0
    %4128 = vmatpush1.xpose.msra.mxu0 0.0
    %4129 = vmatprep.subr.mxu0 0.0
    %4130 = vmatpush1.xpose.msra.mxu0 0.0
    %4131 = vmatprep.subr.mxu0 0.0
    %4132 = vmatpush1.xpose.msra.mxu0 0.0
    %4133 = vmatprep.subr.mxu0 0.0
    %4134 = vmatpush1.xpose.msra.mxu0 0.0
    %4135 = vmatprep.subr.mxu0 0.0
    %4136 = vmatpush1.xpose.msra.mxu0 0.0
    %4137 = vmatprep.subr.mxu0 0.0
    %4138 = vmatpush1.xpose.msra.mxu0 0.0
    %4139 = vmatprep.subr.mxu0 0.0
    %4140 = vmatpush1.xpose.msra.mxu0 0.0
    %4141 = vmatprep.subr.mxu0 0.0
    %4142 = vmatpush1.xpose.msra.mxu0 0.0
    %4143 = vmatprep.subr.mxu0 0.0
    %4144 = vmatpush1.xpose.msra.mxu0 0.0
    %4145 = vmatprep.subr.mxu0 0.0
    %4146 = vmatpush1.xpose.msra.mxu0 0.0
    %4147 = vmatprep.subr.mxu0 0.0
    %4148 = vmatpush1.xpose.msra.mxu0 0.0
    %4149 = vmatprep.subr.mxu0 0.0
    %4150 = vmatpush1.xpose.msra.mxu0 0.0
    %4151 = vmatprep.subr.mxu0 0.0
    %4152 = vmatpush1.xpose.msra.mxu0 0.0
    %4153 = vmatprep.subr.mxu0 0.0
    %4154 = vmatpush1.xpose.msra.mxu0 0.0
    %4155 = vmatprep.subr.mxu0 0.0
    %4156 = vmatpush1.xpose.msra.mxu0 0.0
    %4157 = vmatprep.subr.mxu0 0.0
    %4158 = vmatpush1.xpose.msra.mxu0 0.0
    %4159 = vmatprep.subr.mxu0 0.0
    %4160 = vmatpush1.xpose.msra.mxu0 0.0
    %4161 = vmatprep.subr.mxu0 0.0
    %4162 = vmatpush1.xpose.msra.mxu0 0.0
    %4163 = vmatprep.subr.mxu0 0.0
    %4164 = vmatpush1.xpose.msra.mxu0 0.0
    %4165 = vmatprep.subr.mxu0 0.0
    %4166 = vmatpush1.xpose.msra.mxu0 0.0
    %4167 = vmatprep.subr.mxu0 0.0
    %4168 = vmatpush1.xpose.msra.mxu0 0.0
    %4169 = vmatprep.subr.mxu0 0.0
    %4170 = vmatpush1.xpose.msra.mxu0 0.0
    %4171 = vmatprep.subr.mxu0 0.0
    %4172 = vmatpush1.xpose.msra.mxu0 0.0
    %4173 = vmatprep.subr.mxu0 0.0
    %4174 = vmatpush1.xpose.msra.mxu0 0.0
    %4175 = vmatprep.subr.mxu0 0.0
    %4176 = vmatpush1.xpose.msra.mxu0 0.0
    %4177 = vmatprep.subr.mxu0 0.0
    %4178 = vmatpush1.xpose.msra.mxu0 0.0
    %4179 = vmatprep.subr.mxu0 0.0
    %4180 = vmatpush1.xpose.msra.mxu0 0.0
    %4181 = vmatprep.subr.mxu0 0.0
    %4182 = vmatpush1.xpose.msra.mxu0 0.0
    %4183 = vmatprep.subr.mxu0 0.0
    %4184 = vmatpush1.xpose.msra.mxu0 0.0
    %4185 = vmatprep.subr.mxu0 0.0
    %4186 = vmatpush1.xpose.msra.mxu0 0.0
    %4187 = vmatprep.subr.mxu0 0.0
    %4188 = vmatpush1.xpose.msra.mxu0 0.0
    %4189 = vmatprep.mubr.f32.mxu0 0.0
    %4190 = vmatmul.mubr.f32.gmra.mrb[0].mxu0 %v4123
    %v4191 = vpop.f32.mrb[0].mxu0
    %v4192 = vadd.f32 0.0, %v4191
    %v4193 = vpop.f32.mrb[0].mxu0
    %4194 = vdwg.mxu0
    %4196 = vrot.lane.b32.xlu0 %v4119, 32
    %v4197 = vpop.permute.xlu0 %4196
    %v4198 = vsel %vm53, %v4197, 0
    %4200 = vmatprep.subr.mxu0 0.0
    %4201 = vmatpush1.xpose.msra.mxu0 %v525
    %4202 = vmatprep.subr.mxu0 0.0
    %4203 = vmatpush1.xpose.msra.mxu0 0.0
    %4204 = vmatprep.subr.mxu0 0.0
    %4205 = vmatpush1.xpose.msra.mxu0 0.0
    %4206 = vmatprep.subr.mxu0 0.0
    %4207 = vmatpush1.xpose.msra.mxu0 0.0
    %4208 = vmatprep.subr.mxu0 0.0
    %4209 = vmatpush1.xpose.msra.mxu0 0.0
    %4210 = vmatprep.subr.mxu0 0.0
    %4211 = vmatpush1.xpose.msra.mxu0 0.0
    %4212 = vmatprep.subr.mxu0 0.0
    %4213 = vmatpush1.xpose.msra.mxu0 0.0
    %4214 = vmatprep.subr.mxu0 0.0
    %4215 = vmatpush1.xpose.msra.mxu0 0.0
    %4216 = vmatprep.subr.mxu0 0.0
    %4217 = vmatpush1.xpose.msra.mxu0 0.0
    %4218 = vmatprep.subr.mxu0 0.0
    %4219 = vmatpush1.xpose.msra.mxu0 0.0
    %4220 = vmatprep.subr.mxu0 0.0
    %4221 = vmatpush1.xpose.msra.mxu0 0.0
    %4222 = vmatprep.subr.mxu0 0.0
    %4223 = vmatpush1.xpose.msra.mxu0 0.0
    %4224 = vmatprep.subr.mxu0 0.0
    %4225 = vmatpush1.xpose.msra.mxu0 0.0
    %4226 = vmatprep.subr.mxu0 0.0
    %4227 = vmatpush1.xpose.msra.mxu0 0.0
    %4228 = vmatprep.subr.mxu0 0.0
    %4229 = vmatpush1.xpose.msra.mxu0 0.0
    %4230 = vmatprep.subr.mxu0 0.0
    %4231 = vmatpush1.xpose.msra.mxu0 0.0
    %4232 = vmatprep.subr.mxu0 0.0
    %4233 = vmatpush1.xpose.msra.mxu0 0.0
    %4234 = vmatprep.subr.mxu0 0.0
    %4235 = vmatpush1.xpose.msra.mxu0 0.0
    %4236 = vmatprep.subr.mxu0 0.0
    %4237 = vmatpush1.xpose.msra.mxu0 0.0
    %4238 = vmatprep.subr.mxu0 0.0
    %4239 = vmatpush1.xpose.msra.mxu0 0.0
    %4240 = vmatprep.subr.mxu0 0.0
    %4241 = vmatpush1.xpose.msra.mxu0 0.0
    %4242 = vmatprep.subr.mxu0 0.0
    %4243 = vmatpush1.xpose.msra.mxu0 0.0
    %4244 = vmatprep.subr.mxu0 0.0
    %4245 = vmatpush1.xpose.msra.mxu0 0.0
    %4246 = vmatprep.subr.mxu0 0.0
    %4247 = vmatpush1.xpose.msra.mxu0 0.0
    %4248 = vmatprep.subr.mxu0 0.0
    %4249 = vmatpush1.xpose.msra.mxu0 0.0
    %4250 = vmatprep.subr.mxu0 0.0
    %4251 = vmatpush1.xpose.msra.mxu0 0.0
    %4252 = vmatprep.subr.mxu0 0.0
    %4253 = vmatpush1.xpose.msra.mxu0 0.0
    %4254 = vmatprep.subr.mxu0 0.0
    %4255 = vmatpush1.xpose.msra.mxu0 0.0
    %4256 = vmatprep.subr.mxu0 0.0
    %4257 = vmatpush1.xpose.msra.mxu0 0.0
    %4258 = vmatprep.subr.mxu0 0.0
    %4259 = vmatpush1.xpose.msra.mxu0 0.0
    %4260 = vmatprep.subr.mxu0 0.0
    %4261 = vmatpush1.xpose.msra.mxu0 0.0
    %4262 = vmatprep.subr.mxu0 0.0
    %4263 = vmatpush1.xpose.msra.mxu0 0.0
    %4264 = vmatprep.mubr.f32.mxu0 0.0
    %4265 = vmatmul.mubr.f32.gmra.mrb[0].mxu0 %v4198
    %v4266 = vpop.f32.mrb[0].mxu0
    %v4267 = vadd.f32 0.0, %v4266
    %v4268 = vpop.f32.mrb[0].mxu0
    %4269 = vdwg.mxu0
    %vm4270 = vcmp.gt.f32.partialorder %v3987, 0.5
    %v4273 = vrot.slane %v4267, 7
    %v4274 = vsel %vm601, %v4273, %v4192
    %v4276 = vsel %vm4270, -1e+30, %v4274
    %v4277 = vsel %vm605, %v4276, -inf
    %4278 = vmax.xlane.f32.xlu0 %v4277
    %v4279 = vpop.xlane.xlu0 %4278
    %v4280 = vsub.f32 %v4276, %v4279
    %v4281 = vmul.f32 %v4280, 1.442695
    %v4282 = vpow.pop %v4281
    %v4283 = vsel %vm605, %v4282, 0.0
    %4284 = vadd.xlane.f32.xlu0 %v4283
    %v4285 = vpop.xlane.xlu0 %4284
    %v4286 = vrcp.pop %v4285
    %v4287 = vmul.f32 %v4282, %v4286
    %vm4288 = vcmp.eq.s32.totalorder %v308, 7
    %v4291 = vunpack.c.l.s4 1966171168
    %v4292 = vunpack.c.0.s8 %v4291
    %v4293 = vlaneseq
    %v4294 = vshrl.u32 %v4293, 7
    %v4295 = vsub.s32 %v4292, %v4294
    %v4296 = vrot.slane %v4287, %v4295
    %v4297 = vcombine.high %v4296, %v4296
    %v4299 = vunpack.c.l.s4 1966171168
    %v4300 = vunpack.c.0.s8 %v4299
    %v4301 = vlaneseq
    %v4302 = vshrl.u32 %v4301, 7
    %v4303 = vsub.s32 %v4300, %v4302
    %v4304 = vrot.slane %v4296, %v4303
    %v4306 = vunpack.c.l.s4 1966171168
    %v4307 = vunpack.c.0.s8 %v4306
    %v4308 = vlaneseq
    %v4309 = vshrl.u32 %v4308, 7
    %v4310 = vsub.s32 %v4307, %v4309
    %v4311 = vrot.slane %v4297, %v4310
    %v4312 = vlaneseq
    %v4313 = vshrl.u32 %v4312, 7
    %v4314 = vsub.s32 0, %v4313
    %v4315 = vrot.slane %v4304, %v4314
    %v4316 = vlaneseq
    %v4317 = vshrl.u32 %v4316, 7
    %v4318 = vsub.s32 0, %v4317
    %v4319 = vrot.slane %v4311, %v4318
    %v4322 = vsel %vm4288, %v4315, %v3798
    %v4323 = vsel %vm4288, %v4319, %v3799
    %4324 = vst.msk [vmem:[#allocation5] sm:$0xff] %vm696, %v4322
    %4325 = vst.msk [vmem:[#allocation5 + $0x8] sm:$0xff] %vm696, %v4323
    // Predicated region
    $region42: #{double_pointer_forward.1} parent=1 // pred_check
      _
    $region43: #{double_pointer_forward.1} parent=1 // pred_check_branch
      %4327 = sbr.rel (0) target = $region45
    $region44: #{double_pointer_forward.1} parent=1 // pred_region
      %s4329 = ssub.s32 256, 256
      %4330 = vsyncadd [#allocation4], %s4329
      %s4331 = sshll.u32 [#allocation5], 4
      %s4332 = int_to_ptr.vmem [resolvable:$true] %s4331
      %4337 = dma.vmem_to_hbm [thread:$0]  %s4332, 256, %s9, [#allocation4], 128, 128, 8
    $region45: #{double_pointer_forward.1} parent=1 // pred_fallthru
      _
    // Predicated region
    $region46: #{double_pointer_forward.1} parent=1 // pred_check
      _
    $region47: #{double_pointer_forward.1} parent=1 // pred_check_branch
      %4339 = sbr.rel (0) target = $region49
    $region48: #{double_pointer_forward.1} parent=1 // pred_region
      %4340 = dma.done [#allocation4], 256
    $region49: #{double_pointer_forward.1} parent=1 // pred_fallthru
      _
    %4341 = vsyncpa [#allocation3], 1
    %4342 = vsyncpa [#allocation4], 1

</llo_original>
